<compile_context>
chip_gen: v7x
topology: tpu7x:2x2x1
jax: 0.10.0
libtpu: 0.0.40
codegen_flags: <defaults>
</compile_context>

<pallas_src>
import functools

import jax
import jax.numpy as jnp
from jax.experimental import pallas as pl
from jax.experimental.pallas import tpu as pltpu


def _round_up(x, m):
    return ((x + m - 1) // m) * m


# ----------------------------------------------------------------------------
# Kernel 1: fused  out = relu?( X @ W + shift ),  K-tiled, f32 accumulator.
#   X: (tm, tk) bf16, W: (tk, Np) bf16, shift: (1, Np) f32, out: (tm, Np).
# ----------------------------------------------------------------------------
def _matmul_affine_kernel(x_ref, w_ref, shift_ref, o_ref, acc_ref, *, apply_relu):
    k = pl.program_id(1)

    @pl.when(k == 0)
    def _():
        acc_ref[...] = jnp.zeros_like(acc_ref)

    acc_ref[...] += jnp.dot(x_ref[...], w_ref[...],
                            preferred_element_type=jnp.float32)

    @pl.when(k == pl.num_programs(1) - 1)
    def _():
        out = acc_ref[...] + shift_ref[...]
        if apply_relu:
            out = jnp.maximum(out, 0.0)
        o_ref[...] = out.astype(o_ref.dtype)


def fused_matmul_affine(x, w, shift, *, relu, out_dtype=jnp.float32):
    """x: (M, K), w: (K, N), shift: (N,) -> (M, N).

    Pads K and N to multiples of 128 (lane-dense, unmasked MXU/vst), pads M to
    a multiple of the M tile, casts operands to bf16, accumulates in f32.
    """
    M, K = x.shape
    K2, N = w.shape
    assert K == K2

    Kp = _round_up(K, 128)
    Np = _round_up(N, 128)
    tm = min(512, _round_up(M, 8))
    Mp = _round_up(M, tm)
    tk = 512 if Kp % 512 == 0 else (256 if Kp % 256 == 0 else 128)

    xp = jnp.pad(x.astype(jnp.bfloat16), ((0, Mp - M), (0, Kp - K)))
    wp = jnp.pad(w.astype(jnp.bfloat16), ((0, Kp - K), (0, Np - N)))
    sp = jnp.pad(shift.astype(jnp.float32), (0, Np - N)).reshape(1, Np)

    kernel = functools.partial(_matmul_affine_kernel, apply_relu=relu)
    out = pl.pallas_call(
        kernel,
        out_shape=jax.ShapeDtypeStruct((Mp, Np), out_dtype),
        grid_spec=pltpu.PrefetchScalarGridSpec(
            num_scalar_prefetch=0,
            grid=(Mp // tm, Kp // tk),
            in_specs=[
                pl.BlockSpec((tm, tk), lambda i, k: (i, k)),
                pl.BlockSpec((tk, Np), lambda i, k: (k, 0)),
                pl.BlockSpec((1, Np), lambda i, k: (0, 0)),
            ],
            out_specs=pl.BlockSpec((tm, Np), lambda i, k: (i, 0)),
            scratch_shapes=[pltpu.VMEM((tm, Np), jnp.float32)],
        ),
        compiler_params=pltpu.CompilerParams(
            dimension_semantics=("parallel", "arbitrary")),
    )(xp, wp, sp)
    return out[:M, :N]


# ----------------------------------------------------------------------------
# Kernel 2: fused 3x3 / stride-1 / pad-1 conv + shift + ReLU (im2col in-kernel).
#   x: (1, Hp, Wp, C) f32 (pre-padded), w: (9, C, OCp) bf16, shift: (1, OCp) f32
#   out: (1, Ho*Wo, OCp) f32.  Accumulates the 9 kernel taps on the MXU.
# ----------------------------------------------------------------------------
def _conv3x3_kernel(x_ref, w_ref, shift_ref, o_ref, acc_ref, *, Ho, Wo):
    C = x_ref.shape[3]
    OCp = w_ref.shape[2]

    acc_ref[...] = jnp.zeros_like(acc_ref)
    for t in range(9):                      # static unroll over the 9 taps
        i, j = t // 3, t % 3
        xt = x_ref[0, i:i + Ho, j:j + Wo, :].reshape(Ho * Wo, C)
        acc_ref[...] += jnp.dot(xt.astype(jnp.bfloat16), w_ref[t],
                                preferred_element_type=jnp.float32)

    out = jnp.maximum(acc_ref[...] + shift_ref[...], 0.0)
    o_ref[...] = out.reshape(1, Ho * Wo, OCp).astype(o_ref.dtype)


def conv3x3_fused(x_nhwc, w_oihw_folded, shift):
    """3x3 stride-1 pad-1 conv (BN-scale pre-folded into w) + shift + ReLU."""
    B, H, W, C = x_nhwc.shape
    OC = w_oihw_folded.shape[0]
    OCp = _round_up(OC, 128)
    Ho, Wo = H, W                                   # "same" conv
    xpad = jnp.pad(x_nhwc.astype(jnp.float32), ((0, 0), (1, 1), (1, 1), (0, 0)))
    Hp, Wp = H + 2, W + 2

    # (OC, C, 3, 3) -> (3, 3, C, OC) -> (9, C, OCp) bf16, lane-dense output chans
    wk = jnp.transpose(w_oihw_folded, (2, 3, 1, 0)).reshape(9, C, OC)
    wk = jnp.pad(wk, ((0, 0), (0, 0), (0, OCp - OC))).astype(jnp.bfloat16)
    sp = jnp.pad(shift.astype(jnp.float32), (0, OCp - OC)).reshape(1, OCp)

    kernel = functools.partial(_conv3x3_kernel, Ho=Ho, Wo=Wo)
    out = pl.pallas_call(
        kernel,
        out_shape=jax.ShapeDtypeStruct((B, Ho * Wo, OCp), jnp.float32),
        grid_spec=pltpu.PrefetchScalarGridSpec(
            num_scalar_prefetch=0,
            grid=(B,),
            in_specs=[
                pl.BlockSpec((1, Hp, Wp, C), lambda b: (b, 0, 0, 0)),
                pl.BlockSpec((9, C, OCp), lambda b: (0, 0, 0)),
                pl.BlockSpec((1, OCp), lambda b: (0, 0)),
            ],
            out_specs=pl.BlockSpec((1, Ho * Wo, OCp), lambda b: (b, 0, 0)),
            scratch_shapes=[pltpu.VMEM((Ho * Wo, OCp), jnp.float32)],
        ),
        compiler_params=pltpu.CompilerParams(
            dimension_semantics=("parallel",)),
    )(xpad, wk, sp)
    return out.reshape(B, Ho, Wo, OCp)[..., :OC]


# ----------------------------------------------------------------------------
# Plain-JAX glue for the matmul-path layers (conv1 7x7/s2, proj 8x8/s8)
# ----------------------------------------------------------------------------
def _im2col_nhwc(x, kh, kw, stride, pad):
    B, H, W, C = x.shape
    xp = jnp.pad(x, ((0, 0), (pad, pad), (pad, pad), (0, 0)))
    Ho = (H + 2 * pad - kh) // stride + 1
    Wo = (W + 2 * pad - kw) // stride + 1
    cols = []
    for i in range(kh):
        for j in range(kw):
            cols.append(xp[:, i:i + stride * Ho:stride, j:j + stride * Wo:stride, :])
    p = jnp.stack(cols, axis=3)                     # (B, Ho, Wo, kh*kw, C)
    return p.reshape(B, Ho, Wo, kh * kw * C), Ho, Wo


def conv2d_im2col_affine(x_nhwc, w_oihw_folded, shift, *, stride, pad, relu):
    """Conv (BN-scale pre-folded into w) + shift (+ReLU) via im2col + matmul."""
    OC, IC, kh, kw = w_oihw_folded.shape
    patches, Ho, Wo = _im2col_nhwc(x_nhwc, kh, kw, stride, pad)
    B = x_nhwc.shape[0]
    M, K = B * Ho * Wo, kh * kw * IC
    x2 = patches.reshape(M, K)
    w2 = jnp.transpose(w_oihw_folded, (2, 3, 1, 0)).reshape(K, OC)
    out = fused_matmul_affine(x2, w2, shift, relu=relu, out_dtype=jnp.float32)
    return out.reshape(B, Ho, Wo, OC)


def proj_patchify(x_nhwc, w_oihw, bias, *, patch):
    """Non-overlapping kxk/s=k conv + bias: patchify (pure reshape) + matmul."""
    B, H, W, C = x_nhwc.shape
    OC = w_oihw.shape[0]
    Gh, Gw = H // patch, W // patch
    xp = x_nhwc.reshape(B, Gh, patch, Gw, patch, C)
    xp = jnp.transpose(xp, (0, 1, 3, 2, 4, 5)).reshape(B * Gh * Gw, patch * patch * C)
    w2 = jnp.transpose(w_oihw, (2, 3, 1, 0)).reshape(patch * patch * C, OC)
    out = fused_matmul_affine(xp, w2, bias, relu=False, out_dtype=jnp.float32)
    return out.reshape(B, Gh * Gw, OC)              # == flatten(2).transpose(1,2)


# ----------------------------------------------------------------------------
# embed_conv forward
# ----------------------------------------------------------------------------
def make_embed_conv(params):
    (w1, s1, h1, w2, s2, h2, w3, s3, h3, wp, bp) = params
    # Fold the BN per-channel scale into the conv weights once (exact, eval BN);
    # kernels then only apply shift (+ReLU) in the epilogue.
    w1f = w1 * s1[:, None, None, None]
    w2f = w2 * s2[:, None, None, None]
    w3f = w3 * s3[:, None, None, None]

    def forward(x_nchw):
        x = jnp.transpose(x_nchw, (0, 2, 3, 1)).astype(jnp.float32)     # NCHW -> NHWC
        x = conv2d_im2col_affine(x, w1f, h1, stride=2, pad=3, relu=True)  # 7x7/2 +BN+ReLU
        x = conv3x3_fused(x, w2f, h2)                                     # 3x3   +BN+ReLU
        x = conv3x3_fused(x, w3f, h3)                                     # 3x3   +BN+ReLU
        return proj_patchify(x, wp, bp, patch=8)                          # 8x8/8 +bias

    return forward


def _bn_fold(kg, kb, km, kv, c, eps=1e-5):
    gamma = 1.0 + 0.1 * jax.random.normal(kg, (c,), jnp.float32)
    beta = 0.1 * jax.random.normal(kb, (c,), jnp.float32)
    mean = 0.1 * jax.random.normal(km, (c,), jnp.float32)
    var = 1.0 + 0.1 * jax.random.uniform(kv, (c,), jnp.float32)
    scale = gamma / jnp.sqrt(var + eps)
    shift = beta - mean * scale
    return scale, shift


if __name__ == "__main__":
    B, C, H, W = 2, 3, 32, 32
    embed_dim = 32

    keys = jax.random.split(jax.random.PRNGKey(0), 20)
    x = jax.random.normal(keys[0], (B, C, H, W), jnp.float32)

    # Deterministic synthetic parameters (shapes from the nn.Module __init__).
    w1 = 0.05 * jax.random.normal(keys[1], (64, 3, 7, 7), jnp.float32)
    w2 = 0.05 * jax.random.normal(keys[2], (64, 64, 3, 3), jnp.float32)
    w3 = 0.05 * jax.random.normal(keys[3], (64, 64, 3, 3), jnp.float32)
    wp = 0.05 * jax.random.normal(keys[4], (embed_dim, 64, 8, 8), jnp.float32)
    bp = 0.10 * jax.random.normal(keys[5], (embed_dim,), jnp.float32)

    s1, h1 = _bn_fold(keys[6], keys[7], keys[8], keys[9], 64)
    s2, h2 = _bn_fold(keys[10], keys[11], keys[12], keys[13], 64)
    s3, h3 = _bn_fold(keys[14], keys[15], keys[16], keys[17], 64)

    params = (w1, s1, h1, w2, s2, h2, w3, s3, h3, wp, bp)
    forward = jax.jit(make_embed_conv(params))

    out = jax.block_until_ready(forward(x))

    # Input 32x32 -> conv stem /2 -> 16x16 -> proj /8 -> 2x2 -> 4 patches.
    assert out.shape == (B, (H // 2 // 8) * (W // 2 // 8), embed_dim), out.shape
    assert out.dtype == jnp.float32
    print("KERNEL_OK")
</pallas_src>

<mosaic_0001>
module attributes {stable_mosaic.version = 11 : i64} {
  func.func @_matmul_affine_kernel(%arg0: i32, %arg1: i32, %arg2: memref<512x256xbf16, #tpu.memory_space<vmem>>, %arg3: memref<256x128xbf16, #tpu.memory_space<vmem>>, %arg4: memref<1x128xf32, #tpu.memory_space<vmem>>, %arg5: memref<512x128xf32, #tpu.memory_space<vmem>>, %arg6: memref<512x128xf32, #tpu.memory_space<vmem>>) attributes {dimension_semantics = [#tpu.dimension_semantics<parallel>, #tpu.dimension_semantics<arbitrary>], iteration_bounds = array<i64: 1, 1>, scalar_prefetch = 0 : i64, scratch_operands = 1 : i64, tpu.core_type = #tpu.core_type<tc>, window_params = [{transform_indices = @transform_0, window_bounds = array<i64: 512, 256>}, {transform_indices = @transform_1, window_bounds = array<i64: 256, 128>}, {pipeline_mode = #tpu.pipeline_mode<synchronous>, transform_indices = @transform_2, window_bounds = array<i64: 1, 128>}, {transform_indices = @transform_3, window_bounds = array<i64: 512, 128>}]} {
    %c0_i32 = arith.constant 0 : i32
    %0 = arith.cmpi eq, %arg1, %c0_i32 : i32
    %1 = arith.extui %0 : i1 to i32
    %c0_i32_0 = arith.constant 0 : i32
    %2 = arith.cmpi ne, %1, %c0_i32_0 : i32
    scf.if %2 {
      %cst_10 = arith.constant 0.000000e+00 : f32
      %12 = vector.broadcast %cst_10 : f32 to vector<512x128xf32>
      %c0_11 = arith.constant 0 : index
      %c0_12 = arith.constant 0 : index
      %13 = vector.load %arg6[%c0_11, %c0_12] : memref<512x128xf32, #tpu.memory_space<vmem>>, vector<512x128xf32>
      tpu.vector_store %arg6[%c0_11, %c0_12], %12 {strides = array<i32>} : memref<512x128xf32, #tpu.memory_space<vmem>>, vector<512x128xf32>,
    } else {
    }
    %c0 = arith.constant 0 : index
    %c0_1 = arith.constant 0 : index
    %3 = vector.load %arg6[%c0, %c0_1] : memref<512x128xf32, #tpu.memory_space<vmem>>, vector<512x128xf32>
    %c0_2 = arith.constant 0 : index
    %c0_3 = arith.constant 0 : index
    %4 = vector.load %arg2[%c0_2, %c0_3] : memref<512x256xbf16, #tpu.memory_space<vmem>>, vector<512x256xbf16>
    %c0_4 = arith.constant 0 : index
    %c0_5 = arith.constant 0 : index
    %5 = vector.load %arg3[%c0_4, %c0_5] : memref<256x128xbf16, #tpu.memory_space<vmem>>, vector<256x128xbf16>
    %cst = arith.constant dense<0.000000e+00> : vector<512x128xf32>
    %6 = tpu.matmul %4, %5, %cst {dimension_numbers = #tpu.dot_dimension_numbers<[1], [0], [0], [1], [0, 0, 1, 1], [], []>} : vector<512x256xbf16>, vector<256x128xbf16>, vector<512x128xf32> -> vector<512x128xf32>
    %7 = arith.addf %3, %6 : vector<512x128xf32>
    %c0_6 = arith.constant 0 : index
    %c0_7 = arith.constant 0 : index
    %8 = vector.load %arg6[%c0_6, %c0_7] : memref<512x128xf32, #tpu.memory_space<vmem>>, vector<512x128xf32>
    tpu.vector_store %arg6[%c0_6, %c0_7], %7 {strides = array<i32>} : memref<512x128xf32, #tpu.memory_space<vmem>>, vector<512x128xf32>,
    %c0_i32_8 = arith.constant 0 : i32
    %9 = arith.cmpi eq, %arg1, %c0_i32_8 : i32
    %10 = arith.extui %9 : i1 to i32
    %c0_i32_9 = arith.constant 0 : i32
    %11 = arith.cmpi ne, %10, %c0_i32_9 : i32
    scf.if %11 {
      %c0_10 = arith.constant 0 : index
      %c0_11 = arith.constant 0 : index
      %12 = vector.load %arg6[%c0_10, %c0_11] : memref<512x128xf32, #tpu.memory_space<vmem>>, vector<512x128xf32>
      %c0_12 = arith.constant 0 : index
      %c0_13 = arith.constant 0 : index
      %13 = vector.load %arg4[%c0_12, %c0_13] : memref<1x128xf32, #tpu.memory_space<vmem>>, vector<1x128xf32>
      %14 = vector.broadcast %13 : vector<1x128xf32> to vector<512x128xf32>
      %15 = arith.addf %12, %14 : vector<512x128xf32>
      %cst_14 = arith.constant 0.000000e+00 : f32
      %16 = vector.broadcast %cst_14 : f32 to vector<512x128xf32>
      %17 = arith.maximumf %15, %16 : vector<512x128xf32>
      %c0_15 = arith.constant 0 : index
      %c0_16 = arith.constant 0 : index
      %18 = vector.load %arg5[%c0_15, %c0_16] : memref<512x128xf32, #tpu.memory_space<vmem>>, vector<512x128xf32>
      tpu.vector_store %arg5[%c0_15, %c0_16], %17 {strides = array<i32>} : memref<512x128xf32, #tpu.memory_space<vmem>>, vector<512x128xf32>,
    } else {
    }
    return
  }
  func.func @transform_0(%arg0: i32, %arg1: i32) -> (i32, i32) {
    %c0_i32 = arith.constant 0 : i32
    return %arg0, %arg1 : i32, i32
  }
  func.func @transform_1(%arg0: i32, %arg1: i32) -> (i32, i32) {
    %c0_i32 = arith.constant 0 : i32
    %c0_i32_0 = arith.constant 0 : i32
    return %arg1, %c0_i32 : i32, i32
  }
  func.func @transform_2(%arg0: i32, %arg1: i32) -> (i32, i32) {
    %c0_i32 = arith.constant 0 : i32
    %c0_i32_0 = arith.constant 0 : i32
    %c0_i32_1 = arith.constant 0 : i32
    return %c0_i32, %c0_i32_0 : i32, i32
  }
  func.func @transform_3(%arg0: i32, %arg1: i32) -> (i32, i32) {
    %c0_i32 = arith.constant 0 : i32
    %c0_i32_0 = arith.constant 0 : i32
    return %arg0, %c0_i32 : i32, i32
  }
}

module attributes {stable_mosaic.version = 11 : i64} {
  func.func @_conv3x3_kernel(%arg0: i32, %arg1: memref<1x18x18x64xf32, #tpu.memory_space<vmem>>, %arg2: memref<9x64x128xbf16, #tpu.memory_space<vmem>>, %arg3: memref<1x128xf32, #tpu.memory_space<vmem>>, %arg4: memref<1x256x128xf32, #tpu.memory_space<vmem>>, %arg5: memref<256x128xf32, #tpu.memory_space<vmem>>) attributes {dimension_semantics = [#tpu.dimension_semantics<parallel>], iteration_bounds = array<i64: 2>, scalar_prefetch = 0 : i64, scratch_operands = 1 : i64, tpu.core_type = #tpu.core_type<tc>, window_params = [{transform_indices = @transform_0, window_bounds = array<i64: 1, 18, 18, 64>}, {pipeline_mode = #tpu.pipeline_mode<synchronous>, transform_indices = @transform_1, window_bounds = array<i64: 9, 64, 128>}, {pipeline_mode = #tpu.pipeline_mode<synchronous>, transform_indices = @transform_2, window_bounds = array<i64: 1, 128>}, {transform_indices = @transform_3, window_bounds = array<i64: 1, 256, 128>}]} {
    %cst = arith.constant 0.000000e+00 : f32
    %0 = vector.broadcast %cst : f32 to vector<256x128xf32>
    %c0 = arith.constant 0 : index
    %c0_0 = arith.constant 0 : index
    %1 = vector.load %arg5[%c0, %c0_0] : memref<256x128xf32, #tpu.memory_space<vmem>>, vector<256x128xf32>
    tpu.vector_store %arg5[%c0, %c0_0], %0 {strides = array<i32>} : memref<256x128xf32, #tpu.memory_space<vmem>>, vector<256x128xf32>,
    %c0_1 = arith.constant 0 : index
    %c0_2 = arith.constant 0 : index
    %c0_3 = arith.constant 0 : index
    %c0_4 = arith.constant 0 : index
    %2 = vector.load %arg1[%c0_1, %c0_2, %c0_3, %c0_4] : memref<1x18x18x64xf32, #tpu.memory_space<vmem>>, vector<1x16x16x64xf32>
    %3 = vector.shape_cast %2 : vector<1x16x16x64xf32> to vector<16x16x64xf32>
    %4 = vector.shape_cast %3 : vector<16x16x64xf32> to vector<256x64xf32>
    %c0_5 = arith.constant 0 : index
    %c0_6 = arith.constant 0 : index
    %5 = vector.load %arg5[%c0_5, %c0_6] : memref<256x128xf32, #tpu.memory_space<vmem>>, vector<256x128xf32>
    %6 = arith.truncf %4 : vector<256x64xf32> to vector<256x64xbf16>
    %c0_7 = arith.constant 0 : index
    %c0_8 = arith.constant 0 : index
    %c0_9 = arith.constant 0 : index
    %7 = vector.load %arg2[%c0_7, %c0_8, %c0_9] : memref<9x64x128xbf16, #tpu.memory_space<vmem>>, vector<1x64x128xbf16>
    %8 = vector.shape_cast %7 : vector<1x64x128xbf16> to vector<64x128xbf16>
    %cst_10 = arith.constant dense<0.000000e+00> : vector<256x128xf32>
    %9 = tpu.matmul %6, %8, %cst_10 {dimension_numbers = #tpu.dot_dimension_numbers<[1], [0], [0], [1], [0, 0, 1, 1], [], []>} : vector<256x64xbf16>, vector<64x128xbf16>, vector<256x128xf32> -> vector<256x128xf32>
    %10 = arith.addf %5, %9 : vector<256x128xf32>
    %c0_11 = arith.constant 0 : index
    %c0_12 = arith.constant 0 : index
    %11 = vector.load %arg5[%c0_11, %c0_12] : memref<256x128xf32, #tpu.memory_space<vmem>>, vector<256x128xf32>
    tpu.vector_store %arg5[%c0_11, %c0_12], %10 {strides = array<i32>} : memref<256x128xf32, #tpu.memory_space<vmem>>, vector<256x128xf32>,
    %c0_13 = arith.constant 0 : index
    %c0_14 = arith.constant 0 : index
    %c1 = arith.constant 1 : index
    %c0_15 = arith.constant 0 : index
    %12 = vector.load %arg1[%c0_13, %c0_14, %c1, %c0_15] : memref<1x18x18x64xf32, #tpu.memory_space<vmem>>, vector<1x16x16x64xf32>
    %13 = vector.shape_cast %12 : vector<1x16x16x64xf32> to vector<16x16x64xf32>
    %14 = vector.shape_cast %13 : vector<16x16x64xf32> to vector<256x64xf32>
    %c0_16 = arith.constant 0 : index
    %c0_17 = arith.constant 0 : index
    %15 = vector.load %arg5[%c0_16, %c0_17] : memref<256x128xf32, #tpu.memory_space<vmem>>, vector<256x128xf32>
    %16 = arith.truncf %14 : vector<256x64xf32> to vector<256x64xbf16>
    %c1_18 = arith.constant 1 : index
    %c0_19 = arith.constant 0 : index
    %c0_20 = arith.constant 0 : index
    %17 = vector.load %arg2[%c1_18, %c0_19, %c0_20] : memref<9x64x128xbf16, #tpu.memory_space<vmem>>, vector<1x64x128xbf16>
    %18 = vector.shape_cast %17 : vector<1x64x128xbf16> to vector<64x128xbf16>
    %cst_21 = arith.constant dense<0.000000e+00> : vector<256x128xf32>
    %19 = tpu.matmul %16, %18, %cst_21 {dimension_numbers = #tpu.dot_dimension_numbers<[1], [0], [0], [1], [0, 0, 1, 1], [], []>} : vector<256x64xbf16>, vector<64x128xbf16>, vector<256x128xf32> -> vector<256x128xf32>
    %20 = arith.addf %15, %19 : vector<256x128xf32>
    %c0_22 = arith.constant 0 : index
    %c0_23 = arith.constant 0 : index
    %21 = vector.load %arg5[%c0_22, %c0_23] : memref<256x128xf32, #tpu.memory_space<vmem>>, vector<256x128xf32>
    tpu.vector_store %arg5[%c0_22, %c0_23], %20 {strides = array<i32>} : memref<256x128xf32, #tpu.memory_space<vmem>>, vector<256x128xf32>,
    %c0_24 = arith.constant 0 : index
    %c0_25 = arith.constant 0 : index
    %c2 = arith.constant 2 : index
    %c0_26 = arith.constant 0 : index
    %22 = vector.load %arg1[%c0_24, %c0_25, %c2, %c0_26] : memref<1x18x18x64xf32, #tpu.memory_space<vmem>>, vector<1x16x16x64xf32>
    %23 = vector.shape_cast %22 : vector<1x16x16x64xf32> to vector<16x16x64xf32>
    %24 = vector.shape_cast %23 : vector<16x16x64xf32> to vector<256x64xf32>
    %c0_27 = arith.constant 0 : index
    %c0_28 = arith.constant 0 : index
    %25 = vector.load %arg5[%c0_27, %c0_28] : memref<256x128xf32, #tpu.memory_space<vmem>>, vector<256x128xf32>
    %26 = arith.truncf %24 : vector<256x64xf32> to vector<256x64xbf16>
    %c2_29 = arith.constant 2 : index
    %c0_30 = arith.constant 0 : index
    %c0_31 = arith.constant 0 : index
    %27 = vector.load %arg2[%c2_29, %c0_30, %c0_31] : memref<9x64x128xbf16, #tpu.memory_space<vmem>>, vector<1x64x128xbf16>
    %28 = vector.shape_cast %27 : vector<1x64x128xbf16> to vector<64x128xbf16>
    %cst_32 = arith.constant dense<0.000000e+00> : vector<256x128xf32>
    %29 = tpu.matmul %26, %28, %cst_32 {dimension_numbers = #tpu.dot_dimension_numbers<[1], [0], [0], [1], [0, 0, 1, 1], [], []>} : vector<256x64xbf16>, vector<64x128xbf16>, vector<256x128xf32> -> vector<256x128xf32>
    %30 = arith.addf %25, %29 : vector<256x128xf32>
    %c0_33 = arith.constant 0 : index
    %c0_34 = arith.constant 0 : index
    %31 = vector.load %arg5[%c0_33, %c0_34] : memref<256x128xf32, #tpu.memory_space<vmem>>, vector<256x128xf32>
    tpu.vector_store %arg5[%c0_33, %c0_34], %30 {strides = array<i32>} : memref<256x128xf32, #tpu.memory_space<vmem>>, vector<256x128xf32>,
    %c0_35 = arith.constant 0 : index
    %c1_36 = arith.constant 1 : index
    %c0_37 = arith.constant 0 : index
    %c0_38 = arith.constant 0 : index
    %32 = vector.load %arg1[%c0_35, %c1_36, %c0_37, %c0_38] : memref<1x18x18x64xf32, #tpu.memory_space<vmem>>, vector<1x16x16x64xf32>
    %33 = vector.shape_cast %32 : vector<1x16x16x64xf32> to vector<16x16x64xf32>
    %34 = vector.shape_cast %33 : vector<16x16x64xf32> to vector<256x64xf32>
    %c0_39 = arith.constant 0 : index
    %c0_40 = arith.constant 0 : index
    %35 = vector.load %arg5[%c0_39, %c0_40] : memref<256x128xf32, #tpu.memory_space<vmem>>, vector<256x128xf32>
    %36 = arith.truncf %34 : vector<256x64xf32> to vector<256x64xbf16>
    %c3 = arith.constant 3 : index
    %c0_41 = arith.constant 0 : index
    %c0_42 = arith.constant 0 : index
    %37 = vector.load %arg2[%c3, %c0_41, %c0_42] : memref<9x64x128xbf16, #tpu.memory_space<vmem>>, vector<1x64x128xbf16>
    %38 = vector.shape_cast %37 : vector<1x64x128xbf16> to vector<64x128xbf16>
    %cst_43 = arith.constant dense<0.000000e+00> : vector<256x128xf32>
    %39 = tpu.matmul %36, %38, %cst_43 {dimension_numbers = #tpu.dot_dimension_numbers<[1], [0], [0], [1], [0, 0, 1, 1], [], []>} : vector<256x64xbf16>, vector<64x128xbf16>, vector<256x128xf32> -> vector<256x128xf32>
    %40 = arith.addf %35, %39 : vector<256x128xf32>
    %c0_44 = arith.constant 0 : index
    %c0_45 = arith.constant 0 : index
    %41 = vector.load %arg5[%c0_44, %c0_45] : memref<256x128xf32, #tpu.memory_space<vmem>>, vector<256x128xf32>
    tpu.vector_store %arg5[%c0_44, %c0_45], %40 {strides = array<i32>} : memref<256x128xf32, #tpu.memory_space<vmem>>, vector<256x128xf32>,
    %c0_46 = arith.constant 0 : index
    %c1_47 = arith.constant 1 : index
    %c1_48 = arith.constant 1 : index
    %c0_49 = arith.constant 0 : index
    %42 = vector.load %arg1[%c0_46, %c1_47, %c1_48, %c0_49] : memref<1x18x18x64xf32, #tpu.memory_space<vmem>>, vector<1x16x16x64xf32>
    %43 = vector.shape_cast %42 : vector<1x16x16x64xf32> to vector<16x16x64xf32>
    %44 = vector.shape_cast %43 : vector<16x16x64xf32> to vector<256x64xf32>
    %c0_50 = arith.constant 0 : index
    %c0_51 = arith.constant 0 : index
    %45 = vector.load %arg5[%c0_50, %c0_51] : memref<256x128xf32, #tpu.memory_space<vmem>>, vector<256x128xf32>
    %46 = arith.truncf %44 : vector<256x64xf32> to vector<256x64xbf16>
    %c4 = arith.constant 4 : index
    %c0_52 = arith.constant 0 : index
    %c0_53 = arith.constant 0 : index
    %47 = vector.load %arg2[%c4, %c0_52, %c0_53] : memref<9x64x128xbf16, #tpu.memory_space<vmem>>, vector<1x64x128xbf16>
    %48 = vector.shape_cast %47 : vector<1x64x128xbf16> to vector<64x128xbf16>
    %cst_54 = arith.constant dense<0.000000e+00> : vector<256x128xf32>
    %49 = tpu.matmul %46, %48, %cst_54 {dimension_numbers = #tpu.dot_dimension_numbers<[1], [0], [0], [1], [0, 0, 1, 1], [], []>} : vector<256x64xbf16>, vector<64x128xbf16>, vector<256x128xf32> -> vector<256x128xf32>
    %50 = arith.addf %45, %49 : vector<256x128xf32>
    %c0_55 = arith.constant 0 : index
    %c0_56 = arith.constant 0 : index
    %51 = vector.load %arg5[%c0_55, %c0_56] : memref<256x128xf32, #tpu.memory_space<vmem>>, vector<256x128xf32>
    tpu.vector_store %arg5[%c0_55, %c0_56], %50 {strides = array<i32>} : memref<256x128xf32, #tpu.memory_space<vmem>>, vector<256x128xf32>,
    %c0_57 = arith.constant 0 : index
    %c1_58 = arith.constant 1 : index
    %c2_59 = arith.constant 2 : index
    %c0_60 = arith.constant 0 : index
    %52 = vector.load %arg1[%c0_57, %c1_58, %c2_59, %c0_60] : memref<1x18x18x64xf32, #tpu.memory_space<vmem>>, vector<1x16x16x64xf32>
    %53 = vector.shape_cast %52 : vector<1x16x16x64xf32> to vector<16x16x64xf32>
    %54 = vector.shape_cast %53 : vector<16x16x64xf32> to vector<256x64xf32>
    %c0_61 = arith.constant 0 : index
    %c0_62 = arith.constant 0 : index
    %55 = vector.load %arg5[%c0_61, %c0_62] : memref<256x128xf32, #tpu.memory_space<vmem>>, vector<256x128xf32>
    %56 = arith.truncf %54 : vector<256x64xf32> to vector<256x64xbf16>
    %c5 = arith.constant 5 : index
    %c0_63 = arith.constant 0 : index
    %c0_64 = arith.constant 0 : index
    %57 = vector.load %arg2[%c5, %c0_63, %c0_64] : memref<9x64x128xbf16, #tpu.memory_space<vmem>>, vector<1x64x128xbf16>
    %58 = vector.shape_cast %57 : vector<1x64x128xbf16> to vector<64x128xbf16>
    %cst_65 = arith.constant dense<0.000000e+00> : vector<256x128xf32>
    %59 = tpu.matmul %56, %58, %cst_65 {dimension_numbers = #tpu.dot_dimension_numbers<[1], [0], [0], [1], [0, 0, 1, 1], [], []>} : vector<256x64xbf16>, vector<64x128xbf16>, vector<256x128xf32> -> vector<256x128xf32>
    %60 = arith.addf %55, %59 : vector<256x128xf32>
    %c0_66 = arith.constant 0 : index
    %c0_67 = arith.constant 0 : index
    %61 = vector.load %arg5[%c0_66, %c0_67] : memref<256x128xf32, #tpu.memory_space<vmem>>, vector<256x128xf32>
    tpu.vector_store %arg5[%c0_66, %c0_67], %60 {strides = array<i32>} : memref<256x128xf32, #tpu.memory_space<vmem>>, vector<256x128xf32>,
    %c0_68 = arith.constant 0 : index
    %c2_69 = arith.constant 2 : index
    %c0_70 = arith.constant 0 : index
    %c0_71 = arith.constant 0 : index
    %62 = vector.load %arg1[%c0_68, %c2_69, %c0_70, %c0_71] : memref<1x18x18x64xf32, #tpu.memory_space<vmem>>, vector<1x16x16x64xf32>
    %63 = vector.shape_cast %62 : vector<1x16x16x64xf32> to vector<16x16x64xf32>
    %64 = vector.shape_cast %63 : vector<16x16x64xf32> to vector<256x64xf32>
    %c0_72 = arith.constant 0 : index
    %c0_73 = arith.constant 0 : index
    %65 = vector.load %arg5[%c0_72, %c0_73] : memref<256x128xf32, #tpu.memory_space<vmem>>, vector<256x128xf32>
    %66 = arith.truncf %64 : vector<256x64xf32> to vector<256x64xbf16>
    %c6 = arith.constant 6 : index
    %c0_74 = arith.constant 0 : index
    %c0_75 = arith.constant 0 : index
    %67 = vector.load %arg2[%c6, %c0_74, %c0_75] : memref<9x64x128xbf16, #tpu.memory_space<vmem>>, vector<1x64x128xbf16>
    %68 = vector.shape_cast %67 : vector<1x64x128xbf16> to vector<64x128xbf16>
    %cst_76 = arith.constant dense<0.000000e+00> : vector<256x128xf32>
    %69 = tpu.matmul %66, %68, %cst_76 {dimension_numbers = #tpu.dot_dimension_numbers<[1], [0], [0], [1], [0, 0, 1, 1], [], []>} : vector<256x64xbf16>, vector<64x128xbf16>, vector<256x128xf32> -> vector<256x128xf32>
    %70 = arith.addf %65, %69 : vector<256x128xf32>
    %c0_77 = arith.constant 0 : index
    %c0_78 = arith.constant 0 : index
    %71 = vector.load %arg5[%c0_77, %c0_78] : memref<256x128xf32, #tpu.memory_space<vmem>>, vector<256x128xf32>
    tpu.vector_store %arg5[%c0_77, %c0_78], %70 {strides = array<i32>} : memref<256x128xf32, #tpu.memory_space<vmem>>, vector<256x128xf32>,
    %c0_79 = arith.constant 0 : index
    %c2_80 = arith.constant 2 : index
    %c1_81 = arith.constant 1 : index
    %c0_82 = arith.constant 0 : index
    %72 = vector.load %arg1[%c0_79, %c2_80, %c1_81, %c0_82] : memref<1x18x18x64xf32, #tpu.memory_space<vmem>>, vector<1x16x16x64xf32>
    %73 = vector.shape_cast %72 : vector<1x16x16x64xf32> to vector<16x16x64xf32>
    %74 = vector.shape_cast %73 : vector<16x16x64xf32> to vector<256x64xf32>
    %c0_83 = arith.constant 0 : index
    %c0_84 = arith.constant 0 : index
    %75 = vector.load %arg5[%c0_83, %c0_84] : memref<256x128xf32, #tpu.memory_space<vmem>>, vector<256x128xf32>
    %76 = arith.truncf %74 : vector<256x64xf32> to vector<256x64xbf16>
    %c7 = arith.constant 7 : index
    %c0_85 = arith.constant 0 : index
    %c0_86 = arith.constant 0 : index
    %77 = vector.load %arg2[%c7, %c0_85, %c0_86] : memref<9x64x128xbf16, #tpu.memory_space<vmem>>, vector<1x64x128xbf16>
    %78 = vector.shape_cast %77 : vector<1x64x128xbf16> to vector<64x128xbf16>
    %cst_87 = arith.constant dense<0.000000e+00> : vector<256x128xf32>
    %79 = tpu.matmul %76, %78, %cst_87 {dimension_numbers = #tpu.dot_dimension_numbers<[1], [0], [0], [1], [0, 0, 1, 1], [], []>} : vector<256x64xbf16>, vector<64x128xbf16>, vector<256x128xf32> -> vector<256x128xf32>
    %80 = arith.addf %75, %79 : vector<256x128xf32>
    %c0_88 = arith.constant 0 : index
    %c0_89 = arith.constant 0 : index
    %81 = vector.load %arg5[%c0_88, %c0_89] : memref<256x128xf32, #tpu.memory_space<vmem>>, vector<256x128xf32>
    tpu.vector_store %arg5[%c0_88, %c0_89], %80 {strides = array<i32>} : memref<256x128xf32, #tpu.memory_space<vmem>>, vector<256x128xf32>,
    %c0_90 = arith.constant 0 : index
    %c2_91 = arith.constant 2 : index
    %c2_92 = arith.constant 2 : index
    %c0_93 = arith.constant 0 : index
    %82 = vector.load %arg1[%c0_90, %c2_91, %c2_92, %c0_93] : memref<1x18x18x64xf32, #tpu.memory_space<vmem>>, vector<1x16x16x64xf32>
    %83 = vector.shape_cast %82 : vector<1x16x16x64xf32> to vector<16x16x64xf32>
    %84 = vector.shape_cast %83 : vector<16x16x64xf32> to vector<256x64xf32>
    %c0_94 = arith.constant 0 : index
    %c0_95 = arith.constant 0 : index
    %85 = vector.load %arg5[%c0_94, %c0_95] : memref<256x128xf32, #tpu.memory_space<vmem>>, vector<256x128xf32>
    %86 = arith.truncf %84 : vector<256x64xf32> to vector<256x64xbf16>
    %c8 = arith.constant 8 : index
    %c0_96 = arith.constant 0 : index
    %c0_97 = arith.constant 0 : index
    %87 = vector.load %arg2[%c8, %c0_96, %c0_97] : memref<9x64x128xbf16, #tpu.memory_space<vmem>>, vector<1x64x128xbf16>
    %88 = vector.shape_cast %87 : vector<1x64x128xbf16> to vector<64x128xbf16>
    %cst_98 = arith.constant dense<0.000000e+00> : vector<256x128xf32>
    %89 = tpu.matmul %86, %88, %cst_98 {dimension_numbers = #tpu.dot_dimension_numbers<[1], [0], [0], [1], [0, 0, 1, 1], [], []>} : vector<256x64xbf16>, vector<64x128xbf16>, vector<256x128xf32> -> vector<256x128xf32>
    %90 = arith.addf %85, %89 : vector<256x128xf32>
    %c0_99 = arith.constant 0 : index
    %c0_100 = arith.constant 0 : index
    %91 = vector.load %arg5[%c0_99, %c0_100] : memref<256x128xf32, #tpu.memory_space<vmem>>, vector<256x128xf32>
    tpu.vector_store %arg5[%c0_99, %c0_100], %90 {strides = array<i32>} : memref<256x128xf32, #tpu.memory_space<vmem>>, vector<256x128xf32>,
    %c0_101 = arith.constant 0 : index
    %c0_102 = arith.constant 0 : index
    %92 = vector.load %arg5[%c0_101, %c0_102] : memref<256x128xf32, #tpu.memory_space<vmem>>, vector<256x128xf32>
    %c0_103 = arith.constant 0 : index
    %c0_104 = arith.constant 0 : index
    %93 = vector.load %arg3[%c0_103, %c0_104] : memref<1x128xf32, #tpu.memory_space<vmem>>, vector<1x128xf32>
    %94 = vector.broadcast %93 : vector<1x128xf32> to vector<256x128xf32>
    %95 = arith.addf %92, %94 : vector<256x128xf32>
    %cst_105 = arith.constant 0.000000e+00 : f32
    %96 = vector.broadcast %cst_105 : f32 to vector<256x128xf32>
    %97 = arith.maximumf %95, %96 : vector<256x128xf32>
    %98 = vector.shape_cast %97 : vector<256x128xf32> to vector<1x256x128xf32>
    %c0_106 = arith.constant 0 : index
    %c0_107 = arith.constant 0 : index
    %c0_108 = arith.constant 0 : index
    %99 = vector.load %arg4[%c0_106, %c0_107, %c0_108] : memref<1x256x128xf32, #tpu.memory_space<vmem>>, vector<1x256x128xf32>
    tpu.vector_store %arg4[%c0_106, %c0_107, %c0_108], %98 {strides = array<i32>} : memref<1x256x128xf32, #tpu.memory_space<vmem>>, vector<1x256x128xf32>,
    return
  }
  func.func @transform_0(%arg0: i32) -> (i32, i32, i32, i32) {
    %c0_i32 = arith.constant 0 : i32
    %c0_i32_0 = arith.constant 0 : i32
    %c0_i32_1 = arith.constant 0 : i32
    %c0_i32_2 = arith.constant 0 : i32
    return %arg0, %c0_i32, %c0_i32_0, %c0_i32_1 : i32, i32, i32, i32
  }
  func.func @transform_1(%arg0: i32) -> (i32, i32, i32) {
    %c0_i32 = arith.constant 0 : i32
    %c0_i32_0 = arith.constant 0 : i32
    %c0_i32_1 = arith.constant 0 : i32
    %c0_i32_2 = arith.constant 0 : i32
    return %c0_i32, %c0_i32_0, %c0_i32_1 : i32, i32, i32
  }
  func.func @transform_2(%arg0: i32) -> (i32, i32) {
    %c0_i32 = arith.constant 0 : i32
    %c0_i32_0 = arith.constant 0 : i32
    %c0_i32_1 = arith.constant 0 : i32
    return %c0_i32, %c0_i32_0 : i32, i32
  }
  func.func @transform_3(%arg0: i32) -> (i32, i32, i32) {
    %c0_i32 = arith.constant 0 : i32
    %c0_i32_0 = arith.constant 0 : i32
    %c0_i32_1 = arith.constant 0 : i32
    return %arg0, %c0_i32, %c0_i32_0 : i32, i32, i32
  }
}

module attributes {stable_mosaic.version = 11 : i64} {
  func.func @_matmul_affine_kernel(%arg0: i32, %arg1: i32, %arg2: memref<8x512xbf16, #tpu.memory_space<vmem>>, %arg3: memref<512x128xbf16, #tpu.memory_space<vmem>>, %arg4: memref<1x128xf32, #tpu.memory_space<vmem>>, %arg5: memref<8x128xf32, #tpu.memory_space<vmem>>, %arg6: memref<8x128xf32, #tpu.memory_space<vmem>>) attributes {dimension_semantics = [#tpu.dimension_semantics<parallel>, #tpu.dimension_semantics<arbitrary>], iteration_bounds = array<i64: 1, 8>, scalar_prefetch = 0 : i64, scratch_operands = 1 : i64, tpu.core_type = #tpu.core_type<tc>, window_params = [{transform_indices = @transform_0, window_bounds = array<i64: 8, 512>}, {transform_indices = @transform_1, window_bounds = array<i64: 512, 128>}, {pipeline_mode = #tpu.pipeline_mode<synchronous>, transform_indices = @transform_2, window_bounds = array<i64: 1, 128>}, {transform_indices = @transform_3, window_bounds = array<i64: 8, 128>}]} {
    %c0_i32 = arith.constant 0 : i32
    %0 = arith.cmpi eq, %arg1, %c0_i32 : i32
    %1 = arith.extui %0 : i1 to i32
    %c0_i32_0 = arith.constant 0 : i32
    %2 = arith.cmpi ne, %1, %c0_i32_0 : i32
    scf.if %2 {
      %cst_9 = arith.constant 0.000000e+00 : f32
      %12 = vector.broadcast %cst_9 : f32 to vector<8x128xf32>
      %c0_10 = arith.constant 0 : index
      %c0_11 = arith.constant 0 : index
      %13 = vector.load %arg6[%c0_10, %c0_11] : memref<8x128xf32, #tpu.memory_space<vmem>>, vector<8x128xf32>
      tpu.vector_store %arg6[%c0_10, %c0_11], %12 {strides = array<i32>} : memref<8x128xf32, #tpu.memory_space<vmem>>, vector<8x128xf32>,
    } else {
    }
    %c0 = arith.constant 0 : index
    %c0_1 = arith.constant 0 : index
    %3 = vector.load %arg6[%c0, %c0_1] : memref<8x128xf32, #tpu.memory_space<vmem>>, vector<8x128xf32>
    %c0_2 = arith.constant 0 : index
    %c0_3 = arith.constant 0 : index
    %4 = vector.load %arg2[%c0_2, %c0_3] : memref<8x512xbf16, #tpu.memory_space<vmem>>, vector<8x512xbf16>
    %c0_4 = arith.constant 0 : index
    %c0_5 = arith.constant 0 : index
    %5 = vector.load %arg3[%c0_4, %c0_5] : memref<512x128xbf16, #tpu.memory_space<vmem>>, vector<512x128xbf16>
    %cst = arith.constant dense<0.000000e+00> : vector<8x128xf32>
    %6 = tpu.matmul %4, %5, %cst {dimension_numbers = #tpu.dot_dimension_numbers<[1], [0], [0], [1], [0, 0, 1, 1], [], []>} : vector<8x512xbf16>, vector<512x128xbf16>, vector<8x128xf32> -> vector<8x128xf32>
    %7 = arith.addf %3, %6 : vector<8x128xf32>
    %c0_6 = arith.constant 0 : index
    %c0_7 = arith.constant 0 : index
    %8 = vector.load %arg6[%c0_6, %c0_7] : memref<8x128xf32, #tpu.memory_space<vmem>>, vector<8x128xf32>
    tpu.vector_store %arg6[%c0_6, %c0_7], %7 {strides = array<i32>} : memref<8x128xf32, #tpu.memory_space<vmem>>, vector<8x128xf32>,
    %c7_i32 = arith.constant 7 : i32
    %9 = arith.cmpi eq, %arg1, %c7_i32 : i32
    %10 = arith.extui %9 : i1 to i32
    %c0_i32_8 = arith.constant 0 : i32
    %11 = arith.cmpi ne, %10, %c0_i32_8 : i32
    scf.if %11 {
      %c0_9 = arith.constant 0 : index
      %c0_10 = arith.constant 0 : index
      %12 = vector.load %arg6[%c0_9, %c0_10] : memref<8x128xf32, #tpu.memory_space<vmem>>, vector<8x128xf32>
      %c0_11 = arith.constant 0 : index
      %c0_12 = arith.constant 0 : index
      %13 = vector.load %arg4[%c0_11, %c0_12] : memref<1x128xf32, #tpu.memory_space<vmem>>, vector<1x128xf32>
      %14 = vector.broadcast %13 : vector<1x128xf32> to vector<8x128xf32>
      %15 = arith.addf %12, %14 : vector<8x128xf32>
      %c0_13 = arith.constant 0 : index
      %c0_14 = arith.constant 0 : index
      %16 = vector.load %arg5[%c0_13, %c0_14] : memref<8x128xf32, #tpu.memory_space<vmem>>, vector<8x128xf32>
      tpu.vector_store %arg5[%c0_13, %c0_14], %15 {strides = array<i32>} : memref<8x128xf32, #tpu.memory_space<vmem>>, vector<8x128xf32>,
    } else {
    }
    return
  }
  func.func @transform_0(%arg0: i32, %arg1: i32) -> (i32, i32) {
    %c0_i32 = arith.constant 0 : i32
    return %arg0, %arg1 : i32, i32
  }
  func.func @transform_1(%arg0: i32, %arg1: i32) -> (i32, i32) {
    %c0_i32 = arith.constant 0 : i32
    %c0_i32_0 = arith.constant 0 : i32
    return %arg1, %c0_i32 : i32, i32
  }
  func.func @transform_2(%arg0: i32, %arg1: i32) -> (i32, i32) {
    %c0_i32 = arith.constant 0 : i32
    %c0_i32_0 = arith.constant 0 : i32
    %c0_i32_1 = arith.constant 0 : i32
    return %c0_i32, %c0_i32_0 : i32, i32
  }
  func.func @transform_3(%arg0: i32, %arg1: i32) -> (i32, i32) {
    %c0_i32 = arith.constant 0 : i32
    %c0_i32_0 = arith.constant 0 : i32
    return %arg0, %c0_i32 : i32, i32
  }
}

</mosaic_0001>

<llo_original>
// kernel: forward.4
$region0: #{forward.4}
  #allocation0 [shape = 'u32[]', space=smem, size = 0x4, offset = 0x4, fixed_abs, tag = 'smem constant byte address 0x4 - core index']
  #allocation1 [shape = 'u32[144,128]{1,0:T(1,128)}', space=vmem, size = 0x12000, scoped, tag = 'internal scratch']
  #allocation2 [shape = 'f32[512,128]{1,0:T(8,128)}', space=vmem, size = 0x40000, scoped, tag = 'scratch operand']
  %s0 = inlined_call_operand.vmem [shape: bf16[512,256], index: 0, kind: input, shape index: {}]
  %s1 = inlined_call_operand.vmem [shape: bf16[256,128], index: 1, kind: input, shape index: {}]
  %s2 = inlined_call_operand.vmem [shape: f32[1,128], index: 2, kind: input, shape index: {}]
  %s3 = inlined_call_operand.vmem [shape: f32[512,128], index: 3, kind: output, shape index: {}]
  %s4 = sld [smem:[#allocation0]]
  $region30: #{forward.4} parent=0
    _
  %s6 = ssub.s32 1, %s4
  %s7 = scalar_select 0, %s6, %s4
  // Predicated region
  $region2: #{forward.4} parent=0 // pred_check
    _
  $region3: #{forward.4} parent=0 // pred_check_branch
    %9 = sbr.rel (0) target = $region5
  $region4: #{forward.4} parent=0 // pred_region
    _
  $region5: #{forward.4} parent=0 // pred_fallthru
    _
  // Predicated region
  $region6: #{forward.4} parent=0 // pred_check
    _
  $region7: #{forward.4} parent=0 // pred_check_branch
    %11 = sbr.rel (0) target = $region9
  $region8: #{forward.4} parent=0 // pred_region
    _
  $region9: #{forward.4} parent=0 // pred_fallthru
    _
  // Predicated region
  $region10: #{forward.4} parent=0 // pred_check
    _
  $region11: #{forward.4} parent=0 // pred_check_branch
    %13 = sbr.rel (0) target = $region13
  $region12: #{forward.4} parent=0 // pred_region
    _
  $region13: #{forward.4} parent=0 // pred_fallthru
    _
  %p15 = scmp.eq.s32.totalorder 0, 0
  // Predicated region
  $region14: #{forward.4} parent=0 // pred_check
    %p16 = pneg %p15
  $region15: #{forward.4} parent=0 // pred_check_branch
    %18 = sbr.rel (%p16) target = $region17
  $region16: #{forward.4} parent=0 // pred_region
    %19 = vst [vmem:[#allocation2] sm:$0xff] 0.0
    %20 = vst [vmem:[#allocation2 + $0x8] sm:$0xff] 0.0
    %21 = vst [vmem:[#allocation2 + $0x10] sm:$0xff] 0.0
    %22 = vst [vmem:[#allocation2 + $0x18] sm:$0xff] 0.0
    %23 = vst [vmem:[#allocation2 + $0x20] sm:$0xff] 0.0
    %24 = vst [vmem:[#allocation2 + $0x28] sm:$0xff] 0.0
    %25 = vst [vmem:[#allocation2 + $0x30] sm:$0xff] 0.0
    %26 = vst [vmem:[#allocation2 + $0x38] sm:$0xff] 0.0
    %27 = vst [vmem:[#allocation2 + $0x40] sm:$0xff] 0.0
    %28 = vst [vmem:[#allocation2 + $0x48] sm:$0xff] 0.0
    %29 = vst [vmem:[#allocation2 + $0x50] sm:$0xff] 0.0
    %30 = vst [vmem:[#allocation2 + $0x58] sm:$0xff] 0.0
    %31 = vst [vmem:[#allocation2 + $0x60] sm:$0xff] 0.0
    %32 = vst [vmem:[#allocation2 + $0x68] sm:$0xff] 0.0
    %33 = vst [vmem:[#allocation2 + $0x70] sm:$0xff] 0.0
    %34 = vst [vmem:[#allocation2 + $0x78] sm:$0xff] 0.0
    %35 = vst [vmem:[#allocation2 + $0x80] sm:$0xff] 0.0
    %36 = vst [vmem:[#allocation2 + $0x88] sm:$0xff] 0.0
    %37 = vst [vmem:[#allocation2 + $0x90] sm:$0xff] 0.0
    %38 = vst [vmem:[#allocation2 + $0x98] sm:$0xff] 0.0
    %39 = vst [vmem:[#allocation2 + $0xa0] sm:$0xff] 0.0
    %40 = vst [vmem:[#allocation2 + $0xa8] sm:$0xff] 0.0
    %41 = vst [vmem:[#allocation2 + $0xb0] sm:$0xff] 0.0
    %42 = vst [vmem:[#allocation2 + $0xb8] sm:$0xff] 0.0
    %43 = vst [vmem:[#allocation2 + $0xc0] sm:$0xff] 0.0
    %44 = vst [vmem:[#allocation2 + $0xc8] sm:$0xff] 0.0
    %45 = vst [vmem:[#allocation2 + $0xd0] sm:$0xff] 0.0
    %46 = vst [vmem:[#allocation2 + $0xd8] sm:$0xff] 0.0
    %47 = vst [vmem:[#allocation2 + $0xe0] sm:$0xff] 0.0
    %48 = vst [vmem:[#allocation2 + $0xe8] sm:$0xff] 0.0
    %49 = vst [vmem:[#allocation2 + $0xf0] sm:$0xff] 0.0
    %50 = vst [vmem:[#allocation2 + $0xf8] sm:$0xff] 0.0
    %51 = vst [vmem:[#allocation2 + $0x100] sm:$0xff] 0.0
    %52 = vst [vmem:[#allocation2 + $0x108] sm:$0xff] 0.0
    %53 = vst [vmem:[#allocation2 + $0x110] sm:$0xff] 0.0
    %54 = vst [vmem:[#allocation2 + $0x118] sm:$0xff] 0.0
    %55 = vst [vmem:[#allocation2 + $0x120] sm:$0xff] 0.0
    %56 = vst [vmem:[#allocation2 + $0x128] sm:$0xff] 0.0
    %57 = vst [vmem:[#allocation2 + $0x130] sm:$0xff] 0.0
    %58 = vst [vmem:[#allocation2 + $0x138] sm:$0xff] 0.0
    %59 = vst [vmem:[#allocation2 + $0x140] sm:$0xff] 0.0
    %60 = vst [vmem:[#allocation2 + $0x148] sm:$0xff] 0.0
    %61 = vst [vmem:[#allocation2 + $0x150] sm:$0xff] 0.0
    %62 = vst [vmem:[#allocation2 + $0x158] sm:$0xff] 0.0
    %63 = vst [vmem:[#allocation2 + $0x160] sm:$0xff] 0.0
    %64 = vst [vmem:[#allocation2 + $0x168] sm:$0xff] 0.0
    %65 = vst [vmem:[#allocation2 + $0x170] sm:$0xff] 0.0
    %66 = vst [vmem:[#allocation2 + $0x178] sm:$0xff] 0.0
    %67 = vst [vmem:[#allocation2 + $0x180] sm:$0xff] 0.0
    %68 = vst [vmem:[#allocation2 + $0x188] sm:$0xff] 0.0
    %69 = vst [vmem:[#allocation2 + $0x190] sm:$0xff] 0.0
    %70 = vst [vmem:[#allocation2 + $0x198] sm:$0xff] 0.0
    %71 = vst [vmem:[#allocation2 + $0x1a0] sm:$0xff] 0.0
    %72 = vst [vmem:[#allocation2 + $0x1a8] sm:$0xff] 0.0
    %73 = vst [vmem:[#allocation2 + $0x1b0] sm:$0xff] 0.0
    %74 = vst [vmem:[#allocation2 + $0x1b8] sm:$0xff] 0.0
    %75 = vst [vmem:[#allocation2 + $0x1c0] sm:$0xff] 0.0
    %76 = vst [vmem:[#allocation2 + $0x1c8] sm:$0xff] 0.0
    %77 = vst [vmem:[#allocation2 + $0x1d0] sm:$0xff] 0.0
    %78 = vst [vmem:[#allocation2 + $0x1d8] sm:$0xff] 0.0
    %79 = vst [vmem:[#allocation2 + $0x1e0] sm:$0xff] 0.0
    %80 = vst [vmem:[#allocation2 + $0x1e8] sm:$0xff] 0.0
    %81 = vst [vmem:[#allocation2 + $0x1f0] sm:$0xff] 0.0
    %82 = vst [vmem:[#allocation2 + $0x1f8] sm:$0xff] 0.0
  $region17: #{forward.4} parent=0 // pred_fallthru
    _
  %v83 = vld [vmem:[#allocation2] sm:$0xff]
  %v84 = vld [vmem:[#allocation2 + $0x8] sm:$0xff]
  %v85 = vld [vmem:[#allocation2 + $0x10] sm:$0xff]
  %v86 = vld [vmem:[#allocation2 + $0x18] sm:$0xff]
  %v87 = vld [vmem:[#allocation2 + $0x20] sm:$0xff]
  %v88 = vld [vmem:[#allocation2 + $0x28] sm:$0xff]
  %v89 = vld [vmem:[#allocation2 + $0x30] sm:$0xff]
  %v90 = vld [vmem:[#allocation2 + $0x38] sm:$0xff]
  %v91 = vld [vmem:[#allocation2 + $0x40] sm:$0xff]
  %v92 = vld [vmem:[#allocation2 + $0x48] sm:$0xff]
  %v93 = vld [vmem:[#allocation2 + $0x50] sm:$0xff]
  %v94 = vld [vmem:[#allocation2 + $0x58] sm:$0xff]
  %v95 = vld [vmem:[#allocation2 + $0x60] sm:$0xff]
  %v96 = vld [vmem:[#allocation2 + $0x68] sm:$0xff]
  %v97 = vld [vmem:[#allocation2 + $0x70] sm:$0xff]
  %v98 = vld [vmem:[#allocation2 + $0x78] sm:$0xff]
  %v99 = vld [vmem:[#allocation2 + $0x80] sm:$0xff]
  %v100 = vld [vmem:[#allocation2 + $0x88] sm:$0xff]
  %v101 = vld [vmem:[#allocation2 + $0x90] sm:$0xff]
  %v102 = vld [vmem:[#allocation2 + $0x98] sm:$0xff]
  %v103 = vld [vmem:[#allocation2 + $0xa0] sm:$0xff]
  %v104 = vld [vmem:[#allocation2 + $0xa8] sm:$0xff]
  %v105 = vld [vmem:[#allocation2 + $0xb0] sm:$0xff]
  %v106 = vld [vmem:[#allocation2 + $0xb8] sm:$0xff]
  %v107 = vld [vmem:[#allocation2 + $0xc0] sm:$0xff]
  %v108 = vld [vmem:[#allocation2 + $0xc8] sm:$0xff]
  %v109 = vld [vmem:[#allocation2 + $0xd0] sm:$0xff]
  %v110 = vld [vmem:[#allocation2 + $0xd8] sm:$0xff]
  %v111 = vld [vmem:[#allocation2 + $0xe0] sm:$0xff]
  %v112 = vld [vmem:[#allocation2 + $0xe8] sm:$0xff]
  %v113 = vld [vmem:[#allocation2 + $0xf0] sm:$0xff]
  %v114 = vld [vmem:[#allocation2 + $0xf8] sm:$0xff]
  %v115 = vld [vmem:[#allocation2 + $0x100] sm:$0xff]
  %v116 = vld [vmem:[#allocation2 + $0x108] sm:$0xff]
  %v117 = vld [vmem:[#allocation2 + $0x110] sm:$0xff]
  %v118 = vld [vmem:[#allocation2 + $0x118] sm:$0xff]
  %v119 = vld [vmem:[#allocation2 + $0x120] sm:$0xff]
  %v120 = vld [vmem:[#allocation2 + $0x128] sm:$0xff]
  %v121 = vld [vmem:[#allocation2 + $0x130] sm:$0xff]
  %v122 = vld [vmem:[#allocation2 + $0x138] sm:$0xff]
  %v123 = vld [vmem:[#allocation2 + $0x140] sm:$0xff]
  %v124 = vld [vmem:[#allocation2 + $0x148] sm:$0xff]
  %v125 = vld [vmem:[#allocation2 + $0x150] sm:$0xff]
  %v126 = vld [vmem:[#allocation2 + $0x158] sm:$0xff]
  %v127 = vld [vmem:[#allocation2 + $0x160] sm:$0xff]
  %v128 = vld [vmem:[#allocation2 + $0x168] sm:$0xff]
  %v129 = vld [vmem:[#allocation2 + $0x170] sm:$0xff]
  %v130 = vld [vmem:[#allocation2 + $0x178] sm:$0xff]
  %v131 = vld [vmem:[#allocation2 + $0x180] sm:$0xff]
  %v132 = vld [vmem:[#allocation2 + $0x188] sm:$0xff]
  %v133 = vld [vmem:[#allocation2 + $0x190] sm:$0xff]
  %v134 = vld [vmem:[#allocation2 + $0x198] sm:$0xff]
  %v135 = vld [vmem:[#allocation2 + $0x1a0] sm:$0xff]
  %v136 = vld [vmem:[#allocation2 + $0x1a8] sm:$0xff]
  %v137 = vld [vmem:[#allocation2 + $0x1b0] sm:$0xff]
  %v138 = vld [vmem:[#allocation2 + $0x1b8] sm:$0xff]
  %v139 = vld [vmem:[#allocation2 + $0x1c0] sm:$0xff]
  %v140 = vld [vmem:[#allocation2 + $0x1c8] sm:$0xff]
  %v141 = vld [vmem:[#allocation2 + $0x1d0] sm:$0xff]
  %v142 = vld [vmem:[#allocation2 + $0x1d8] sm:$0xff]
  %v143 = vld [vmem:[#allocation2 + $0x1e0] sm:$0xff]
  %v144 = vld [vmem:[#allocation2 + $0x1e8] sm:$0xff]
  %v145 = vld [vmem:[#allocation2 + $0x1f0] sm:$0xff]
  %v146 = vld [vmem:[#allocation2 + $0x1f8] sm:$0xff]
  %v147 = vld [vmem:[%s0] sm:$0xff]
  %v148 = vld [vmem:[%s0 + $0x8] sm:$0xff]
  %v149 = vld [vmem:[%s0 + $0x10] sm:$0xff]
  %v150 = vld [vmem:[%s0 + $0x18] sm:$0xff]
  %v151 = vld [vmem:[%s0 + $0x20] sm:$0xff]
  %v152 = vld [vmem:[%s0 + $0x28] sm:$0xff]
  %v153 = vld [vmem:[%s0 + $0x30] sm:$0xff]
  %v154 = vld [vmem:[%s0 + $0x38] sm:$0xff]
  %v155 = vld [vmem:[%s0 + $0x40] sm:$0xff]
  %v156 = vld [vmem:[%s0 + $0x48] sm:$0xff]
  %v157 = vld [vmem:[%s0 + $0x50] sm:$0xff]
  %v158 = vld [vmem:[%s0 + $0x58] sm:$0xff]
  %v159 = vld [vmem:[%s0 + $0x60] sm:$0xff]
  %v160 = vld [vmem:[%s0 + $0x68] sm:$0xff]
  %v161 = vld [vmem:[%s0 + $0x70] sm:$0xff]
  %v162 = vld [vmem:[%s0 + $0x78] sm:$0xff]
  %v163 = vld [vmem:[%s0 + $0x80] sm:$0xff]
  %v164 = vld [vmem:[%s0 + $0x88] sm:$0xff]
  %v165 = vld [vmem:[%s0 + $0x90] sm:$0xff]
  %v166 = vld [vmem:[%s0 + $0x98] sm:$0xff]
  %v167 = vld [vmem:[%s0 + $0xa0] sm:$0xff]
  %v168 = vld [vmem:[%s0 + $0xa8] sm:$0xff]
  %v169 = vld [vmem:[%s0 + $0xb0] sm:$0xff]
  %v170 = vld [vmem:[%s0 + $0xb8] sm:$0xff]
  %v171 = vld [vmem:[%s0 + $0xc0] sm:$0xff]
  %v172 = vld [vmem:[%s0 + $0xc8] sm:$0xff]
  %v173 = vld [vmem:[%s0 + $0xd0] sm:$0xff]
  %v174 = vld [vmem:[%s0 + $0xd8] sm:$0xff]
  %v175 = vld [vmem:[%s0 + $0xe0] sm:$0xff]
  %v176 = vld [vmem:[%s0 + $0xe8] sm:$0xff]
  %v177 = vld [vmem:[%s0 + $0xf0] sm:$0xff]
  %v178 = vld [vmem:[%s0 + $0xf8] sm:$0xff]
  %v179 = vld [vmem:[%s0 + $0x100] sm:$0xff]
  %v180 = vld [vmem:[%s0 + $0x108] sm:$0xff]
  %v181 = vld [vmem:[%s0 + $0x110] sm:$0xff]
  %v182 = vld [vmem:[%s0 + $0x118] sm:$0xff]
  %v183 = vld [vmem:[%s0 + $0x120] sm:$0xff]
  %v184 = vld [vmem:[%s0 + $0x128] sm:$0xff]
  %v185 = vld [vmem:[%s0 + $0x130] sm:$0xff]
  %v186 = vld [vmem:[%s0 + $0x138] sm:$0xff]
  %v187 = vld [vmem:[%s0 + $0x140] sm:$0xff]
  %v188 = vld [vmem:[%s0 + $0x148] sm:$0xff]
  %v189 = vld [vmem:[%s0 + $0x150] sm:$0xff]
  %v190 = vld [vmem:[%s0 + $0x158] sm:$0xff]
  %v191 = vld [vmem:[%s0 + $0x160] sm:$0xff]
  %v192 = vld [vmem:[%s0 + $0x168] sm:$0xff]
  %v193 = vld [vmem:[%s0 + $0x170] sm:$0xff]
  %v194 = vld [vmem:[%s0 + $0x178] sm:$0xff]
  %v195 = vld [vmem:[%s0 + $0x180] sm:$0xff]
  %v196 = vld [vmem:[%s0 + $0x188] sm:$0xff]
  %v197 = vld [vmem:[%s0 + $0x190] sm:$0xff]
  %v198 = vld [vmem:[%s0 + $0x198] sm:$0xff]
  %v199 = vld [vmem:[%s0 + $0x1a0] sm:$0xff]
  %v200 = vld [vmem:[%s0 + $0x1a8] sm:$0xff]
  %v201 = vld [vmem:[%s0 + $0x1b0] sm:$0xff]
  %v202 = vld [vmem:[%s0 + $0x1b8] sm:$0xff]
  %v203 = vld [vmem:[%s0 + $0x1c0] sm:$0xff]
  %v204 = vld [vmem:[%s0 + $0x1c8] sm:$0xff]
  %v205 = vld [vmem:[%s0 + $0x1d0] sm:$0xff]
  %v206 = vld [vmem:[%s0 + $0x1d8] sm:$0xff]
  %v207 = vld [vmem:[%s0 + $0x1e0] sm:$0xff]
  %v208 = vld [vmem:[%s0 + $0x1e8] sm:$0xff]
  %v209 = vld [vmem:[%s0 + $0x1f0] sm:$0xff]
  %v210 = vld [vmem:[%s0 + $0x1f8] sm:$0xff]
  %v211 = vld [vmem:[%s1] sm:$0xf]
  %v212 = vld [vmem:[%s1 + $0x4] sm:$0xf]
  %v213 = vld [vmem:[%s1 + $0x8] sm:$0xf]
  %v214 = vld [vmem:[%s1 + $0xc] sm:$0xf]
  %v215 = vld [vmem:[%s1 + $0x10] sm:$0xf]
  %v216 = vld [vmem:[%s1 + $0x14] sm:$0xf]
  %v217 = vld [vmem:[%s1 + $0x18] sm:$0xf]
  %v218 = vld [vmem:[%s1 + $0x1c] sm:$0xf]
  %v219 = vld [vmem:[%s1 + $0x20] sm:$0xf]
  %v220 = vld [vmem:[%s1 + $0x24] sm:$0xf]
  %v221 = vld [vmem:[%s1 + $0x28] sm:$0xf]
  %v222 = vld [vmem:[%s1 + $0x2c] sm:$0xf]
  %v223 = vld [vmem:[%s1 + $0x30] sm:$0xf]
  %v224 = vld [vmem:[%s1 + $0x34] sm:$0xf]
  %v225 = vld [vmem:[%s1 + $0x38] sm:$0xf]
  %v226 = vld [vmem:[%s1 + $0x3c] sm:$0xf]
  %v227 = vld [vmem:[%s1 + $0x40] sm:$0xf]
  %v228 = vld [vmem:[%s1 + $0x44] sm:$0xf]
  %v229 = vld [vmem:[%s1 + $0x48] sm:$0xf]
  %v230 = vld [vmem:[%s1 + $0x4c] sm:$0xf]
  %v231 = vld [vmem:[%s1 + $0x50] sm:$0xf]
  %v232 = vld [vmem:[%s1 + $0x54] sm:$0xf]
  %v233 = vld [vmem:[%s1 + $0x58] sm:$0xf]
  %v234 = vld [vmem:[%s1 + $0x5c] sm:$0xf]
  %v235 = vld [vmem:[%s1 + $0x60] sm:$0xf]
  %v236 = vld [vmem:[%s1 + $0x64] sm:$0xf]
  %v237 = vld [vmem:[%s1 + $0x68] sm:$0xf]
  %v238 = vld [vmem:[%s1 + $0x6c] sm:$0xf]
  %v239 = vld [vmem:[%s1 + $0x70] sm:$0xf]
  %v240 = vld [vmem:[%s1 + $0x74] sm:$0xf]
  %v241 = vld [vmem:[%s1 + $0x78] sm:$0xf]
  %v242 = vld [vmem:[%s1 + $0x7c] sm:$0xf]
  %v307 = vunpack.c.l.b16 %v147
  %v308 = vunpack.c.h.b16 %v147
  %v309 = vunpack.c.l.b16 %v148
  %v310 = vunpack.c.h.b16 %v148
  %v311 = vunpack.c.l.b16 %v149
  %v312 = vunpack.c.h.b16 %v149
  %v313 = vunpack.c.l.b16 %v150
  %v314 = vunpack.c.h.b16 %v150
  %v315 = vunpack.c.l.b16 %v151
  %v316 = vunpack.c.h.b16 %v151
  %v317 = vunpack.c.l.b16 %v152
  %v318 = vunpack.c.h.b16 %v152
  %v319 = vunpack.c.l.b16 %v153
  %v320 = vunpack.c.h.b16 %v153
  %v321 = vunpack.c.l.b16 %v154
  %v322 = vunpack.c.h.b16 %v154
  %v323 = vunpack.c.l.b16 %v155
  %v324 = vunpack.c.h.b16 %v155
  %v325 = vunpack.c.l.b16 %v156
  %v326 = vunpack.c.h.b16 %v156
  %v327 = vunpack.c.l.b16 %v157
  %v328 = vunpack.c.h.b16 %v157
  %v329 = vunpack.c.l.b16 %v158
  %v330 = vunpack.c.h.b16 %v158
  %v331 = vunpack.c.l.b16 %v159
  %v332 = vunpack.c.h.b16 %v159
  %v333 = vunpack.c.l.b16 %v160
  %v334 = vunpack.c.h.b16 %v160
  %v335 = vunpack.c.l.b16 %v161
  %v336 = vunpack.c.h.b16 %v161
  %v337 = vunpack.c.l.b16 %v162
  %v338 = vunpack.c.h.b16 %v162
  %v339 = vunpack.c.l.b16 %v163
  %v340 = vunpack.c.h.b16 %v163
  %v341 = vunpack.c.l.b16 %v164
  %v342 = vunpack.c.h.b16 %v164
  %v343 = vunpack.c.l.b16 %v165
  %v344 = vunpack.c.h.b16 %v165
  %v345 = vunpack.c.l.b16 %v166
  %v346 = vunpack.c.h.b16 %v166
  %v347 = vunpack.c.l.b16 %v167
  %v348 = vunpack.c.h.b16 %v167
  %v349 = vunpack.c.l.b16 %v168
  %v350 = vunpack.c.h.b16 %v168
  %v351 = vunpack.c.l.b16 %v169
  %v352 = vunpack.c.h.b16 %v169
  %v353 = vunpack.c.l.b16 %v170
  %v354 = vunpack.c.h.b16 %v170
  %v355 = vunpack.c.l.b16 %v171
  %v356 = vunpack.c.h.b16 %v171
  %v357 = vunpack.c.l.b16 %v172
  %v358 = vunpack.c.h.b16 %v172
  %v359 = vunpack.c.l.b16 %v173
  %v360 = vunpack.c.h.b16 %v173
  %v361 = vunpack.c.l.b16 %v174
  %v362 = vunpack.c.h.b16 %v174
  %v363 = vunpack.c.l.b16 %v175
  %v364 = vunpack.c.h.b16 %v175
  %v365 = vunpack.c.l.b16 %v176
  %v366 = vunpack.c.h.b16 %v176
  %v367 = vunpack.c.l.b16 %v177
  %v368 = vunpack.c.h.b16 %v177
  %v369 = vunpack.c.l.b16 %v178
  %v370 = vunpack.c.h.b16 %v178
  %v371 = vunpack.c.l.b16 %v179
  %v372 = vunpack.c.h.b16 %v179
  %v373 = vunpack.c.l.b16 %v180
  %v374 = vunpack.c.h.b16 %v180
  %v375 = vunpack.c.l.b16 %v181
  %v376 = vunpack.c.h.b16 %v181
  %v377 = vunpack.c.l.b16 %v182
  %v378 = vunpack.c.h.b16 %v182
  %v379 = vunpack.c.l.b16 %v183
  %v380 = vunpack.c.h.b16 %v183
  %v381 = vunpack.c.l.b16 %v184
  %v382 = vunpack.c.h.b16 %v184
  %v383 = vunpack.c.l.b16 %v185
  %v384 = vunpack.c.h.b16 %v185
  %v385 = vunpack.c.l.b16 %v186
  %v386 = vunpack.c.h.b16 %v186
  %v387 = vunpack.c.l.b16 %v187
  %v388 = vunpack.c.h.b16 %v187
  %v389 = vunpack.c.l.b16 %v188
  %v390 = vunpack.c.h.b16 %v188
  %v391 = vunpack.c.l.b16 %v189
  %v392 = vunpack.c.h.b16 %v189
  %v393 = vunpack.c.l.b16 %v190
  %v394 = vunpack.c.h.b16 %v190
  %v395 = vunpack.c.l.b16 %v191
  %v396 = vunpack.c.h.b16 %v191
  %v397 = vunpack.c.l.b16 %v192
  %v398 = vunpack.c.h.b16 %v192
  %v399 = vunpack.c.l.b16 %v193
  %v400 = vunpack.c.h.b16 %v193
  %v401 = vunpack.c.l.b16 %v194
  %v402 = vunpack.c.h.b16 %v194
  %v403 = vunpack.c.l.b16 %v195
  %v404 = vunpack.c.h.b16 %v195
  %v405 = vunpack.c.l.b16 %v196
  %v406 = vunpack.c.h.b16 %v196
  %v407 = vunpack.c.l.b16 %v197
  %v408 = vunpack.c.h.b16 %v197
  %v409 = vunpack.c.l.b16 %v198
  %v410 = vunpack.c.h.b16 %v198
  %v411 = vunpack.c.l.b16 %v199
  %v412 = vunpack.c.h.b16 %v199
  %v413 = vunpack.c.l.b16 %v200
  %v414 = vunpack.c.h.b16 %v200
  %v415 = vunpack.c.l.b16 %v201
  %v416 = vunpack.c.h.b16 %v201
  %v417 = vunpack.c.l.b16 %v202
  %v418 = vunpack.c.h.b16 %v202
  %v419 = vunpack.c.l.b16 %v203
  %v420 = vunpack.c.h.b16 %v203
  %v421 = vunpack.c.l.b16 %v204
  %v422 = vunpack.c.h.b16 %v204
  %v423 = vunpack.c.l.b16 %v205
  %v424 = vunpack.c.h.b16 %v205
  %v425 = vunpack.c.l.b16 %v206
  %v426 = vunpack.c.h.b16 %v206
  %v427 = vunpack.c.l.b16 %v207
  %v428 = vunpack.c.h.b16 %v207
  %v429 = vunpack.c.l.b16 %v208
  %v430 = vunpack.c.h.b16 %v208
  %v431 = vunpack.c.l.b16 %v209
  %v432 = vunpack.c.h.b16 %v209
  %v433 = vunpack.c.l.b16 %v210
  %v434 = vunpack.c.h.b16 %v210
  %v435 = vpack.c.b16 %v309, %v307
  %v436 = vpack.c.b16 %v310, %v308
  %v437 = vpack.c.b16 %v313, %v311
  %v438 = vpack.c.b16 %v314, %v312
  %v439 = vpack.c.b16 %v317, %v315
  %v440 = vpack.c.b16 %v318, %v316
  %v441 = vpack.c.b16 %v321, %v319
  %v442 = vpack.c.b16 %v322, %v320
  %v443 = vpack.c.b16 %v325, %v323
  %v444 = vpack.c.b16 %v326, %v324
  %v445 = vpack.c.b16 %v329, %v327
  %v446 = vpack.c.b16 %v330, %v328
  %v447 = vpack.c.b16 %v333, %v331
  %v448 = vpack.c.b16 %v334, %v332
  %v449 = vpack.c.b16 %v337, %v335
  %v450 = vpack.c.b16 %v338, %v336
  %v451 = vpack.c.b16 %v341, %v339
  %v452 = vpack.c.b16 %v342, %v340
  %v453 = vpack.c.b16 %v345, %v343
  %v454 = vpack.c.b16 %v346, %v344
  %v455 = vpack.c.b16 %v349, %v347
  %v456 = vpack.c.b16 %v350, %v348
  %v457 = vpack.c.b16 %v353, %v351
  %v458 = vpack.c.b16 %v354, %v352
  %v459 = vpack.c.b16 %v357, %v355
  %v460 = vpack.c.b16 %v358, %v356
  %v461 = vpack.c.b16 %v361, %v359
  %v462 = vpack.c.b16 %v362, %v360
  %v463 = vpack.c.b16 %v365, %v363
  %v464 = vpack.c.b16 %v366, %v364
  %v465 = vpack.c.b16 %v369, %v367
  %v466 = vpack.c.b16 %v370, %v368
  %v467 = vpack.c.b16 %v373, %v371
  %v468 = vpack.c.b16 %v374, %v372
  %v469 = vpack.c.b16 %v377, %v375
  %v470 = vpack.c.b16 %v378, %v376
  %v471 = vpack.c.b16 %v381, %v379
  %v472 = vpack.c.b16 %v382, %v380
  %v473 = vpack.c.b16 %v385, %v383
  %v474 = vpack.c.b16 %v386, %v384
  %v475 = vpack.c.b16 %v389, %v387
  %v476 = vpack.c.b16 %v390, %v388
  %v477 = vpack.c.b16 %v393, %v391
  %v478 = vpack.c.b16 %v394, %v392
  %v479 = vpack.c.b16 %v397, %v395
  %v480 = vpack.c.b16 %v398, %v396
  %v481 = vpack.c.b16 %v401, %v399
  %v482 = vpack.c.b16 %v402, %v400
  %v483 = vpack.c.b16 %v405, %v403
  %v484 = vpack.c.b16 %v406, %v404
  %v485 = vpack.c.b16 %v409, %v407
  %v486 = vpack.c.b16 %v410, %v408
  %v487 = vpack.c.b16 %v413, %v411
  %v488 = vpack.c.b16 %v414, %v412
  %v489 = vpack.c.b16 %v417, %v415
  %v490 = vpack.c.b16 %v418, %v416
  %v491 = vpack.c.b16 %v421, %v419
  %v492 = vpack.c.b16 %v422, %v420
  %v493 = vpack.c.b16 %v425, %v423
  %v494 = vpack.c.b16 %v426, %v424
  %v495 = vpack.c.b16 %v429, %v427
  %v496 = vpack.c.b16 %v430, %v428
  %v497 = vpack.c.b16 %v433, %v431
  %v498 = vpack.c.b16 %v434, %v432
  %v595 = vunpack.c.l.b16 %v211
  %v596 = vunpack.c.l.b16 %v212
  %v597 = vunpack.c.l.b16 %v213
  %v598 = vunpack.c.l.b16 %v214
  %v599 = vunpack.c.l.b16 %v215
  %v600 = vunpack.c.l.b16 %v216
  %v601 = vunpack.c.l.b16 %v217
  %v602 = vunpack.c.l.b16 %v218
  %v603 = vunpack.c.l.b16 %v219
  %v604 = vunpack.c.l.b16 %v220
  %v605 = vunpack.c.l.b16 %v221
  %v606 = vunpack.c.l.b16 %v222
  %v607 = vunpack.c.l.b16 %v223
  %v608 = vunpack.c.l.b16 %v224
  %v609 = vunpack.c.l.b16 %v225
  %v610 = vunpack.c.l.b16 %v226
  %v611 = vunpack.c.l.b16 %v227
  %v612 = vunpack.c.l.b16 %v228
  %v613 = vunpack.c.l.b16 %v229
  %v614 = vunpack.c.l.b16 %v230
  %v615 = vunpack.c.l.b16 %v231
  %v616 = vunpack.c.l.b16 %v232
  %v617 = vunpack.c.l.b16 %v233
  %v618 = vunpack.c.l.b16 %v234
  %v619 = vunpack.c.l.b16 %v235
  %v620 = vunpack.c.l.b16 %v236
  %v621 = vunpack.c.l.b16 %v237
  %v622 = vunpack.c.l.b16 %v238
  %v623 = vunpack.c.l.b16 %v239
  %v624 = vunpack.c.l.b16 %v240
  %v625 = vunpack.c.l.b16 %v241
  %v626 = vunpack.c.l.b16 %v242
  %v627 = vpack.c.b16 %v596, %v595
  %v628 = vpack.c.b16 %v598, %v597
  %v629 = vpack.c.b16 %v600, %v599
  %v630 = vpack.c.b16 %v602, %v601
  %v631 = vpack.c.b16 %v604, %v603
  %v632 = vpack.c.b16 %v606, %v605
  %v633 = vpack.c.b16 %v608, %v607
  %v634 = vpack.c.b16 %v610, %v609
  %v635 = vpack.c.b16 %v612, %v611
  %v636 = vpack.c.b16 %v614, %v613
  %v637 = vpack.c.b16 %v616, %v615
  %v638 = vpack.c.b16 %v618, %v617
  %v639 = vpack.c.b16 %v620, %v619
  %v640 = vpack.c.b16 %v622, %v621
  %v641 = vpack.c.b16 %v624, %v623
  %v642 = vpack.c.b16 %v626, %v625
  %659 = vmatprep.subr.bf16.mxu0 0
  %660 = vmatpush1.bf16.msra.mxu0 %v627
  %661 = vmatprep.subr.bf16.mxu0 0
  %662 = vmatpush1.bf16.msra.mxu0 %v628
  %663 = vmatprep.subr.bf16.mxu0 0
  %664 = vmatpush1.bf16.msra.mxu0 %v629
  %665 = vmatprep.subr.bf16.mxu0 0
  %666 = vmatpush1.bf16.msra.mxu0 %v630
  %667 = vmatprep.subr.bf16.mxu0 0
  %668 = vmatpush1.bf16.msra.mxu0 %v631
  %669 = vmatprep.subr.bf16.mxu0 0
  %670 = vmatpush1.bf16.msra.mxu0 %v632
  %671 = vmatprep.subr.bf16.mxu0 0
  %672 = vmatpush1.bf16.msra.mxu0 %v633
  %673 = vmatprep.subr.bf16.mxu0 0
  %674 = vmatpush1.bf16.msra.mxu0 %v634
  %675 = vmatprep.subr.bf16.mxu0 0
  %676 = vmatpush1.bf16.msra.mxu0 %v635
  %677 = vmatprep.subr.bf16.mxu0 0
  %678 = vmatpush1.bf16.msra.mxu0 %v636
  %679 = vmatprep.subr.bf16.mxu0 0
  %680 = vmatpush1.bf16.msra.mxu0 %v637
  %681 = vmatprep.subr.bf16.mxu0 0
  %682 = vmatpush1.bf16.msra.mxu0 %v638
  %683 = vmatprep.subr.bf16.mxu0 0
  %684 = vmatpush1.bf16.msra.mxu0 %v639
  %685 = vmatprep.subr.bf16.mxu0 0
  %686 = vmatpush1.bf16.msra.mxu0 %v640
  %687 = vmatprep.subr.bf16.mxu0 0
  %688 = vmatpush1.bf16.msra.mxu0 %v641
  %689 = vmatprep.subr.bf16.mxu0 0
  %690 = vmatpush1.bf16.msra.mxu0 %v642
  %691 = vmatprep.mubr.bf16.mxu0 %v436
  %692 = vmatmul.mubr.bf16.gmra.mrb[0].mxu0 %v435
  %v693 = vpop.f32.mrb[0].mxu0
  %v694 = vadd.f32 0.0, %v693
  %v695 = vpop.f32.mrb[0].mxu0
  %v696 = vpop.f32.mrb[0].mxu0
  %v697 = vadd.f32 0.0, %v696
  %v698 = vpop.f32.mrb[0].mxu0
  %699 = vmatprep.mubr.bf16.mxu0 %v438
  %700 = vmatmul.mubr.bf16.gmra.mrb[0].mxu0 %v437
  %v701 = vpop.f32.mrb[0].mxu0
  %v702 = vadd.f32 0.0, %v701
  %v703 = vpop.f32.mrb[0].mxu0
  %v704 = vpop.f32.mrb[0].mxu0
  %v705 = vadd.f32 0.0, %v704
  %v706 = vpop.f32.mrb[0].mxu0
  %707 = vmatprep.mubr.bf16.mxu0 %v440
  %708 = vmatmul.mubr.bf16.gmra.mrb[0].mxu0 %v439
  %v709 = vpop.f32.mrb[0].mxu0
  %v710 = vadd.f32 0.0, %v709
  %v711 = vpop.f32.mrb[0].mxu0
  %v712 = vpop.f32.mrb[0].mxu0
  %v713 = vadd.f32 0.0, %v712
  %v714 = vpop.f32.mrb[0].mxu0
  %715 = vmatprep.mubr.bf16.mxu0 %v442
  %716 = vmatmul.mubr.bf16.gmra.mrb[0].mxu0 %v441
  %v717 = vpop.f32.mrb[0].mxu0
  %v718 = vadd.f32 0.0, %v717
  %v719 = vpop.f32.mrb[0].mxu0
  %v720 = vpop.f32.mrb[0].mxu0
  %v721 = vadd.f32 0.0, %v720
  %v722 = vpop.f32.mrb[0].mxu0
  %723 = vmatprep.mubr.bf16.mxu0 %v444
  %724 = vmatmul.mubr.bf16.gmra.mrb[0].mxu0 %v443
  %v725 = vpop.f32.mrb[0].mxu0
  %v726 = vadd.f32 0.0, %v725
  %v727 = vpop.f32.mrb[0].mxu0
  %v728 = vpop.f32.mrb[0].mxu0
  %v729 = vadd.f32 0.0, %v728
  %v730 = vpop.f32.mrb[0].mxu0
  %731 = vmatprep.mubr.bf16.mxu0 %v446
  %732 = vmatmul.mubr.bf16.gmra.mrb[0].mxu0 %v445
  %v733 = vpop.f32.mrb[0].mxu0
  %v734 = vadd.f32 0.0, %v733
  %v735 = vpop.f32.mrb[0].mxu0
  %v736 = vpop.f32.mrb[0].mxu0
  %v737 = vadd.f32 0.0, %v736
  %v738 = vpop.f32.mrb[0].mxu0
  %739 = vmatprep.mubr.bf16.mxu0 %v448
  %740 = vmatmul.mubr.bf16.gmra.mrb[0].mxu0 %v447
  %v741 = vpop.f32.mrb[0].mxu0
  %v742 = vadd.f32 0.0, %v741
  %v743 = vpop.f32.mrb[0].mxu0
  %v744 = vpop.f32.mrb[0].mxu0
  %v745 = vadd.f32 0.0, %v744
  %v746 = vpop.f32.mrb[0].mxu0
  %747 = vmatprep.mubr.bf16.mxu0 %v450
  %748 = vmatmul.mubr.bf16.gmra.mrb[0].mxu0 %v449
  %v749 = vpop.f32.mrb[0].mxu0
  %v750 = vadd.f32 0.0, %v749
  %v751 = vpop.f32.mrb[0].mxu0
  %v752 = vpop.f32.mrb[0].mxu0
  %v753 = vadd.f32 0.0, %v752
  %v754 = vpop.f32.mrb[0].mxu0
  %755 = vmatprep.mubr.bf16.mxu0 %v452
  %756 = vmatmul.mubr.bf16.gmra.mrb[0].mxu0 %v451
  %v757 = vpop.f32.mrb[0].mxu0
  %v758 = vadd.f32 0.0, %v757
  %v759 = vpop.f32.mrb[0].mxu0
  %v760 = vpop.f32.mrb[0].mxu0
  %v761 = vadd.f32 0.0, %v760
  %v762 = vpop.f32.mrb[0].mxu0
  %763 = vmatprep.mubr.bf16.mxu0 %v454
  %764 = vmatmul.mubr.bf16.gmra.mrb[0].mxu0 %v453
  %v765 = vpop.f32.mrb[0].mxu0
  %v766 = vadd.f32 0.0, %v765
  %v767 = vpop.f32.mrb[0].mxu0
  %v768 = vpop.f32.mrb[0].mxu0
  %v769 = vadd.f32 0.0, %v768
  %v770 = vpop.f32.mrb[0].mxu0
  %771 = vmatprep.mubr.bf16.mxu0 %v456
  %772 = vmatmul.mubr.bf16.gmra.mrb[0].mxu0 %v455
  %v773 = vpop.f32.mrb[0].mxu0
  %v774 = vadd.f32 0.0, %v773
  %v775 = vpop.f32.mrb[0].mxu0
  %v776 = vpop.f32.mrb[0].mxu0
  %v777 = vadd.f32 0.0, %v776
  %v778 = vpop.f32.mrb[0].mxu0
  %779 = vmatprep.mubr.bf16.mxu0 %v458
  %780 = vmatmul.mubr.bf16.gmra.mrb[0].mxu0 %v457
  %v781 = vpop.f32.mrb[0].mxu0
  %v782 = vadd.f32 0.0, %v781
  %v783 = vpop.f32.mrb[0].mxu0
  %v784 = vpop.f32.mrb[0].mxu0
  %v785 = vadd.f32 0.0, %v784
  %v786 = vpop.f32.mrb[0].mxu0
  %787 = vmatprep.mubr.bf16.mxu0 %v460
  %788 = vmatmul.mubr.bf16.gmra.mrb[0].mxu0 %v459
  %v789 = vpop.f32.mrb[0].mxu0
  %v790 = vadd.f32 0.0, %v789
  %v791 = vpop.f32.mrb[0].mxu0
  %v792 = vpop.f32.mrb[0].mxu0
  %v793 = vadd.f32 0.0, %v792
  %v794 = vpop.f32.mrb[0].mxu0
  %795 = vmatprep.mubr.bf16.mxu0 %v462
  %796 = vmatmul.mubr.bf16.gmra.mrb[0].mxu0 %v461
  %v797 = vpop.f32.mrb[0].mxu0
  %v798 = vadd.f32 0.0, %v797
  %v799 = vpop.f32.mrb[0].mxu0
  %v800 = vpop.f32.mrb[0].mxu0
  %v801 = vadd.f32 0.0, %v800
  %v802 = vpop.f32.mrb[0].mxu0
  %803 = vmatprep.mubr.bf16.mxu0 %v464
  %804 = vmatmul.mubr.bf16.gmra.mrb[0].mxu0 %v463
  %v805 = vpop.f32.mrb[0].mxu0
  %v806 = vadd.f32 0.0, %v805
  %v807 = vpop.f32.mrb[0].mxu0
  %v808 = vpop.f32.mrb[0].mxu0
  %v809 = vadd.f32 0.0, %v808
  %v810 = vpop.f32.mrb[0].mxu0
  %811 = vmatprep.mubr.bf16.mxu0 %v466
  %812 = vmatmul.mubr.bf16.gmra.mrb[0].mxu0 %v465
  %v813 = vpop.f32.mrb[0].mxu0
  %v814 = vadd.f32 0.0, %v813
  %v815 = vpop.f32.mrb[0].mxu0
  %v816 = vpop.f32.mrb[0].mxu0
  %v817 = vadd.f32 0.0, %v816
  %v818 = vpop.f32.mrb[0].mxu0
  %819 = vmatprep.mubr.bf16.mxu0 %v468
  %820 = vmatmul.mubr.bf16.gmra.mrb[0].mxu0 %v467
  %v821 = vpop.f32.mrb[0].mxu0
  %v822 = vadd.f32 0.0, %v821
  %v823 = vpop.f32.mrb[0].mxu0
  %v824 = vpop.f32.mrb[0].mxu0
  %v825 = vadd.f32 0.0, %v824
  %v826 = vpop.f32.mrb[0].mxu0
  %827 = vmatprep.mubr.bf16.mxu0 %v470
  %828 = vmatmul.mubr.bf16.gmra.mrb[0].mxu0 %v469
  %v829 = vpop.f32.mrb[0].mxu0
  %v830 = vadd.f32 0.0, %v829
  %v831 = vpop.f32.mrb[0].mxu0
  %v832 = vpop.f32.mrb[0].mxu0
  %v833 = vadd.f32 0.0, %v832
  %v834 = vpop.f32.mrb[0].mxu0
  %835 = vmatprep.mubr.bf16.mxu0 %v472
  %836 = vmatmul.mubr.bf16.gmra.mrb[0].mxu0 %v471
  %v837 = vpop.f32.mrb[0].mxu0
  %v838 = vadd.f32 0.0, %v837
  %v839 = vpop.f32.mrb[0].mxu0
  %v840 = vpop.f32.mrb[0].mxu0
  %v841 = vadd.f32 0.0, %v840
  %v842 = vpop.f32.mrb[0].mxu0
  %843 = vmatprep.mubr.bf16.mxu0 %v474
  %844 = vmatmul.mubr.bf16.gmra.mrb[0].mxu0 %v473
  %v845 = vpop.f32.mrb[0].mxu0
  %v846 = vadd.f32 0.0, %v845
  %v847 = vpop.f32.mrb[0].mxu0
  %v848 = vpop.f32.mrb[0].mxu0
  %v849 = vadd.f32 0.0, %v848
  %v850 = vpop.f32.mrb[0].mxu0
  %851 = vmatprep.mubr.bf16.mxu0 %v476
  %852 = vmatmul.mubr.bf16.gmra.mrb[0].mxu0 %v475
  %v853 = vpop.f32.mrb[0].mxu0
  %v854 = vadd.f32 0.0, %v853
  %v855 = vpop.f32.mrb[0].mxu0
  %v856 = vpop.f32.mrb[0].mxu0
  %v857 = vadd.f32 0.0, %v856
  %v858 = vpop.f32.mrb[0].mxu0
  %859 = vmatprep.mubr.bf16.mxu0 %v478
  %860 = vmatmul.mubr.bf16.gmra.mrb[0].mxu0 %v477
  %v861 = vpop.f32.mrb[0].mxu0
  %v862 = vadd.f32 0.0, %v861
  %v863 = vpop.f32.mrb[0].mxu0
  %v864 = vpop.f32.mrb[0].mxu0
  %v865 = vadd.f32 0.0, %v864
  %v866 = vpop.f32.mrb[0].mxu0
  %867 = vmatprep.mubr.bf16.mxu0 %v480
  %868 = vmatmul.mubr.bf16.gmra.mrb[0].mxu0 %v479
  %v869 = vpop.f32.mrb[0].mxu0
  %v870 = vadd.f32 0.0, %v869
  %v871 = vpop.f32.mrb[0].mxu0
  %v872 = vpop.f32.mrb[0].mxu0
  %v873 = vadd.f32 0.0, %v872
  %v874 = vpop.f32.mrb[0].mxu0
  %875 = vmatprep.mubr.bf16.mxu0 %v482
  %876 = vmatmul.mubr.bf16.gmra.mrb[0].mxu0 %v481
  %v877 = vpop.f32.mrb[0].mxu0
  %v878 = vadd.f32 0.0, %v877
  %v879 = vpop.f32.mrb[0].mxu0
  %v880 = vpop.f32.mrb[0].mxu0
  %v881 = vadd.f32 0.0, %v880
  %v882 = vpop.f32.mrb[0].mxu0
  %883 = vmatprep.mubr.bf16.mxu0 %v484
  %884 = vmatmul.mubr.bf16.gmra.mrb[0].mxu0 %v483
  %v885 = vpop.f32.mrb[0].mxu0
  %v886 = vadd.f32 0.0, %v885
  %v887 = vpop.f32.mrb[0].mxu0
  %v888 = vpop.f32.mrb[0].mxu0
  %v889 = vadd.f32 0.0, %v888
  %v890 = vpop.f32.mrb[0].mxu0
  %891 = vmatprep.mubr.bf16.mxu0 %v486
  %892 = vmatmul.mubr.bf16.gmra.mrb[0].mxu0 %v485
  %v893 = vpop.f32.mrb[0].mxu0
  %v894 = vadd.f32 0.0, %v893
  %v895 = vpop.f32.mrb[0].mxu0
  %v896 = vpop.f32.mrb[0].mxu0
  %v897 = vadd.f32 0.0, %v896
  %v898 = vpop.f32.mrb[0].mxu0
  %899 = vmatprep.mubr.bf16.mxu0 %v488
  %900 = vmatmul.mubr.bf16.gmra.mrb[0].mxu0 %v487
  %v901 = vpop.f32.mrb[0].mxu0
  %v902 = vadd.f32 0.0, %v901
  %v903 = vpop.f32.mrb[0].mxu0
  %v904 = vpop.f32.mrb[0].mxu0
  %v905 = vadd.f32 0.0, %v904
  %v906 = vpop.f32.mrb[0].mxu0
  %907 = vmatprep.mubr.bf16.mxu0 %v490
  %908 = vmatmul.mubr.bf16.gmra.mrb[0].mxu0 %v489
  %v909 = vpop.f32.mrb[0].mxu0
  %v910 = vadd.f32 0.0, %v909
  %v911 = vpop.f32.mrb[0].mxu0
  %v912 = vpop.f32.mrb[0].mxu0
  %v913 = vadd.f32 0.0, %v912
  %v914 = vpop.f32.mrb[0].mxu0
  %915 = vmatprep.mubr.bf16.mxu0 %v492
  %916 = vmatmul.mubr.bf16.gmra.mrb[0].mxu0 %v491
  %v917 = vpop.f32.mrb[0].mxu0
  %v918 = vadd.f32 0.0, %v917
  %v919 = vpop.f32.mrb[0].mxu0
  %v920 = vpop.f32.mrb[0].mxu0
  %v921 = vadd.f32 0.0, %v920
  %v922 = vpop.f32.mrb[0].mxu0
  %923 = vmatprep.mubr.bf16.mxu0 %v494
  %924 = vmatmul.mubr.bf16.gmra.mrb[0].mxu0 %v493
  %v925 = vpop.f32.mrb[0].mxu0
  %v926 = vadd.f32 0.0, %v925
  %v927 = vpop.f32.mrb[0].mxu0
  %v928 = vpop.f32.mrb[0].mxu0
  %v929 = vadd.f32 0.0, %v928
  %v930 = vpop.f32.mrb[0].mxu0
  %931 = vmatprep.mubr.bf16.mxu0 %v496
  %932 = vmatmul.mubr.bf16.gmra.mrb[0].mxu0 %v495
  %v933 = vpop.f32.mrb[0].mxu0
  %v934 = vadd.f32 0.0, %v933
  %v935 = vpop.f32.mrb[0].mxu0
  %v936 = vpop.f32.mrb[0].mxu0
  %v937 = vadd.f32 0.0, %v936
  %v938 = vpop.f32.mrb[0].mxu0
  %939 = vmatprep.mubr.bf16.mxu0 %v498
  %940 = vmatmul.mubr.bf16.gmra.mrb[0].mxu0 %v497
  %v941 = vpop.f32.mrb[0].mxu0
  %v942 = vadd.f32 0.0, %v941
  %v943 = vpop.f32.mrb[0].mxu0
  %v944 = vpop.f32.mrb[0].mxu0
  %v945 = vadd.f32 0.0, %v944
  %v946 = vpop.f32.mrb[0].mxu0
  %947 = vdwg.mxu0
  %v948 = vadd.f32 %v83, %v694
  %v949 = vadd.f32 %v84, %v697
  %v950 = vadd.f32 %v85, %v702
  %v951 = vadd.f32 %v86, %v705
  %v952 = vadd.f32 %v87, %v710
  %v953 = vadd.f32 %v88, %v713
  %v954 = vadd.f32 %v89, %v718
  %v955 = vadd.f32 %v90, %v721
  %v956 = vadd.f32 %v91, %v726
  %v957 = vadd.f32 %v92, %v729
  %v958 = vadd.f32 %v93, %v734
  %v959 = vadd.f32 %v94, %v737
  %v960 = vadd.f32 %v95, %v742
  %v961 = vadd.f32 %v96, %v745
  %v962 = vadd.f32 %v97, %v750
  %v963 = vadd.f32 %v98, %v753
  %v964 = vadd.f32 %v99, %v758
  %v965 = vadd.f32 %v100, %v761
  %v966 = vadd.f32 %v101, %v766
  %v967 = vadd.f32 %v102, %v769
  %v968 = vadd.f32 %v103, %v774
  %v969 = vadd.f32 %v104, %v777
  %v970 = vadd.f32 %v105, %v782
  %v971 = vadd.f32 %v106, %v785
  %v972 = vadd.f32 %v107, %v790
  %v973 = vadd.f32 %v108, %v793
  %v974 = vadd.f32 %v109, %v798
  %v975 = vadd.f32 %v110, %v801
  %v976 = vadd.f32 %v111, %v806
  %v977 = vadd.f32 %v112, %v809
  %v978 = vadd.f32 %v113, %v814
  %v979 = vadd.f32 %v114, %v817
  %v980 = vadd.f32 %v115, %v822
  %v981 = vadd.f32 %v116, %v825
  %v982 = vadd.f32 %v117, %v830
  %v983 = vadd.f32 %v118, %v833
  %v984 = vadd.f32 %v119, %v838
  %v985 = vadd.f32 %v120, %v841
  %v986 = vadd.f32 %v121, %v846
  %v987 = vadd.f32 %v122, %v849
  %v988 = vadd.f32 %v123, %v854
  %v989 = vadd.f32 %v124, %v857
  %v990 = vadd.f32 %v125, %v862
  %v991 = vadd.f32 %v126, %v865
  %v992 = vadd.f32 %v127, %v870
  %v993 = vadd.f32 %v128, %v873
  %v994 = vadd.f32 %v129, %v878
  %v995 = vadd.f32 %v130, %v881
  %v996 = vadd.f32 %v131, %v886
  %v997 = vadd.f32 %v132, %v889
  %v998 = vadd.f32 %v133, %v894
  %v999 = vadd.f32 %v134, %v897
  %v1000 = vadd.f32 %v135, %v902
  %v1001 = vadd.f32 %v136, %v905
  %v1002 = vadd.f32 %v137, %v910
  %v1003 = vadd.f32 %v138, %v913
  %v1004 = vadd.f32 %v139, %v918
  %v1005 = vadd.f32 %v140, %v921
  %v1006 = vadd.f32 %v141, %v926
  %v1007 = vadd.f32 %v142, %v929
  %v1008 = vadd.f32 %v143, %v934
  %v1009 = vadd.f32 %v144, %v937
  %v1010 = vadd.f32 %v145, %v942
  %v1011 = vadd.f32 %v146, %v945
  %1012 = vst [vmem:[#allocation2] sm:$0xff] %v948
  %1013 = vst [vmem:[#allocation2 + $0x8] sm:$0xff] %v949
  %1014 = vst [vmem:[#allocation2 + $0x10] sm:$0xff] %v950
  %1015 = vst [vmem:[#allocation2 + $0x18] sm:$0xff] %v951
  %1016 = vst [vmem:[#allocation2 + $0x20] sm:$0xff] %v952
  %1017 = vst [vmem:[#allocation2 + $0x28] sm:$0xff] %v953
  %1018 = vst [vmem:[#allocation2 + $0x30] sm:$0xff] %v954
  %1019 = vst [vmem:[#allocation2 + $0x38] sm:$0xff] %v955
  %1020 = vst [vmem:[#allocation2 + $0x40] sm:$0xff] %v956
  %1021 = vst [vmem:[#allocation2 + $0x48] sm:$0xff] %v957
  %1022 = vst [vmem:[#allocation2 + $0x50] sm:$0xff] %v958
  %1023 = vst [vmem:[#allocation2 + $0x58] sm:$0xff] %v959
  %1024 = vst [vmem:[#allocation2 + $0x60] sm:$0xff] %v960
  %1025 = vst [vmem:[#allocation2 + $0x68] sm:$0xff] %v961
  %1026 = vst [vmem:[#allocation2 + $0x70] sm:$0xff] %v962
  %1027 = vst [vmem:[#allocation2 + $0x78] sm:$0xff] %v963
  %1028 = vst [vmem:[#allocation2 + $0x80] sm:$0xff] %v964
  %1029 = vst [vmem:[#allocation2 + $0x88] sm:$0xff] %v965
  %1030 = vst [vmem:[#allocation2 + $0x90] sm:$0xff] %v966
  %1031 = vst [vmem:[#allocation2 + $0x98] sm:$0xff] %v967
  %1032 = vst [vmem:[#allocation2 + $0xa0] sm:$0xff] %v968
  %1033 = vst [vmem:[#allocation2 + $0xa8] sm:$0xff] %v969
  %1034 = vst [vmem:[#allocation2 + $0xb0] sm:$0xff] %v970
  %1035 = vst [vmem:[#allocation2 + $0xb8] sm:$0xff] %v971
  %1036 = vst [vmem:[#allocation2 + $0xc0] sm:$0xff] %v972
  %1037 = vst [vmem:[#allocation2 + $0xc8] sm:$0xff] %v973
  %1038 = vst [vmem:[#allocation2 + $0xd0] sm:$0xff] %v974
  %1039 = vst [vmem:[#allocation2 + $0xd8] sm:$0xff] %v975
  %1040 = vst [vmem:[#allocation2 + $0xe0] sm:$0xff] %v976
  %1041 = vst [vmem:[#allocation2 + $0xe8] sm:$0xff] %v977
  %1042 = vst [vmem:[#allocation2 + $0xf0] sm:$0xff] %v978
  %1043 = vst [vmem:[#allocation2 + $0xf8] sm:$0xff] %v979
  %1044 = vst [vmem:[#allocation2 + $0x100] sm:$0xff] %v980
  %1045 = vst [vmem:[#allocation2 + $0x108] sm:$0xff] %v981
  %1046 = vst [vmem:[#allocation2 + $0x110] sm:$0xff] %v982
  %1047 = vst [vmem:[#allocation2 + $0x118] sm:$0xff] %v983
  %1048 = vst [vmem:[#allocation2 + $0x120] sm:$0xff] %v984
  %1049 = vst [vmem:[#allocation2 + $0x128] sm:$0xff] %v985
  %1050 = vst [vmem:[#allocation2 + $0x130] sm:$0xff] %v986
  %1051 = vst [vmem:[#allocation2 + $0x138] sm:$0xff] %v987
  %1052 = vst [vmem:[#allocation2 + $0x140] sm:$0xff] %v988
  %1053 = vst [vmem:[#allocation2 + $0x148] sm:$0xff] %v989
  %1054 = vst [vmem:[#allocation2 + $0x150] sm:$0xff] %v990
  %1055 = vst [vmem:[#allocation2 + $0x158] sm:$0xff] %v991
  %1056 = vst [vmem:[#allocation2 + $0x160] sm:$0xff] %v992
  %1057 = vst [vmem:[#allocation2 + $0x168] sm:$0xff] %v993
  %1058 = vst [vmem:[#allocation2 + $0x170] sm:$0xff] %v994
  %1059 = vst [vmem:[#allocation2 + $0x178] sm:$0xff] %v995
  %1060 = vst [vmem:[#allocation2 + $0x180] sm:$0xff] %v996
  %1061 = vst [vmem:[#allocation2 + $0x188] sm:$0xff] %v997
  %1062 = vst [vmem:[#allocation2 + $0x190] sm:$0xff] %v998
  %1063 = vst [vmem:[#allocation2 + $0x198] sm:$0xff] %v999
  %1064 = vst [vmem:[#allocation2 + $0x1a0] sm:$0xff] %v1000
  %1065 = vst [vmem:[#allocation2 + $0x1a8] sm:$0xff] %v1001
  %1066 = vst [vmem:[#allocation2 + $0x1b0] sm:$0xff] %v1002
  %1067 = vst [vmem:[#allocation2 + $0x1b8] sm:$0xff] %v1003
  %1068 = vst [vmem:[#allocation2 + $0x1c0] sm:$0xff] %v1004
  %1069 = vst [vmem:[#allocation2 + $0x1c8] sm:$0xff] %v1005
  %1070 = vst [vmem:[#allocation2 + $0x1d0] sm:$0xff] %v1006
  %1071 = vst [vmem:[#allocation2 + $0x1d8] sm:$0xff] %v1007
  %1072 = vst [vmem:[#allocation2 + $0x1e0] sm:$0xff] %v1008
  %1073 = vst [vmem:[#allocation2 + $0x1e8] sm:$0xff] %v1009
  %1074 = vst [vmem:[#allocation2 + $0x1f0] sm:$0xff] %v1010
  %1075 = vst [vmem:[#allocation2 + $0x1f8] sm:$0xff] %v1011
  // Predicated region
  $region18: #{forward.4} parent=0 // pred_check
    %p1076 = pneg %p15
  $region19: #{forward.4} parent=0 // pred_check_branch
    %1078 = sbr.rel (%p1076) target = $region21
  $region20: #{forward.4} parent=0 // pred_region
    %v1079 = vld [vmem:[#allocation2] sm:$0xff]
    %v1080 = vld [vmem:[#allocation2 + $0x8] sm:$0xff]
    %v1081 = vld [vmem:[#allocation2 + $0x10] sm:$0xff]
    %v1082 = vld [vmem:[#allocation2 + $0x18] sm:$0xff]
    %v1083 = vld [vmem:[#allocation2 + $0x20] sm:$0xff]
    %v1084 = vld [vmem:[#allocation2 + $0x28] sm:$0xff]
    %v1085 = vld [vmem:[#allocation2 + $0x30] sm:$0xff]
    %v1086 = vld [vmem:[#allocation2 + $0x38] sm:$0xff]
    %v1087 = vld [vmem:[#allocation2 + $0x40] sm:$0xff]
    %v1088 = vld [vmem:[#allocation2 + $0x48] sm:$0xff]
    %v1089 = vld [vmem:[#allocation2 + $0x50] sm:$0xff]
    %v1090 = vld [vmem:[#allocation2 + $0x58] sm:$0xff]
    %v1091 = vld [vmem:[#allocation2 + $0x60] sm:$0xff]
    %v1092 = vld [vmem:[#allocation2 + $0x68] sm:$0xff]
    %v1093 = vld [vmem:[#allocation2 + $0x70] sm:$0xff]
    %v1094 = vld [vmem:[#allocation2 + $0x78] sm:$0xff]
    %v1095 = vld [vmem:[#allocation2 + $0x80] sm:$0xff]
    %v1096 = vld [vmem:[#allocation2 + $0x88] sm:$0xff]
    %v1097 = vld [vmem:[#allocation2 + $0x90] sm:$0xff]
    %v1098 = vld [vmem:[#allocation2 + $0x98] sm:$0xff]
    %v1099 = vld [vmem:[#allocation2 + $0xa0] sm:$0xff]
    %v1100 = vld [vmem:[#allocation2 + $0xa8] sm:$0xff]
    %v1101 = vld [vmem:[#allocation2 + $0xb0] sm:$0xff]
    %v1102 = vld [vmem:[#allocation2 + $0xb8] sm:$0xff]
    %v1103 = vld [vmem:[#allocation2 + $0xc0] sm:$0xff]
    %v1104 = vld [vmem:[#allocation2 + $0xc8] sm:$0xff]
    %v1105 = vld [vmem:[#allocation2 + $0xd0] sm:$0xff]
    %v1106 = vld [vmem:[#allocation2 + $0xd8] sm:$0xff]
    %v1107 = vld [vmem:[#allocation2 + $0xe0] sm:$0xff]
    %v1108 = vld [vmem:[#allocation2 + $0xe8] sm:$0xff]
    %v1109 = vld [vmem:[#allocation2 + $0xf0] sm:$0xff]
    %v1110 = vld [vmem:[#allocation2 + $0xf8] sm:$0xff]
    %v1111 = vld [vmem:[#allocation2 + $0x100] sm:$0xff]
    %v1112 = vld [vmem:[#allocation2 + $0x108] sm:$0xff]
    %v1113 = vld [vmem:[#allocation2 + $0x110] sm:$0xff]
    %v1114 = vld [vmem:[#allocation2 + $0x118] sm:$0xff]
    %v1115 = vld [vmem:[#allocation2 + $0x120] sm:$0xff]
    %v1116 = vld [vmem:[#allocation2 + $0x128] sm:$0xff]
    %v1117 = vld [vmem:[#allocation2 + $0x130] sm:$0xff]
    %v1118 = vld [vmem:[#allocation2 + $0x138] sm:$0xff]
    %v1119 = vld [vmem:[#allocation2 + $0x140] sm:$0xff]
    %v1120 = vld [vmem:[#allocation2 + $0x148] sm:$0xff]
    %v1121 = vld [vmem:[#allocation2 + $0x150] sm:$0xff]
    %v1122 = vld [vmem:[#allocation2 + $0x158] sm:$0xff]
    %v1123 = vld [vmem:[#allocation2 + $0x160] sm:$0xff]
    %v1124 = vld [vmem:[#allocation2 + $0x168] sm:$0xff]
    %v1125 = vld [vmem:[#allocation2 + $0x170] sm:$0xff]
    %v1126 = vld [vmem:[#allocation2 + $0x178] sm:$0xff]
    %v1127 = vld [vmem:[#allocation2 + $0x180] sm:$0xff]
    %v1128 = vld [vmem:[#allocation2 + $0x188] sm:$0xff]
    %v1129 = vld [vmem:[#allocation2 + $0x190] sm:$0xff]
    %v1130 = vld [vmem:[#allocation2 + $0x198] sm:$0xff]
    %v1131 = vld [vmem:[#allocation2 + $0x1a0] sm:$0xff]
    %v1132 = vld [vmem:[#allocation2 + $0x1a8] sm:$0xff]
    %v1133 = vld [vmem:[#allocation2 + $0x1b0] sm:$0xff]
    %v1134 = vld [vmem:[#allocation2 + $0x1b8] sm:$0xff]
    %v1135 = vld [vmem:[#allocation2 + $0x1c0] sm:$0xff]
    %v1136 = vld [vmem:[#allocation2 + $0x1c8] sm:$0xff]
    %v1137 = vld [vmem:[#allocation2 + $0x1d0] sm:$0xff]
    %v1138 = vld [vmem:[#allocation2 + $0x1d8] sm:$0xff]
    %v1139 = vld [vmem:[#allocation2 + $0x1e0] sm:$0xff]
    %v1140 = vld [vmem:[#allocation2 + $0x1e8] sm:$0xff]
    %v1141 = vld [vmem:[#allocation2 + $0x1f0] sm:$0xff]
    %v1142 = vld [vmem:[#allocation2 + $0x1f8] sm:$0xff]
    %v1143 = vld [vmem:[%s2] sm:$0x1]
    %v1145 = vlaneseq
    %v1146 = vshrl.u32 %v1145, 7
    %v1147 = vsub.s32 0, %v1146
    %v1148 = vrot.slane %v1143, %v1147
    %v1150 = vadd.f32 %v1079, %v1148
    %v1151 = vadd.f32 %v1080, %v1148
    %v1152 = vadd.f32 %v1081, %v1148
    %v1153 = vadd.f32 %v1082, %v1148
    %v1154 = vadd.f32 %v1083, %v1148
    %v1155 = vadd.f32 %v1084, %v1148
    %v1156 = vadd.f32 %v1085, %v1148
    %v1157 = vadd.f32 %v1086, %v1148
    %v1158 = vadd.f32 %v1087, %v1148
    %v1159 = vadd.f32 %v1088, %v1148
    %v1160 = vadd.f32 %v1089, %v1148
    %v1161 = vadd.f32 %v1090, %v1148
    %v1162 = vadd.f32 %v1091, %v1148
    %v1163 = vadd.f32 %v1092, %v1148
    %v1164 = vadd.f32 %v1093, %v1148
    %v1165 = vadd.f32 %v1094, %v1148
    %v1166 = vadd.f32 %v1095, %v1148
    %v1167 = vadd.f32 %v1096, %v1148
    %v1168 = vadd.f32 %v1097, %v1148
    %v1169 = vadd.f32 %v1098, %v1148
    %v1170 = vadd.f32 %v1099, %v1148
    %v1171 = vadd.f32 %v1100, %v1148
    %v1172 = vadd.f32 %v1101, %v1148
    %v1173 = vadd.f32 %v1102, %v1148
    %v1174 = vadd.f32 %v1103, %v1148
    %v1175 = vadd.f32 %v1104, %v1148
    %v1176 = vadd.f32 %v1105, %v1148
    %v1177 = vadd.f32 %v1106, %v1148
    %v1178 = vadd.f32 %v1107, %v1148
    %v1179 = vadd.f32 %v1108, %v1148
    %v1180 = vadd.f32 %v1109, %v1148
    %v1181 = vadd.f32 %v1110, %v1148
    %v1182 = vadd.f32 %v1111, %v1148
    %v1183 = vadd.f32 %v1112, %v1148
    %v1184 = vadd.f32 %v1113, %v1148
    %v1185 = vadd.f32 %v1114, %v1148
    %v1186 = vadd.f32 %v1115, %v1148
    %v1187 = vadd.f32 %v1116, %v1148
    %v1188 = vadd.f32 %v1117, %v1148
    %v1189 = vadd.f32 %v1118, %v1148
    %v1190 = vadd.f32 %v1119, %v1148
    %v1191 = vadd.f32 %v1120, %v1148
    %v1192 = vadd.f32 %v1121, %v1148
    %v1193 = vadd.f32 %v1122, %v1148
    %v1194 = vadd.f32 %v1123, %v1148
    %v1195 = vadd.f32 %v1124, %v1148
    %v1196 = vadd.f32 %v1125, %v1148
    %v1197 = vadd.f32 %v1126, %v1148
    %v1198 = vadd.f32 %v1127, %v1148
    %v1199 = vadd.f32 %v1128, %v1148
    %v1200 = vadd.f32 %v1129, %v1148
    %v1201 = vadd.f32 %v1130, %v1148
    %v1202 = vadd.f32 %v1131, %v1148
    %v1203 = vadd.f32 %v1132, %v1148
    %v1204 = vadd.f32 %v1133, %v1148
    %v1205 = vadd.f32 %v1134, %v1148
    %v1206 = vadd.f32 %v1135, %v1148
    %v1207 = vadd.f32 %v1136, %v1148
    %v1208 = vadd.f32 %v1137, %v1148
    %v1209 = vadd.f32 %v1138, %v1148
    %v1210 = vadd.f32 %v1139, %v1148
    %v1211 = vadd.f32 %v1140, %v1148
    %v1212 = vadd.f32 %v1141, %v1148
    %v1213 = vadd.f32 %v1142, %v1148
    %v1214 = vmax.f32 %v1150, 0.0
    %v1215 = vmax.f32 %v1151, 0.0
    %v1216 = vmax.f32 %v1152, 0.0
    %v1217 = vmax.f32 %v1153, 0.0
    %v1218 = vmax.f32 %v1154, 0.0
    %v1219 = vmax.f32 %v1155, 0.0
    %v1220 = vmax.f32 %v1156, 0.0
    %v1221 = vmax.f32 %v1157, 0.0
    %v1222 = vmax.f32 %v1158, 0.0
    %v1223 = vmax.f32 %v1159, 0.0
    %v1224 = vmax.f32 %v1160, 0.0
    %v1225 = vmax.f32 %v1161, 0.0
    %v1226 = vmax.f32 %v1162, 0.0
    %v1227 = vmax.f32 %v1163, 0.0
    %v1228 = vmax.f32 %v1164, 0.0
    %v1229 = vmax.f32 %v1165, 0.0
    %v1230 = vmax.f32 %v1166, 0.0
    %v1231 = vmax.f32 %v1167, 0.0
    %v1232 = vmax.f32 %v1168, 0.0
    %v1233 = vmax.f32 %v1169, 0.0
    %v1234 = vmax.f32 %v1170, 0.0
    %v1235 = vmax.f32 %v1171, 0.0
    %v1236 = vmax.f32 %v1172, 0.0
    %v1237 = vmax.f32 %v1173, 0.0
    %v1238 = vmax.f32 %v1174, 0.0
    %v1239 = vmax.f32 %v1175, 0.0
    %v1240 = vmax.f32 %v1176, 0.0
    %v1241 = vmax.f32 %v1177, 0.0
    %v1242 = vmax.f32 %v1178, 0.0
    %v1243 = vmax.f32 %v1179, 0.0
    %v1244 = vmax.f32 %v1180, 0.0
    %v1245 = vmax.f32 %v1181, 0.0
    %v1246 = vmax.f32 %v1182, 0.0
    %v1247 = vmax.f32 %v1183, 0.0
    %v1248 = vmax.f32 %v1184, 0.0
    %v1249 = vmax.f32 %v1185, 0.0
    %v1250 = vmax.f32 %v1186, 0.0
    %v1251 = vmax.f32 %v1187, 0.0
    %v1252 = vmax.f32 %v1188, 0.0
    %v1253 = vmax.f32 %v1189, 0.0
    %v1254 = vmax.f32 %v1190, 0.0
    %v1255 = vmax.f32 %v1191, 0.0
    %v1256 = vmax.f32 %v1192, 0.0
    %v1257 = vmax.f32 %v1193, 0.0
    %v1258 = vmax.f32 %v1194, 0.0
    %v1259 = vmax.f32 %v1195, 0.0
    %v1260 = vmax.f32 %v1196, 0.0
    %v1261 = vmax.f32 %v1197, 0.0
    %v1262 = vmax.f32 %v1198, 0.0
    %v1263 = vmax.f32 %v1199, 0.0
    %v1264 = vmax.f32 %v1200, 0.0
    %v1265 = vmax.f32 %v1201, 0.0
    %v1266 = vmax.f32 %v1202, 0.0
    %v1267 = vmax.f32 %v1203, 0.0
    %v1268 = vmax.f32 %v1204, 0.0
    %v1269 = vmax.f32 %v1205, 0.0
    %v1270 = vmax.f32 %v1206, 0.0
    %v1271 = vmax.f32 %v1207, 0.0
    %v1272 = vmax.f32 %v1208, 0.0
    %v1273 = vmax.f32 %v1209, 0.0
    %v1274 = vmax.f32 %v1210, 0.0
    %v1275 = vmax.f32 %v1211, 0.0
    %v1276 = vmax.f32 %v1212, 0.0
    %v1277 = vmax.f32 %v1213, 0.0
    %1278 = vst [vmem:[%s3] sm:$0xff] %v1214
    %1279 = vst [vmem:[%s3 + $0x8] sm:$0xff] %v1215
    %1280 = vst [vmem:[%s3 + $0x10] sm:$0xff] %v1216
    %1281 = vst [vmem:[%s3 + $0x18] sm:$0xff] %v1217
    %1282 = vst [vmem:[%s3 + $0x20] sm:$0xff] %v1218
    %1283 = vst [vmem:[%s3 + $0x28] sm:$0xff] %v1219
    %1284 = vst [vmem:[%s3 + $0x30] sm:$0xff] %v1220
    %1285 = vst [vmem:[%s3 + $0x38] sm:$0xff] %v1221
    %1286 = vst [vmem:[%s3 + $0x40] sm:$0xff] %v1222
    %1287 = vst [vmem:[%s3 + $0x48] sm:$0xff] %v1223
    %1288 = vst [vmem:[%s3 + $0x50] sm:$0xff] %v1224
    %1289 = vst [vmem:[%s3 + $0x58] sm:$0xff] %v1225
    %1290 = vst [vmem:[%s3 + $0x60] sm:$0xff] %v1226
    %1291 = vst [vmem:[%s3 + $0x68] sm:$0xff] %v1227
    %1292 = vst [vmem:[%s3 + $0x70] sm:$0xff] %v1228
    %1293 = vst [vmem:[%s3 + $0x78] sm:$0xff] %v1229
    %1294 = vst [vmem:[%s3 + $0x80] sm:$0xff] %v1230
    %1295 = vst [vmem:[%s3 + $0x88] sm:$0xff] %v1231
    %1296 = vst [vmem:[%s3 + $0x90] sm:$0xff] %v1232
    %1297 = vst [vmem:[%s3 + $0x98] sm:$0xff] %v1233
    %1298 = vst [vmem:[%s3 + $0xa0] sm:$0xff] %v1234
    %1299 = vst [vmem:[%s3 + $0xa8] sm:$0xff] %v1235
    %1300 = vst [vmem:[%s3 + $0xb0] sm:$0xff] %v1236
    %1301 = vst [vmem:[%s3 + $0xb8] sm:$0xff] %v1237
    %1302 = vst [vmem:[%s3 + $0xc0] sm:$0xff] %v1238
    %1303 = vst [vmem:[%s3 + $0xc8] sm:$0xff] %v1239
    %1304 = vst [vmem:[%s3 + $0xd0] sm:$0xff] %v1240
    %1305 = vst [vmem:[%s3 + $0xd8] sm:$0xff] %v1241
    %1306 = vst [vmem:[%s3 + $0xe0] sm:$0xff] %v1242
    %1307 = vst [vmem:[%s3 + $0xe8] sm:$0xff] %v1243
    %1308 = vst [vmem:[%s3 + $0xf0] sm:$0xff] %v1244
    %1309 = vst [vmem:[%s3 + $0xf8] sm:$0xff] %v1245
    %1310 = vst [vmem:[%s3 + $0x100] sm:$0xff] %v1246
    %1311 = vst [vmem:[%s3 + $0x108] sm:$0xff] %v1247
    %1312 = vst [vmem:[%s3 + $0x110] sm:$0xff] %v1248
    %1313 = vst [vmem:[%s3 + $0x118] sm:$0xff] %v1249
    %1314 = vst [vmem:[%s3 + $0x120] sm:$0xff] %v1250
    %1315 = vst [vmem:[%s3 + $0x128] sm:$0xff] %v1251
    %1316 = vst [vmem:[%s3 + $0x130] sm:$0xff] %v1252
    %1317 = vst [vmem:[%s3 + $0x138] sm:$0xff] %v1253
    %1318 = vst [vmem:[%s3 + $0x140] sm:$0xff] %v1254
    %1319 = vst [vmem:[%s3 + $0x148] sm:$0xff] %v1255
    %1320 = vst [vmem:[%s3 + $0x150] sm:$0xff] %v1256
    %1321 = vst [vmem:[%s3 + $0x158] sm:$0xff] %v1257
    %1322 = vst [vmem:[%s3 + $0x160] sm:$0xff] %v1258
    %1323 = vst [vmem:[%s3 + $0x168] sm:$0xff] %v1259
    %1324 = vst [vmem:[%s3 + $0x170] sm:$0xff] %v1260
    %1325 = vst [vmem:[%s3 + $0x178] sm:$0xff] %v1261
    %1326 = vst [vmem:[%s3 + $0x180] sm:$0xff] %v1262
    %1327 = vst [vmem:[%s3 + $0x188] sm:$0xff] %v1263
    %1328 = vst [vmem:[%s3 + $0x190] sm:$0xff] %v1264
    %1329 = vst [vmem:[%s3 + $0x198] sm:$0xff] %v1265
    %1330 = vst [vmem:[%s3 + $0x1a0] sm:$0xff] %v1266
    %1331 = vst [vmem:[%s3 + $0x1a8] sm:$0xff] %v1267
    %1332 = vst [vmem:[%s3 + $0x1b0] sm:$0xff] %v1268
    %1333 = vst [vmem:[%s3 + $0x1b8] sm:$0xff] %v1269
    %1334 = vst [vmem:[%s3 + $0x1c0] sm:$0xff] %v1270
    %1335 = vst [vmem:[%s3 + $0x1c8] sm:$0xff] %v1271
    %1336 = vst [vmem:[%s3 + $0x1d0] sm:$0xff] %v1272
    %1337 = vst [vmem:[%s3 + $0x1d8] sm:$0xff] %v1273
    %1338 = vst [vmem:[%s3 + $0x1e0] sm:$0xff] %v1274
    %1339 = vst [vmem:[%s3 + $0x1e8] sm:$0xff] %v1275
    %1340 = vst [vmem:[%s3 + $0x1f0] sm:$0xff] %v1276
    %1341 = vst [vmem:[%s3 + $0x1f8] sm:$0xff] %v1277
  $region21: #{forward.4} parent=0 // pred_fallthru
    _
  // Predicated region
  $region22: #{forward.4} parent=0 // pred_check
    _
  $region23: #{forward.4} parent=0 // pred_check_branch
    %1343 = sbr.rel (0) target = $region25
  $region24: #{forward.4} parent=0 // pred_region
    _
  $region25: #{forward.4} parent=0 // pred_fallthru
    _
  // Predicated region
  $region26: #{forward.4} parent=0 // pred_check
    _
  $region27: #{forward.4} parent=0 // pred_check_branch
    %1345 = sbr.rel (0) target = $region29
  $region28: #{forward.4} parent=0 // pred_region
    _
  $region29: #{forward.4} parent=0 // pred_fallthru
    _

// kernel: forward.7
$region0: #{forward.7}
  #allocation0 [shape = 'u32[]', space=smem, size = 0x4, offset = 0x4, fixed_abs, tag = 'smem constant byte address 0x4 - core index']
  #allocation1 [shape = 'u32[144,128]{1,0:T(1,128)}', space=vmem, size = 0x12000, scoped, tag = 'internal scratch']
  #allocation2 [shape = 'f32[8,128]{1,0:T(8,128)}', space=vmem, size = 0x1000, scoped, tag = 'scratch operand']
  %s0 = inlined_call_operand.vmem [shape: bf16[8,4096], index: 0, kind: input, shape index: {}]
  %s1 = inlined_call_operand.vmem [shape: bf16[4096,128], index: 1, kind: input, shape index: {}]
  %s2 = inlined_call_operand.vmem [shape: f32[1,128], index: 2, kind: input, shape index: {}]
  %s3 = inlined_call_operand.hbm [shape: f32[8,128], index: 3, kind: output, shape index: {}]
  %s4 = sld [smem:[#allocation0]]
  $region53: #{forward.7} parent=0
    _
  %s6 = ssub.s32 1, %s4
  %s7 = scalar_select 0, %s6, %s4
  $region1: #{forward.7} parent=0
    #allocation3 [shape = 'u8[4096]{0}', space=vmem, size = 0x1000, scoped, tag = 'output window, operand 0, single buffered']
    #allocation4 [shape = 's32[2]{0}', space=sflag, size = 0x8, scoped, tag = 'scoped memory for forward.7']
    %8 = vsyncpa [#allocation4], 0
    loop: start=0, step=1, limit=10
    $region2: #{forward.7} parent=1 // loop_pre_header
      _
    $region3: #{forward.7} parent=1 // loop_header
      %s10 = sphi 0, %s14
      %p11 = scmp.ge.s32.totalorder %s10, 10
      %s17 = sphi 0, %s29
      %s18 = sphi 0, %s25
      %s19 = sphi 0, %s17
      %s20 = sphi 0, %s18
      %s21 = sphi 0, %s19
      %s22 = sphi 0, %s20
      %s34 = sphi 0, %s36
      %s37 = sphi 0, %s34
      %s38 = sphi 0, %s37
      %s54 = sphi 0, %s38
      %s60 = sphi 0, %s62
      %s63 = sphi 0, %s60
      %s64 = sphi 0, %s63
      %s80 = sphi 0, %s64
      %s84 = sphi 0, %s84
      %s86 = sphi 0, %s84
      %s87 = sphi 0, %s86
      %s101 = sphi 0, %s87
      %s107 = sphi 0, %s109
      %s110 = sphi 0, %s107
      %s111 = sphi 0, %s110
      %s127 = sphi 0, %s111
    $region4: #{forward.7} parent=1 // loop_header_branch
      %13 = sbr.rel (%p11) target = $region8
    $region5: #{forward.7} parent=1 // loop_body
      %s15 = ssub.s32 %s10, 1
      %s16 = ssub.s32 %s10, 2
      %s23 = sadd.s32 1, %s18
      %p24 = scmp.ge.s32.totalorder %s23, 8
      %s25 = scalar_select %p24, 0, %s23
      %s26 = sadd.s32 1, %s17
      %s27 = scalar_select %p24, %s26, %s17
      %p28 = scmp.ge.s32.totalorder %s27, 1
      %s29 = scalar_select %p28, 0, %s27
      %s30 = ssub.s32 %s17, %s29
      %s31 = ssub.s32 %s18, %s25
      %s32 = sor.u32 %s30, %s31
      %p33 = scmp.eq.s32.totalorder %s32, 0
      %s35 = sadd.s32 %s34, 1
      %s36 = scalar_select %p33, %s34, %s35
      %p39 = pneg %p33
      %p40 = scmp.eq.s32.totalorder %s10, 7
      %p41 = por %p39, %p40
      %p42 = scmp.ne.s32.totalorder %s34, %s37
      %p43 = scmp.eq.s32.totalorder %s10, 0
      %p44 = por %p42, %p43
      %p45 = scmp.ne.s32.totalorder %s34, %s37
      %p46 = scmp.eq.s32.totalorder %s15, 7
      %p47 = por %p45, %p46
      %p48 = scmp.ne.s32.totalorder %s37, %s38
      %p49 = scmp.eq.s32.totalorder %s15, 0
      %p50 = por %p48, %p49
      %p51 = scmp.ne.s32.totalorder %s37, %s38
      %p52 = scmp.eq.s32.totalorder %s16, 7
      %p53 = por %p51, %p52
      %p55 = scmp.ne.s32.totalorder %s38, %s54
      %p56 = scmp.eq.s32.totalorder %s16, 0
      %p57 = por %p55, %p56
      %s58 = ssub.s32 %s18, %s25
      %p59 = scmp.eq.s32.totalorder %s58, 0
      %s61 = sadd.s32 %s60, 1
      %s62 = scalar_select %p59, %s60, %s61
      %p65 = pneg %p59
      %p66 = scmp.eq.s32.totalorder %s10, 7
      %p67 = por %p65, %p66
      %p68 = scmp.ne.s32.totalorder %s60, %s63
      %p69 = scmp.eq.s32.totalorder %s10, 0
      %p70 = por %p68, %p69
      %p71 = scmp.ne.s32.totalorder %s60, %s63
      %p72 = scmp.eq.s32.totalorder %s15, 7
      %p73 = por %p71, %p72
      %p74 = scmp.ne.s32.totalorder %s63, %s64
      %p75 = scmp.eq.s32.totalorder %s15, 0
      %p76 = por %p74, %p75
      %p77 = scmp.ne.s32.totalorder %s63, %s64
      %p78 = scmp.eq.s32.totalorder %s16, 7
      %p79 = por %p77, %p78
      %p81 = scmp.ne.s32.totalorder %s64, %s80
      %p82 = scmp.eq.s32.totalorder %s16, 0
      %p83 = por %p81, %p82
      %s85 = sadd.s32 %s84, 1
      %p88 = scmp.eq.s32.totalorder %s10, 7
      %p89 = scmp.ne.s32.totalorder %s84, %s86
      %p90 = scmp.eq.s32.totalorder %s10, 0
      %p91 = por %p89, %p90
      %p92 = scmp.ne.s32.totalorder %s84, %s86
      %p93 = scmp.eq.s32.totalorder %s15, 7
      %p94 = por %p92, %p93
      %p95 = scmp.ne.s32.totalorder %s86, %s87
      %p96 = scmp.eq.s32.totalorder %s15, 0
      %p97 = por %p95, %p96
      %p98 = scmp.ne.s32.totalorder %s86, %s87
      %p99 = scmp.eq.s32.totalorder %s16, 7
      %p100 = por %p98, %p99
      %p102 = scmp.ne.s32.totalorder %s87, %s101
      %p103 = scmp.eq.s32.totalorder %s16, 0
      %p104 = por %p102, %p103
      %s105 = ssub.s32 %s17, %s29
      %p106 = scmp.eq.s32.totalorder %s105, 0
      %s108 = sadd.s32 %s107, 1
      %s109 = scalar_select %p106, %s107, %s108
      %p112 = pneg %p106
      %p113 = scmp.eq.s32.totalorder %s10, 7
      %p114 = por %p112, %p113
      %p115 = scmp.ne.s32.totalorder %s107, %s110
      %p116 = scmp.eq.s32.totalorder %s10, 0
      %p117 = por %p115, %p116
      %p118 = scmp.ne.s32.totalorder %s107, %s110
      %p119 = scmp.eq.s32.totalorder %s15, 7
      %p120 = por %p118, %p119
      %p121 = scmp.ne.s32.totalorder %s110, %s111
      %p122 = scmp.eq.s32.totalorder %s15, 0
      %p123 = por %p121, %p122
      %p124 = scmp.ne.s32.totalorder %s110, %s111
      %p125 = scmp.eq.s32.totalorder %s16, 7
      %p126 = por %p124, %p125
      %p128 = scmp.ne.s32.totalorder %s111, %s127
      %p129 = scmp.eq.s32.totalorder %s16, 0
      %p130 = por %p128, %p129
      %p131 = scmp.le.s32.totalorder 1, %s10
      %p132 = scmp.lt.s32.totalorder %s10, 9
      %p133 = pnand %p131, %p132
      %p134 = pneg %p133
      // Predicated region
      $region9: #{forward.7} parent=5 // pred_check
        _
      $region10: #{forward.7} parent=5 // pred_check_branch
        %136 = sbr.rel (%p133) target = $region12
      $region11: #{forward.7} parent=5 // pred_region
        %s137 = ssub.s32 %s10, 1
        // Predicated region
        $region13: #{forward.7} parent=11 // pred_check
          %p138 = pneg %p97
        $region14: #{forward.7} parent=11 // pred_check_branch
          %140 = sbr.rel (%p138) target = $region16
        $region15: #{forward.7} parent=11 // pred_region
          _
        $region16: #{forward.7} parent=11 // pred_fallthru
          _
      $region12: #{forward.7} parent=5 // pred_fallthru
        _
      %p141 = scmp.lt.s32.totalorder %s10, 8
      // Predicated region
      $region17: #{forward.7} parent=5 // pred_check
        %p142 = pneg %p141
      $region18: #{forward.7} parent=5 // pred_check_branch
        %144 = sbr.rel (%p142) target = $region20
      $region19: #{forward.7} parent=5 // pred_region
        // Predicated region
        $region21: #{forward.7} parent=19 // pred_check
          %p145 = pneg %p44
        $region22: #{forward.7} parent=19 // pred_check_branch
          %147 = sbr.rel (%p145) target = $region24
        $region23: #{forward.7} parent=19 // pred_region
          %s148 = smul.u32 4, %s18
          %p149 = scmp.lt.s32.totalorder %s17, 0
          %s150 = scalar_select %p149, %s17, 0
          %p151 = scmp.lt.s32.totalorder %s148, 31
          %s152 = scalar_select %p151, %s148, 31
          %s153 = smul.addr %s150, 32
          %s154 = sadd.s32 %s152, %s153
          %s155 = smul.addr %s154, 4
          %s156 = scalar_lea.vmem %s0, %s155
          %s157 = smul.u32 4, %s18
        $region24: #{forward.7} parent=19 // pred_fallthru
          _
        // Predicated region
        $region25: #{forward.7} parent=19 // pred_check
          %p158 = pneg %p70
        $region26: #{forward.7} parent=19 // pred_check_branch
          %160 = sbr.rel (%p158) target = $region28
        $region27: #{forward.7} parent=19 // pred_region
          %s161 = smul.u32 64, %s18
          %p162 = scmp.lt.s32.totalorder %s161, 511
          %s163 = scalar_select %p162, %s161, 511
          %s164 = smul.addr %s163, 4
          %s165 = scalar_lea.vmem %s1, %s164
          %s166 = smul.u32 64, %s18
        $region28: #{forward.7} parent=19 // pred_fallthru
          _
      $region20: #{forward.7} parent=5 // pred_fallthru
        _
      %p167 = scmp.le.s32.totalorder 1, %s10
      %p168 = scmp.lt.s32.totalorder %s10, 9
      %p169 = pnand %p167, %p168
      %p170 = pneg %p169
      // Predicated region
      $region29: #{forward.7} parent=5 // pred_check
        _
      $region30: #{forward.7} parent=5 // pred_check_branch
        %172 = sbr.rel (%p169) target = $region32
      $region31: #{forward.7} parent=5 // pred_region
        %s173 = ssub.s32 %s10, 1
        %s174 = smul.u32 4, %s20
        %p175 = scmp.lt.s32.totalorder %s19, 0
        %s176 = scalar_select %p175, %s19, 0
        %p177 = scmp.lt.s32.totalorder %s174, 31
        %s178 = scalar_select %p177, %s174, 31
        %s179 = smul.addr %s176, 32
        %s180 = sadd.s32 %s178, %s179
        %s181 = smul.addr %s180, 4
        %s182 = scalar_lea.vmem %s0, %s181
        %p183 = pneg %p50
        %p184 = pneg %p47
        %s185 = smul.u32 64, %s20
        %p186 = scmp.lt.s32.totalorder %s185, 511
        %s187 = scalar_select %p186, %s185, 511
        %s188 = smul.addr %s187, 4
        %s189 = scalar_lea.vmem %s1, %s188
        %p190 = pneg %p76
        %p191 = pneg %p73
        %p192 = pneg %p97
        %p193 = pneg %p94
        %p194 = pneg %p123
        %p195 = pneg %p120
        %s196 = smul.u32 4, %s20
        %p197 = scmp.lt.s32.totalorder %s19, 0
        %s198 = scalar_select %p197, %s19, 0
        %p199 = scmp.lt.s32.totalorder %s196, 31
        %s200 = scalar_select %p199, %s196, 31
        %s201 = smul.addr %s198, 32
        %s202 = sadd.s32 %s200, %s201
        %s203 = smul.addr %s202, 4
        %s204 = scalar_lea.vmem %s0, %s203
        %s205 = smul.u32 4, %s20
        %s206 = smul.u32 64, %s20
        %p207 = scmp.lt.s32.totalorder %s206, 511
        %s208 = scalar_select %p207, %s206, 511
        %s209 = smul.addr %s208, 4
        %s210 = scalar_lea.vmem %s1, %s209
        %s211 = smul.u32 64, %s20
        %p213 = scmp.eq.s32.totalorder %s20, 0
        // Predicated region
        $region33: #{forward.7} parent=31 // pred_check
          %p214 = pneg %p213
        $region34: #{forward.7} parent=31 // pred_check_branch
          %216 = sbr.rel (%p214) target = $region36
        $region35: #{forward.7} parent=31 // pred_region
          %217 = vst [vmem:[#allocation2] sm:$0xff] 0.0
        $region36: #{forward.7} parent=31 // pred_fallthru
          _
        %v218 = vld [vmem:[#allocation2] sm:$0xff]
        %v219 = vld [vmem:[%s204] sm:$0xff]
        %v220 = vld [vmem:[%s204 + $0x8] sm:$0xff]
        %v221 = vld [vmem:[%s210] sm:$0xf]
        %v222 = vld [vmem:[%s210 + $0x4] sm:$0xf]
        %v223 = vld [vmem:[%s210 + $0x8] sm:$0xf]
        %v224 = vld [vmem:[%s210 + $0xc] sm:$0xf]
        %v225 = vld [vmem:[%s210 + $0x10] sm:$0xf]
        %v226 = vld [vmem:[%s210 + $0x14] sm:$0xf]
        %v227 = vld [vmem:[%s210 + $0x18] sm:$0xf]
        %v228 = vld [vmem:[%s210 + $0x1c] sm:$0xf]
        %v229 = vld [vmem:[%s210 + $0x20] sm:$0xf]
        %v230 = vld [vmem:[%s210 + $0x24] sm:$0xf]
        %v231 = vld [vmem:[%s210 + $0x28] sm:$0xf]
        %v232 = vld [vmem:[%s210 + $0x2c] sm:$0xf]
        %v233 = vld [vmem:[%s210 + $0x30] sm:$0xf]
        %v234 = vld [vmem:[%s210 + $0x34] sm:$0xf]
        %v235 = vld [vmem:[%s210 + $0x38] sm:$0xf]
        %v236 = vld [vmem:[%s210 + $0x3c] sm:$0xf]
        %v237 = vld [vmem:[%s210 + $0x40] sm:$0xf]
        %v238 = vld [vmem:[%s210 + $0x44] sm:$0xf]
        %v239 = vld [vmem:[%s210 + $0x48] sm:$0xf]
        %v240 = vld [vmem:[%s210 + $0x4c] sm:$0xf]
        %v241 = vld [vmem:[%s210 + $0x50] sm:$0xf]
        %v242 = vld [vmem:[%s210 + $0x54] sm:$0xf]
        %v243 = vld [vmem:[%s210 + $0x58] sm:$0xf]
        %v244 = vld [vmem:[%s210 + $0x5c] sm:$0xf]
        %v245 = vld [vmem:[%s210 + $0x60] sm:$0xf]
        %v246 = vld [vmem:[%s210 + $0x64] sm:$0xf]
        %v247 = vld [vmem:[%s210 + $0x68] sm:$0xf]
        %v248 = vld [vmem:[%s210 + $0x6c] sm:$0xf]
        %v249 = vld [vmem:[%s210 + $0x70] sm:$0xf]
        %v250 = vld [vmem:[%s210 + $0x74] sm:$0xf]
        %v251 = vld [vmem:[%s210 + $0x78] sm:$0xf]
        %v252 = vld [vmem:[%s210 + $0x7c] sm:$0xf]
        %v253 = vld [vmem:[%s210 + $0x80] sm:$0xf]
        %v254 = vld [vmem:[%s210 + $0x84] sm:$0xf]
        %v255 = vld [vmem:[%s210 + $0x88] sm:$0xf]
        %v256 = vld [vmem:[%s210 + $0x8c] sm:$0xf]
        %v257 = vld [vmem:[%s210 + $0x90] sm:$0xf]
        %v258 = vld [vmem:[%s210 + $0x94] sm:$0xf]
        %v259 = vld [vmem:[%s210 + $0x98] sm:$0xf]
        %v260 = vld [vmem:[%s210 + $0x9c] sm:$0xf]
        %v261 = vld [vmem:[%s210 + $0xa0] sm:$0xf]
        %v262 = vld [vmem:[%s210 + $0xa4] sm:$0xf]
        %v263 = vld [vmem:[%s210 + $0xa8] sm:$0xf]
        %v264 = vld [vmem:[%s210 + $0xac] sm:$0xf]
        %v265 = vld [vmem:[%s210 + $0xb0] sm:$0xf]
        %v266 = vld [vmem:[%s210 + $0xb4] sm:$0xf]
        %v267 = vld [vmem:[%s210 + $0xb8] sm:$0xf]
        %v268 = vld [vmem:[%s210 + $0xbc] sm:$0xf]
        %v269 = vld [vmem:[%s210 + $0xc0] sm:$0xf]
        %v270 = vld [vmem:[%s210 + $0xc4] sm:$0xf]
        %v271 = vld [vmem:[%s210 + $0xc8] sm:$0xf]
        %v272 = vld [vmem:[%s210 + $0xcc] sm:$0xf]
        %v273 = vld [vmem:[%s210 + $0xd0] sm:$0xf]
        %v274 = vld [vmem:[%s210 + $0xd4] sm:$0xf]
        %v275 = vld [vmem:[%s210 + $0xd8] sm:$0xf]
        %v276 = vld [vmem:[%s210 + $0xdc] sm:$0xf]
        %v277 = vld [vmem:[%s210 + $0xe0] sm:$0xf]
        %v278 = vld [vmem:[%s210 + $0xe4] sm:$0xf]
        %v279 = vld [vmem:[%s210 + $0xe8] sm:$0xf]
        %v280 = vld [vmem:[%s210 + $0xec] sm:$0xf]
        %v281 = vld [vmem:[%s210 + $0xf0] sm:$0xf]
        %v282 = vld [vmem:[%s210 + $0xf4] sm:$0xf]
        %v283 = vld [vmem:[%s210 + $0xf8] sm:$0xf]
        %v284 = vld [vmem:[%s210 + $0xfc] sm:$0xf]
        %v287 = vunpack.c.l.b16 %v219
        %v288 = vunpack.c.h.b16 %v219
        %v289 = vunpack.c.l.b16 %v220
        %v290 = vunpack.c.h.b16 %v220
        %v291 = vpack.c.b16 %v287, %v287
        %v292 = vpack.c.b16 %v288, %v288
        %v293 = vpack.c.b16 %v289, %v289
        %v294 = vpack.c.b16 %v290, %v290
        %v363 = vunpack.c.l.b16 %v221
        %v364 = vunpack.c.l.b16 %v222
        %v365 = vunpack.c.l.b16 %v223
        %v366 = vunpack.c.l.b16 %v224
        %v367 = vunpack.c.l.b16 %v225
        %v368 = vunpack.c.l.b16 %v226
        %v369 = vunpack.c.l.b16 %v227
        %v370 = vunpack.c.l.b16 %v228
        %v371 = vunpack.c.l.b16 %v229
        %v372 = vunpack.c.l.b16 %v230
        %v373 = vunpack.c.l.b16 %v231
        %v374 = vunpack.c.l.b16 %v232
        %v375 = vunpack.c.l.b16 %v233
        %v376 = vunpack.c.l.b16 %v234
        %v377 = vunpack.c.l.b16 %v235
        %v378 = vunpack.c.l.b16 %v236
        %v379 = vunpack.c.l.b16 %v237
        %v380 = vunpack.c.l.b16 %v238
        %v381 = vunpack.c.l.b16 %v239
        %v382 = vunpack.c.l.b16 %v240
        %v383 = vunpack.c.l.b16 %v241
        %v384 = vunpack.c.l.b16 %v242
        %v385 = vunpack.c.l.b16 %v243
        %v386 = vunpack.c.l.b16 %v244
        %v387 = vunpack.c.l.b16 %v245
        %v388 = vunpack.c.l.b16 %v246
        %v389 = vunpack.c.l.b16 %v247
        %v390 = vunpack.c.l.b16 %v248
        %v391 = vunpack.c.l.b16 %v249
        %v392 = vunpack.c.l.b16 %v250
        %v393 = vunpack.c.l.b16 %v251
        %v394 = vunpack.c.l.b16 %v252
        %v395 = vunpack.c.l.b16 %v253
        %v396 = vunpack.c.l.b16 %v254
        %v397 = vunpack.c.l.b16 %v255
        %v398 = vunpack.c.l.b16 %v256
        %v399 = vunpack.c.l.b16 %v257
        %v400 = vunpack.c.l.b16 %v258
        %v401 = vunpack.c.l.b16 %v259
        %v402 = vunpack.c.l.b16 %v260
        %v403 = vunpack.c.l.b16 %v261
        %v404 = vunpack.c.l.b16 %v262
        %v405 = vunpack.c.l.b16 %v263
        %v406 = vunpack.c.l.b16 %v264
        %v407 = vunpack.c.l.b16 %v265
        %v408 = vunpack.c.l.b16 %v266
        %v409 = vunpack.c.l.b16 %v267
        %v410 = vunpack.c.l.b16 %v268
        %v411 = vunpack.c.l.b16 %v269
        %v412 = vunpack.c.l.b16 %v270
        %v413 = vunpack.c.l.b16 %v271
        %v414 = vunpack.c.l.b16 %v272
        %v415 = vunpack.c.l.b16 %v273
        %v416 = vunpack.c.l.b16 %v274
        %v417 = vunpack.c.l.b16 %v275
        %v418 = vunpack.c.l.b16 %v276
        %v419 = vunpack.c.l.b16 %v277
        %v420 = vunpack.c.l.b16 %v278
        %v421 = vunpack.c.l.b16 %v279
        %v422 = vunpack.c.l.b16 %v280
        %v423 = vunpack.c.l.b16 %v281
        %v424 = vunpack.c.l.b16 %v282
        %v425 = vunpack.c.l.b16 %v283
        %v426 = vunpack.c.l.b16 %v284
        %v427 = vpack.c.b16 %v364, %v363
        %v428 = vpack.c.b16 %v366, %v365
        %v429 = vpack.c.b16 %v368, %v367
        %v430 = vpack.c.b16 %v370, %v369
        %v431 = vpack.c.b16 %v372, %v371
        %v432 = vpack.c.b16 %v374, %v373
        %v433 = vpack.c.b16 %v376, %v375
        %v434 = vpack.c.b16 %v378, %v377
        %v435 = vpack.c.b16 %v380, %v379
        %v436 = vpack.c.b16 %v382, %v381
        %v437 = vpack.c.b16 %v384, %v383
        %v438 = vpack.c.b16 %v386, %v385
        %v439 = vpack.c.b16 %v388, %v387
        %v440 = vpack.c.b16 %v390, %v389
        %v441 = vpack.c.b16 %v392, %v391
        %v442 = vpack.c.b16 %v394, %v393
        %v443 = vpack.c.b16 %v396, %v395
        %v444 = vpack.c.b16 %v398, %v397
        %v445 = vpack.c.b16 %v400, %v399
        %v446 = vpack.c.b16 %v402, %v401
        %v447 = vpack.c.b16 %v404, %v403
        %v448 = vpack.c.b16 %v406, %v405
        %v449 = vpack.c.b16 %v408, %v407
        %v450 = vpack.c.b16 %v410, %v409
        %v451 = vpack.c.b16 %v412, %v411
        %v452 = vpack.c.b16 %v414, %v413
        %v453 = vpack.c.b16 %v416, %v415
        %v454 = vpack.c.b16 %v418, %v417
        %v455 = vpack.c.b16 %v420, %v419
        %v456 = vpack.c.b16 %v422, %v421
        %v457 = vpack.c.b16 %v424, %v423
        %v458 = vpack.c.b16 %v426, %v425
        %491 = vmatprep.subr.bf16.mxu0 0
        %492 = vmatpush1.bf16.msra.mxu0 %v427
        %493 = vmatprep.subr.bf16.mxu0 0
        %494 = vmatpush1.bf16.msra.mxu0 %v428
        %495 = vmatprep.subr.bf16.mxu0 0
        %496 = vmatpush1.bf16.msra.mxu0 %v429
        %497 = vmatprep.subr.bf16.mxu0 0
        %498 = vmatpush1.bf16.msra.mxu0 %v430
        %499 = vmatprep.subr.bf16.mxu0 0
        %500 = vmatpush1.bf16.msra.mxu0 %v431
        %501 = vmatprep.subr.bf16.mxu0 0
        %502 = vmatpush1.bf16.msra.mxu0 %v432
        %503 = vmatprep.subr.bf16.mxu0 0
        %504 = vmatpush1.bf16.msra.mxu0 %v433
        %505 = vmatprep.subr.bf16.mxu0 0
        %506 = vmatpush1.bf16.msra.mxu0 %v434
        %507 = vmatprep.subr.bf16.mxu0 0
        %508 = vmatpush1.bf16.msra.mxu0 %v435
        %509 = vmatprep.subr.bf16.mxu0 0
        %510 = vmatpush1.bf16.msra.mxu0 %v436
        %511 = vmatprep.subr.bf16.mxu0 0
        %512 = vmatpush1.bf16.msra.mxu0 %v437
        %513 = vmatprep.subr.bf16.mxu0 0
        %514 = vmatpush1.bf16.msra.mxu0 %v438
        %515 = vmatprep.subr.bf16.mxu0 0
        %516 = vmatpush1.bf16.msra.mxu0 %v439
        %517 = vmatprep.subr.bf16.mxu0 0
        %518 = vmatpush1.bf16.msra.mxu0 %v440
        %519 = vmatprep.subr.bf16.mxu0 0
        %520 = vmatpush1.bf16.msra.mxu0 %v441
        %521 = vmatprep.subr.bf16.mxu0 0
        %522 = vmatpush1.bf16.msra.mxu0 %v442
        %523 = vmatprep.mubr.bf16.mxu0 %v292
        %524 = vmatmul.mubr.bf16.gmra.mrb[0].mxu0 %v291
        %v525 = vpop.f32.mrb[0].mxu0
        %v526 = vadd.f32 0.0, %v525
        %v527 = vpop.f32.mrb[0].mxu0
        %v528 = vpop.f32.mrb[0].mxu0
        %v529 = vpop.f32.mrb[0].mxu0
        %530 = vdwg.mxu0
        %531 = vmatprep.subr.bf16.mxu0 0
        %532 = vmatpush1.bf16.msra.mxu0 %v443
        %533 = vmatprep.subr.bf16.mxu0 0
        %534 = vmatpush1.bf16.msra.mxu0 %v444
        %535 = vmatprep.subr.bf16.mxu0 0
        %536 = vmatpush1.bf16.msra.mxu0 %v445
        %537 = vmatprep.subr.bf16.mxu0 0
        %538 = vmatpush1.bf16.msra.mxu0 %v446
        %539 = vmatprep.subr.bf16.mxu0 0
        %540 = vmatpush1.bf16.msra.mxu0 %v447
        %541 = vmatprep.subr.bf16.mxu0 0
        %542 = vmatpush1.bf16.msra.mxu0 %v448
        %543 = vmatprep.subr.bf16.mxu0 0
        %544 = vmatpush1.bf16.msra.mxu0 %v449
        %545 = vmatprep.subr.bf16.mxu0 0
        %546 = vmatpush1.bf16.msra.mxu0 %v450
        %547 = vmatprep.subr.bf16.mxu0 0
        %548 = vmatpush1.bf16.msra.mxu0 %v451
        %549 = vmatprep.subr.bf16.mxu0 0
        %550 = vmatpush1.bf16.msra.mxu0 %v452
        %551 = vmatprep.subr.bf16.mxu0 0
        %552 = vmatpush1.bf16.msra.mxu0 %v453
        %553 = vmatprep.subr.bf16.mxu0 0
        %554 = vmatpush1.bf16.msra.mxu0 %v454
        %555 = vmatprep.subr.bf16.mxu0 0
        %556 = vmatpush1.bf16.msra.mxu0 %v455
        %557 = vmatprep.subr.bf16.mxu0 0
        %558 = vmatpush1.bf16.msra.mxu0 %v456
        %559 = vmatprep.subr.bf16.mxu0 0
        %560 = vmatpush1.bf16.msra.mxu0 %v457
        %561 = vmatprep.subr.bf16.mxu0 0
        %562 = vmatpush1.bf16.msra.mxu0 %v458
        %563 = vmatprep.mubr.bf16.mxu0 %v294
        %564 = vmatmul.mubr.bf16.gmra.mrb[0].mxu0 %v293
        %v565 = vpop.f32.mrb[0].mxu0
        %v566 = vadd.f32 %v526, %v565
        %v567 = vpop.f32.mrb[0].mxu0
        %v568 = vpop.f32.mrb[0].mxu0
        %v569 = vpop.f32.mrb[0].mxu0
        %570 = vdwg.mxu0
        %v571 = vadd.f32 %v218, %v566
        %572 = vst [vmem:[#allocation2] sm:$0xff] %v571
        %p573 = scmp.eq.s32.totalorder %s20, 7
        // Predicated region
        $region37: #{forward.7} parent=31 // pred_check
          %p574 = pneg %p573
        $region38: #{forward.7} parent=31 // pred_check_branch
          %576 = sbr.rel (%p574) target = $region40
        $region39: #{forward.7} parent=31 // pred_region
          %v577 = vld [vmem:[#allocation2] sm:$0xff]
          %v578 = vld [vmem:[%s2] sm:$0x1]
          %v580 = vlaneseq
          %v581 = vshrl.u32 %v580, 7
          %v582 = vsub.s32 0, %v581
          %v583 = vrot.slane %v578, %v582
          %v585 = vadd.f32 %v577, %v583
          %586 = vst [vmem:[#allocation3] sm:$0xff] %v585
        $region40: #{forward.7} parent=31 // pred_fallthru
          _
        // Predicated region
        $region41: #{forward.7} parent=31 // pred_check
          %p587 = pneg %p120
        $region42: #{forward.7} parent=31 // pred_check_branch
          %589 = sbr.rel (%p587) target = $region44
        $region43: #{forward.7} parent=31 // pred_region
          %s591 = ssub.s32 128, 128
          %592 = vsyncadd [#allocation4], %s591
          %s593 = smul.addr %s19, 128
          %s594 = scalar_lea.hbm %s3, %s593
          %s596 = sshll.u32 [#allocation3], 4
          %s597 = int_to_ptr.vmem [resolvable:$true] %s596
          %599 = dma.vmem_to_hbm [thread:$0]  %s597, 128, %s594, [#allocation4]
        $region44: #{forward.7} parent=31 // pred_fallthru
          _
        // Predicated region
        $region45: #{forward.7} parent=31 // pred_check
          %p600 = pneg %p120
        $region46: #{forward.7} parent=31 // pred_check_branch
          %602 = sbr.rel (%p600) target = $region48
        $region47: #{forward.7} parent=31 // pred_region
          %603 = dma.done [#allocation4], 128
        $region48: #{forward.7} parent=31 // pred_fallthru
          _
      $region32: #{forward.7} parent=5 // pred_fallthru
        _
      %p604 = scmp.le.s32.totalorder 2, %s10
      // Predicated region
      $region49: #{forward.7} parent=5 // pred_check
        %p605 = pneg %p604
      $region50: #{forward.7} parent=5 // pred_check_branch
        %607 = sbr.rel (%p605) target = $region52
      $region51: #{forward.7} parent=5 // pred_region
        %s608 = ssub.s32 %s10, 2
      $region52: #{forward.7} parent=5 // pred_fallthru
        _
    $region6: #{forward.7} parent=1 // loop_footer
      %s14 = sadd.s32 1, %s10
    $region7: #{forward.7} parent=1 // loop_footer_branch
      %9 = sbr.rel target = $region3
    $region8: #{forward.7} parent=1 // loop_exit
      _
    %609 = vsyncpa [#allocation4], 1
    %s610 = scalar_lea.sflag [#allocation4], 1
    %611 = vsyncpa %s610, 1

// kernel: forward.5
$region0: #{forward.5}
  #allocation0 [shape = 'u32[]', space=smem, size = 0x4, offset = 0x4, fixed_abs, tag = 'smem constant byte address 0x4 - core index']
  #allocation1 [shape = 'u32[144,128]{1,0:T(1,128)}', space=vmem, size = 0x12000, scoped, tag = 'internal scratch']
  #allocation2 [shape = 'f32[256,128]{1,0:T(8,128)}', space=vmem, size = 0x20000, scoped, tag = 'scratch operand']
  %s0 = inlined_call_operand.vmem [shape: f32[2,18,18,64], index: 0, kind: input, shape index: {}]
  %s1 = inlined_call_operand.vmem [shape: bf16[9,64,128], index: 1, kind: input, shape index: {}]
  %s2 = inlined_call_operand.vmem [shape: f32[1,128], index: 2, kind: input, shape index: {}]
  %s3 = inlined_call_operand.vmem [shape: f32[2,256,128], index: 3, kind: output, shape index: {}]
  %s4 = sld [smem:[#allocation0]]
  $region45: #{forward.5} parent=0
    _
  %s6 = ssub.s32 1, %s4
  %s7 = scalar_select 0, %s6, %s4
  loop: start=0, step=1, limit=4
  $region2: #{forward.5} parent=0 // loop_pre_header
    _
  $region3: #{forward.5} parent=0 // loop_header
    %s9 = sphi 0, %s13
    %p10 = scmp.ge.s32.totalorder %s9, 4
    %s19 = sphi 0, %s21
    %s22 = sphi 0, %s19
    %s23 = sphi 0, %s22
    %s39 = sphi 0, %s23
    %s43 = sphi 0, %s43
    %s45 = sphi 0, %s43
    %s46 = sphi 0, %s45
    %s60 = sphi 0, %s46
    %s64 = sphi 0, %s64
    %s66 = sphi 0, %s64
    %s67 = sphi 0, %s66
    %s81 = sphi 0, %s67
    %s87 = sphi 0, %s89
    %s90 = sphi 0, %s87
    %s91 = sphi 0, %s90
    %s107 = sphi 0, %s91
  $region4: #{forward.5} parent=0 // loop_header_branch
    %12 = sbr.rel (%p10) target = $region8
  $region5: #{forward.5} parent=0 // loop_body
    %s14 = ssub.s32 %s9, 1
    %s15 = ssub.s32 %s9, 2
    %s16 = sadd.s32 %s9, 1
    %s17 = ssub.s32 %s9, %s16
    %p18 = scmp.eq.s32.totalorder %s17, 0
    %s20 = sadd.s32 %s19, 1
    %s21 = scalar_select %p18, %s19, %s20
    %p24 = pneg %p18
    %p25 = scmp.eq.s32.totalorder %s9, 1
    %p26 = por %p24, %p25
    %p27 = scmp.ne.s32.totalorder %s19, %s22
    %p28 = scmp.eq.s32.totalorder %s9, 0
    %p29 = por %p27, %p28
    %p30 = scmp.ne.s32.totalorder %s19, %s22
    %p31 = scmp.eq.s32.totalorder %s14, 1
    %p32 = por %p30, %p31
    %p33 = scmp.ne.s32.totalorder %s22, %s23
    %p34 = scmp.eq.s32.totalorder %s14, 0
    %p35 = por %p33, %p34
    %p36 = scmp.ne.s32.totalorder %s22, %s23
    %p37 = scmp.eq.s32.totalorder %s15, 1
    %p38 = por %p36, %p37
    %p40 = scmp.ne.s32.totalorder %s23, %s39
    %p41 = scmp.eq.s32.totalorder %s15, 0
    %p42 = por %p40, %p41
    %s44 = sadd.s32 %s43, 1
    %p47 = scmp.eq.s32.totalorder %s9, 1
    %p48 = scmp.ne.s32.totalorder %s43, %s45
    %p49 = scmp.eq.s32.totalorder %s9, 0
    %p50 = por %p48, %p49
    %p51 = scmp.ne.s32.totalorder %s43, %s45
    %p52 = scmp.eq.s32.totalorder %s14, 1
    %p53 = por %p51, %p52
    %p54 = scmp.ne.s32.totalorder %s45, %s46
    %p55 = scmp.eq.s32.totalorder %s14, 0
    %p56 = por %p54, %p55
    %p57 = scmp.ne.s32.totalorder %s45, %s46
    %p58 = scmp.eq.s32.totalorder %s15, 1
    %p59 = por %p57, %p58
    %p61 = scmp.ne.s32.totalorder %s46, %s60
    %p62 = scmp.eq.s32.totalorder %s15, 0
    %p63 = por %p61, %p62
    %s65 = sadd.s32 %s64, 1
    %p68 = scmp.eq.s32.totalorder %s9, 1
    %p69 = scmp.ne.s32.totalorder %s64, %s66
    %p70 = scmp.eq.s32.totalorder %s9, 0
    %p71 = por %p69, %p70
    %p72 = scmp.ne.s32.totalorder %s64, %s66
    %p73 = scmp.eq.s32.totalorder %s14, 1
    %p74 = por %p72, %p73
    %p75 = scmp.ne.s32.totalorder %s66, %s67
    %p76 = scmp.eq.s32.totalorder %s14, 0
    %p77 = por %p75, %p76
    %p78 = scmp.ne.s32.totalorder %s66, %s67
    %p79 = scmp.eq.s32.totalorder %s15, 1
    %p80 = por %p78, %p79
    %p82 = scmp.ne.s32.totalorder %s67, %s81
    %p83 = scmp.eq.s32.totalorder %s15, 0
    %p84 = por %p82, %p83
    %s85 = ssub.s32 %s9, %s16
    %p86 = scmp.eq.s32.totalorder %s85, 0
    %s88 = sadd.s32 %s87, 1
    %s89 = scalar_select %p86, %s87, %s88
    %p92 = pneg %p86
    %p93 = scmp.eq.s32.totalorder %s9, 1
    %p94 = por %p92, %p93
    %p95 = scmp.ne.s32.totalorder %s87, %s90
    %p96 = scmp.eq.s32.totalorder %s9, 0
    %p97 = por %p95, %p96
    %p98 = scmp.ne.s32.totalorder %s87, %s90
    %p99 = scmp.eq.s32.totalorder %s14, 1
    %p100 = por %p98, %p99
    %p101 = scmp.ne.s32.totalorder %s90, %s91
    %p102 = scmp.eq.s32.totalorder %s14, 0
    %p103 = por %p101, %p102
    %p104 = scmp.ne.s32.totalorder %s90, %s91
    %p105 = scmp.eq.s32.totalorder %s15, 1
    %p106 = por %p104, %p105
    %p108 = scmp.ne.s32.totalorder %s91, %s107
    %p109 = scmp.eq.s32.totalorder %s15, 0
    %p110 = por %p108, %p109
    %p111 = scmp.le.s32.totalorder 1, %s9
    %p112 = scmp.lt.s32.totalorder %s9, 3
    %p113 = pnand %p111, %p112
    %p114 = pneg %p113
    // Predicated region
    $region9: #{forward.5} parent=5 // pred_check
      _
    $region10: #{forward.5} parent=5 // pred_check_branch
      %116 = sbr.rel (%p113) target = $region12
    $region11: #{forward.5} parent=5 // pred_region
      %s117 = ssub.s32 %s9, 1
      // Predicated region
      $region13: #{forward.5} parent=11 // pred_check
        %p118 = pneg %p56
      $region14: #{forward.5} parent=11 // pred_check_branch
        %120 = sbr.rel (%p118) target = $region16
      $region15: #{forward.5} parent=11 // pred_region
        _
      $region16: #{forward.5} parent=11 // pred_fallthru
        _
      // Predicated region
      $region17: #{forward.5} parent=11 // pred_check
        %p121 = pneg %p77
      $region18: #{forward.5} parent=11 // pred_check_branch
        %123 = sbr.rel (%p121) target = $region20
      $region19: #{forward.5} parent=11 // pred_region
        _
      $region20: #{forward.5} parent=11 // pred_fallthru
        _
    $region12: #{forward.5} parent=5 // pred_fallthru
      _
    %p124 = scmp.lt.s32.totalorder %s9, 2
    // Predicated region
    $region21: #{forward.5} parent=5 // pred_check
      %p125 = pneg %p124
    $region22: #{forward.5} parent=5 // pred_check_branch
      %127 = sbr.rel (%p125) target = $region24
    $region23: #{forward.5} parent=5 // pred_region
      // Predicated region
      $region25: #{forward.5} parent=23 // pred_check
        %p128 = pneg %p29
      $region26: #{forward.5} parent=23 // pred_check_branch
        %130 = sbr.rel (%p128) target = $region28
      $region27: #{forward.5} parent=23 // pred_region
        %p131 = scmp.lt.s32.totalorder %s9, 1
        %s132 = scalar_select %p131, %s9, 1
        %s133 = smul.addr %s132, 54
        %s134 = smul.addr %s133, 8
        %s135 = scalar_lea.vmem %s0, %s134
      $region28: #{forward.5} parent=23 // pred_fallthru
        _
    $region24: #{forward.5} parent=5 // pred_fallthru
      _
    %p136 = scmp.le.s32.totalorder 1, %s9
    %p137 = scmp.lt.s32.totalorder %s9, 3
    %p138 = pnand %p136, %p137
    %p139 = pneg %p138
    // Predicated region
    $region29: #{forward.5} parent=5 // pred_check
      _
    $region30: #{forward.5} parent=5 // pred_check_branch
      %141 = sbr.rel (%p138) target = $region32
    $region31: #{forward.5} parent=5 // pred_region
      %s142 = ssub.s32 %s9, 1
      %p143 = scmp.lt.s32.totalorder %s14, 1
      %s144 = scalar_select %p143, %s14, 1
      %s145 = smul.addr %s144, 54
      %s146 = smul.addr %s145, 8
      %s147 = scalar_lea.vmem %s0, %s146
      %p148 = pneg %p35
      %p149 = pneg %p32
      %p150 = pneg %p56
      %p151 = pneg %p53
      %p152 = pneg %p77
      %p153 = pneg %p74
      %p154 = pneg %p103
      %p155 = pneg %p100
      %p156 = scmp.lt.s32.totalorder %s14, 1
      %s157 = scalar_select %p156, %s14, 1
      %s158 = smul.addr %s157, 32
      %s159 = smul.addr %s158, 8
      %s160 = scalar_lea.vmem %s3, %s159
      %p161 = scmp.lt.s32.totalorder %s14, 1
      %s162 = scalar_select %p161, %s14, 1
      %s163 = smul.addr %s162, 54
      %s164 = smul.addr %s163, 8
      %s165 = scalar_lea.vmem %s0, %s164
      %p166 = scmp.lt.s32.totalorder %s14, 1
      %s167 = scalar_select %p166, %s14, 1
      %s168 = smul.addr %s167, 32
      %s169 = smul.addr %s168, 8
      %s170 = scalar_lea.vmem %s3, %s169
      %172 = vst [vmem:[#allocation2] sm:$0xff] 0.0
      %173 = vst [vmem:[#allocation2 + $0x8] sm:$0xff] 0.0
      %174 = vst [vmem:[#allocation2 + $0x10] sm:$0xff] 0.0
      %175 = vst [vmem:[#allocation2 + $0x18] sm:$0xff] 0.0
      %176 = vst [vmem:[#allocation2 + $0x20] sm:$0xff] 0.0
      %177 = vst [vmem:[#allocation2 + $0x28] sm:$0xff] 0.0
      %178 = vst [vmem:[#allocation2 + $0x30] sm:$0xff] 0.0
      %179 = vst [vmem:[#allocation2 + $0x38] sm:$0xff] 0.0
      %180 = vst [vmem:[#allocation2 + $0x40] sm:$0xff] 0.0
      %181 = vst [vmem:[#allocation2 + $0x48] sm:$0xff] 0.0
      %182 = vst [vmem:[#allocation2 + $0x50] sm:$0xff] 0.0
      %183 = vst [vmem:[#allocation2 + $0x58] sm:$0xff] 0.0
      %184 = vst [vmem:[#allocation2 + $0x60] sm:$0xff] 0.0
      %185 = vst [vmem:[#allocation2 + $0x68] sm:$0xff] 0.0
      %186 = vst [vmem:[#allocation2 + $0x70] sm:$0xff] 0.0
      %187 = vst [vmem:[#allocation2 + $0x78] sm:$0xff] 0.0
      %188 = vst [vmem:[#allocation2 + $0x80] sm:$0xff] 0.0
      %189 = vst [vmem:[#allocation2 + $0x88] sm:$0xff] 0.0
      %190 = vst [vmem:[#allocation2 + $0x90] sm:$0xff] 0.0
      %191 = vst [vmem:[#allocation2 + $0x98] sm:$0xff] 0.0
      %192 = vst [vmem:[#allocation2 + $0xa0] sm:$0xff] 0.0
      %193 = vst [vmem:[#allocation2 + $0xa8] sm:$0xff] 0.0
      %194 = vst [vmem:[#allocation2 + $0xb0] sm:$0xff] 0.0
      %195 = vst [vmem:[#allocation2 + $0xb8] sm:$0xff] 0.0
      %196 = vst [vmem:[#allocation2 + $0xc0] sm:$0xff] 0.0
      %197 = vst [vmem:[#allocation2 + $0xc8] sm:$0xff] 0.0
      %198 = vst [vmem:[#allocation2 + $0xd0] sm:$0xff] 0.0
      %199 = vst [vmem:[#allocation2 + $0xd8] sm:$0xff] 0.0
      %200 = vst [vmem:[#allocation2 + $0xe0] sm:$0xff] 0.0
      %201 = vst [vmem:[#allocation2 + $0xe8] sm:$0xff] 0.0
      %202 = vst [vmem:[#allocation2 + $0xf0] sm:$0xff] 0.0
      %203 = vst [vmem:[#allocation2 + $0xf8] sm:$0xff] 0.0
      %v204 = vld [vmem:[%s165] sm:$0xff]
      %v205 = vld [vmem:[%s165 + $0x8] sm:$0xff]
      %v206 = vld [vmem:[%s165 + $0x18] sm:$0xff]
      %v207 = vld [vmem:[%s165 + $0x20] sm:$0xff]
      %v208 = vld [vmem:[%s165 + $0x30] sm:$0xff]
      %v209 = vld [vmem:[%s165 + $0x38] sm:$0xff]
      %v210 = vld [vmem:[%s165 + $0x48] sm:$0xff]
      %v211 = vld [vmem:[%s165 + $0x50] sm:$0xff]
      %v212 = vld [vmem:[%s165 + $0x60] sm:$0xff]
      %v213 = vld [vmem:[%s165 + $0x68] sm:$0xff]
      %v214 = vld [vmem:[%s165 + $0x78] sm:$0xff]
      %v215 = vld [vmem:[%s165 + $0x80] sm:$0xff]
      %v216 = vld [vmem:[%s165 + $0x90] sm:$0xff]
      %v217 = vld [vmem:[%s165 + $0x98] sm:$0xff]
      %v218 = vld [vmem:[%s165 + $0xa8] sm:$0xff]
      %v219 = vld [vmem:[%s165 + $0xb0] sm:$0xff]
      %v220 = vld [vmem:[%s165 + $0xc0] sm:$0xff]
      %v221 = vld [vmem:[%s165 + $0xc8] sm:$0xff]
      %v222 = vld [vmem:[%s165 + $0xd8] sm:$0xff]
      %v223 = vld [vmem:[%s165 + $0xe0] sm:$0xff]
      %v224 = vld [vmem:[%s165 + $0xf0] sm:$0xff]
      %v225 = vld [vmem:[%s165 + $0xf8] sm:$0xff]
      %v226 = vld [vmem:[%s165 + $0x108] sm:$0xff]
      %v227 = vld [vmem:[%s165 + $0x110] sm:$0xff]
      %v228 = vld [vmem:[%s165 + $0x120] sm:$0xff]
      %v229 = vld [vmem:[%s165 + $0x128] sm:$0xff]
      %v230 = vld [vmem:[%s165 + $0x138] sm:$0xff]
      %v231 = vld [vmem:[%s165 + $0x140] sm:$0xff]
      %v232 = vld [vmem:[%s165 + $0x150] sm:$0xff]
      %v233 = vld [vmem:[%s165 + $0x158] sm:$0xff]
      %v234 = vld [vmem:[%s165 + $0x168] sm:$0xff]
      %v235 = vld [vmem:[%s165 + $0x170] sm:$0xff]
      %v236 = vld [vmem:[#allocation2] sm:$0xff]
      %v237 = vld [vmem:[#allocation2 + $0x8] sm:$0xff]
      %v238 = vld [vmem:[#allocation2 + $0x10] sm:$0xff]
      %v239 = vld [vmem:[#allocation2 + $0x18] sm:$0xff]
      %v240 = vld [vmem:[#allocation2 + $0x20] sm:$0xff]
      %v241 = vld [vmem:[#allocation2 + $0x28] sm:$0xff]
      %v242 = vld [vmem:[#allocation2 + $0x30] sm:$0xff]
      %v243 = vld [vmem:[#allocation2 + $0x38] sm:$0xff]
      %v244 = vld [vmem:[#allocation2 + $0x40] sm:$0xff]
      %v245 = vld [vmem:[#allocation2 + $0x48] sm:$0xff]
      %v246 = vld [vmem:[#allocation2 + $0x50] sm:$0xff]
      %v247 = vld [vmem:[#allocation2 + $0x58] sm:$0xff]
      %v248 = vld [vmem:[#allocation2 + $0x60] sm:$0xff]
      %v249 = vld [vmem:[#allocation2 + $0x68] sm:$0xff]
      %v250 = vld [vmem:[#allocation2 + $0x70] sm:$0xff]
      %v251 = vld [vmem:[#allocation2 + $0x78] sm:$0xff]
      %v252 = vld [vmem:[#allocation2 + $0x80] sm:$0xff]
      %v253 = vld [vmem:[#allocation2 + $0x88] sm:$0xff]
      %v254 = vld [vmem:[#allocation2 + $0x90] sm:$0xff]
      %v255 = vld [vmem:[#allocation2 + $0x98] sm:$0xff]
      %v256 = vld [vmem:[#allocation2 + $0xa0] sm:$0xff]
      %v257 = vld [vmem:[#allocation2 + $0xa8] sm:$0xff]
      %v258 = vld [vmem:[#allocation2 + $0xb0] sm:$0xff]
      %v259 = vld [vmem:[#allocation2 + $0xb8] sm:$0xff]
      %v260 = vld [vmem:[#allocation2 + $0xc0] sm:$0xff]
      %v261 = vld [vmem:[#allocation2 + $0xc8] sm:$0xff]
      %v262 = vld [vmem:[#allocation2 + $0xd0] sm:$0xff]
      %v263 = vld [vmem:[#allocation2 + $0xd8] sm:$0xff]
      %v264 = vld [vmem:[#allocation2 + $0xe0] sm:$0xff]
      %v265 = vld [vmem:[#allocation2 + $0xe8] sm:$0xff]
      %v266 = vld [vmem:[#allocation2 + $0xf0] sm:$0xff]
      %v267 = vld [vmem:[#allocation2 + $0xf8] sm:$0xff]
      %v268 = vpack.c.bf16 %v205, %v204
      %v269 = vpack.c.bf16 %v207, %v206
      %v270 = vpack.c.bf16 %v209, %v208
      %v271 = vpack.c.bf16 %v211, %v210
      %v272 = vpack.c.bf16 %v213, %v212
      %v273 = vpack.c.bf16 %v215, %v214
      %v274 = vpack.c.bf16 %v217, %v216
      %v275 = vpack.c.bf16 %v219, %v218
      %v276 = vpack.c.bf16 %v221, %v220
      %v277 = vpack.c.bf16 %v223, %v222
      %v278 = vpack.c.bf16 %v225, %v224
      %v279 = vpack.c.bf16 %v227, %v226
      %v280 = vpack.c.bf16 %v229, %v228
      %v281 = vpack.c.bf16 %v231, %v230
      %v282 = vpack.c.bf16 %v233, %v232
      %v283 = vpack.c.bf16 %v235, %v234
      %v284 = vld [vmem:[%s1] sm:$0xf]
      %v285 = vld [vmem:[%s1 + $0x4] sm:$0xf]
      %v286 = vld [vmem:[%s1 + $0x8] sm:$0xf]
      %v287 = vld [vmem:[%s1 + $0xc] sm:$0xf]
      %v288 = vld [vmem:[%s1 + $0x10] sm:$0xf]
      %v289 = vld [vmem:[%s1 + $0x14] sm:$0xf]
      %v290 = vld [vmem:[%s1 + $0x18] sm:$0xf]
      %v291 = vld [vmem:[%s1 + $0x1c] sm:$0xf]
      %v300 = vunpack.c.l.b16 %v284
      %v301 = vunpack.c.l.b16 %v285
      %v302 = vunpack.c.l.b16 %v286
      %v303 = vunpack.c.l.b16 %v287
      %v304 = vunpack.c.l.b16 %v288
      %v305 = vunpack.c.l.b16 %v289
      %v306 = vunpack.c.l.b16 %v290
      %v307 = vunpack.c.l.b16 %v291
      %v308 = vpack.c.b16 %v301, %v300
      %v309 = vpack.c.b16 %v303, %v302
      %v310 = vpack.c.b16 %v305, %v304
      %v311 = vpack.c.b16 %v307, %v306
      %vm316 = vcmask 523264
      %v318 = vsel %vm316, %v268, 0
      %v321 = vsel %vm316, %v269, 0
      %v324 = vsel %vm316, %v270, 0
      %v327 = vsel %vm316, %v271, 0
      %v330 = vsel %vm316, %v272, 0
      %v333 = vsel %vm316, %v273, 0
      %v336 = vsel %vm316, %v274, 0
      %v339 = vsel %vm316, %v275, 0
      %v342 = vsel %vm316, %v276, 0
      %v345 = vsel %vm316, %v277, 0
      %v348 = vsel %vm316, %v278, 0
      %v351 = vsel %vm316, %v279, 0
      %v354 = vsel %vm316, %v280, 0
      %v357 = vsel %vm316, %v281, 0
      %v360 = vsel %vm316, %v282, 0
      %v363 = vsel %vm316, %v283, 0
      %365 = vmatprep.subr.bf16.mxu0 0
      %366 = vmatpush1.bf16.msra.mxu0 %v308
      %367 = vmatprep.subr.bf16.mxu0 0
      %368 = vmatpush1.bf16.msra.mxu0 %v309
      %369 = vmatprep.subr.bf16.mxu0 0
      %370 = vmatpush1.bf16.msra.mxu0 %v310
      %371 = vmatprep.subr.bf16.mxu0 0
      %372 = vmatpush1.bf16.msra.mxu0 %v311
      %373 = vmatprep.subr.bf16.mxu0 0
      %374 = vmatpush1.bf16.msra.mxu0 0
      %375 = vmatprep.subr.bf16.mxu0 0
      %376 = vmatpush1.bf16.msra.mxu0 0
      %377 = vmatprep.subr.bf16.mxu0 0
      %378 = vmatpush1.bf16.msra.mxu0 0
      %379 = vmatprep.subr.bf16.mxu0 0
      %380 = vmatpush1.bf16.msra.mxu0 0
      %381 = vmatprep.subr.bf16.mxu0 0
      %382 = vmatpush1.bf16.msra.mxu0 0
      %383 = vmatprep.subr.bf16.mxu0 0
      %384 = vmatpush1.bf16.msra.mxu0 0
      %385 = vmatprep.subr.bf16.mxu0 0
      %386 = vmatpush1.bf16.msra.mxu0 0
      %387 = vmatprep.subr.bf16.mxu0 0
      %388 = vmatpush1.bf16.msra.mxu0 0
      %389 = vmatprep.subr.bf16.mxu0 0
      %390 = vmatpush1.bf16.msra.mxu0 0
      %391 = vmatprep.subr.bf16.mxu0 0
      %392 = vmatpush1.bf16.msra.mxu0 0
      %393 = vmatprep.subr.bf16.mxu0 0
      %394 = vmatpush1.bf16.msra.mxu0 0
      %395 = vmatprep.subr.bf16.mxu0 0
      %396 = vmatpush1.bf16.msra.mxu0 0
      %397 = vmatprep.mubr.bf16.mxu0 0
      %398 = vmatmul.mubr.bf16.gmra.mrb[0].mxu0 %v318
      %v399 = vpop.f32.mrb[0].mxu0
      %v400 = vadd.f32 0.0, %v399
      %v401 = vpop.f32.mrb[0].mxu0
      %v402 = vpop.f32.mrb[0].mxu0
      %v403 = vadd.f32 0.0, %v402
      %v404 = vpop.f32.mrb[0].mxu0
      %405 = vmatprep.mubr.bf16.mxu0 0
      %406 = vmatmul.mubr.bf16.gmra.mrb[0].mxu0 %v321
      %v407 = vpop.f32.mrb[0].mxu0
      %v408 = vadd.f32 0.0, %v407
      %v409 = vpop.f32.mrb[0].mxu0
      %v410 = vpop.f32.mrb[0].mxu0
      %v411 = vadd.f32 0.0, %v410
      %v412 = vpop.f32.mrb[0].mxu0
      %413 = vmatprep.mubr.bf16.mxu0 0
      %414 = vmatmul.mubr.bf16.gmra.mrb[0].mxu0 %v324
      %v415 = vpop.f32.mrb[0].mxu0
      %v416 = vadd.f32 0.0, %v415
      %v417 = vpop.f32.mrb[0].mxu0
      %v418 = vpop.f32.mrb[0].mxu0
      %v419 = vadd.f32 0.0, %v418
      %v420 = vpop.f32.mrb[0].mxu0
      %421 = vmatprep.mubr.bf16.mxu0 0
      %422 = vmatmul.mubr.bf16.gmra.mrb[0].mxu0 %v327
      %v423 = vpop.f32.mrb[0].mxu0
      %v424 = vadd.f32 0.0, %v423
      %v425 = vpop.f32.mrb[0].mxu0
      %v426 = vpop.f32.mrb[0].mxu0
      %v427 = vadd.f32 0.0, %v426
      %v428 = vpop.f32.mrb[0].mxu0
      %429 = vmatprep.mubr.bf16.mxu0 0
      %430 = vmatmul.mubr.bf16.gmra.mrb[0].mxu0 %v330
      %v431 = vpop.f32.mrb[0].mxu0
      %v432 = vadd.f32 0.0, %v431
      %v433 = vpop.f32.mrb[0].mxu0
      %v434 = vpop.f32.mrb[0].mxu0
      %v435 = vadd.f32 0.0, %v434
      %v436 = vpop.f32.mrb[0].mxu0
      %437 = vmatprep.mubr.bf16.mxu0 0
      %438 = vmatmul.mubr.bf16.gmra.mrb[0].mxu0 %v333
      %v439 = vpop.f32.mrb[0].mxu0
      %v440 = vadd.f32 0.0, %v439
      %v441 = vpop.f32.mrb[0].mxu0
      %v442 = vpop.f32.mrb[0].mxu0
      %v443 = vadd.f32 0.0, %v442
      %v444 = vpop.f32.mrb[0].mxu0
      %445 = vmatprep.mubr.bf16.mxu0 0
      %446 = vmatmul.mubr.bf16.gmra.mrb[0].mxu0 %v336
      %v447 = vpop.f32.mrb[0].mxu0
      %v448 = vadd.f32 0.0, %v447
      %v449 = vpop.f32.mrb[0].mxu0
      %v450 = vpop.f32.mrb[0].mxu0
      %v451 = vadd.f32 0.0, %v450
      %v452 = vpop.f32.mrb[0].mxu0
      %453 = vmatprep.mubr.bf16.mxu0 0
      %454 = vmatmul.mubr.bf16.gmra.mrb[0].mxu0 %v339
      %v455 = vpop.f32.mrb[0].mxu0
      %v456 = vadd.f32 0.0, %v455
      %v457 = vpop.f32.mrb[0].mxu0
      %v458 = vpop.f32.mrb[0].mxu0
      %v459 = vadd.f32 0.0, %v458
      %v460 = vpop.f32.mrb[0].mxu0
      %461 = vmatprep.mubr.bf16.mxu0 0
      %462 = vmatmul.mubr.bf16.gmra.mrb[0].mxu0 %v342
      %v463 = vpop.f32.mrb[0].mxu0
      %v464 = vadd.f32 0.0, %v463
      %v465 = vpop.f32.mrb[0].mxu0
      %v466 = vpop.f32.mrb[0].mxu0
      %v467 = vadd.f32 0.0, %v466
      %v468 = vpop.f32.mrb[0].mxu0
      %469 = vmatprep.mubr.bf16.mxu0 0
      %470 = vmatmul.mubr.bf16.gmra.mrb[0].mxu0 %v345
      %v471 = vpop.f32.mrb[0].mxu0
      %v472 = vadd.f32 0.0, %v471
      %v473 = vpop.f32.mrb[0].mxu0
      %v474 = vpop.f32.mrb[0].mxu0
      %v475 = vadd.f32 0.0, %v474
      %v476 = vpop.f32.mrb[0].mxu0
      %477 = vmatprep.mubr.bf16.mxu0 0
      %478 = vmatmul.mubr.bf16.gmra.mrb[0].mxu0 %v348
      %v479 = vpop.f32.mrb[0].mxu0
      %v480 = vadd.f32 0.0, %v479
      %v481 = vpop.f32.mrb[0].mxu0
      %v482 = vpop.f32.mrb[0].mxu0
      %v483 = vadd.f32 0.0, %v482
      %v484 = vpop.f32.mrb[0].mxu0
      %485 = vmatprep.mubr.bf16.mxu0 0
      %486 = vmatmul.mubr.bf16.gmra.mrb[0].mxu0 %v351
      %v487 = vpop.f32.mrb[0].mxu0
      %v488 = vadd.f32 0.0, %v487
      %v489 = vpop.f32.mrb[0].mxu0
      %v490 = vpop.f32.mrb[0].mxu0
      %v491 = vadd.f32 0.0, %v490
      %v492 = vpop.f32.mrb[0].mxu0
      %493 = vmatprep.mubr.bf16.mxu0 0
      %494 = vmatmul.mubr.bf16.gmra.mrb[0].mxu0 %v354
      %v495 = vpop.f32.mrb[0].mxu0
      %v496 = vadd.f32 0.0, %v495
      %v497 = vpop.f32.mrb[0].mxu0
      %v498 = vpop.f32.mrb[0].mxu0
      %v499 = vadd.f32 0.0, %v498
      %v500 = vpop.f32.mrb[0].mxu0
      %501 = vmatprep.mubr.bf16.mxu0 0
      %502 = vmatmul.mubr.bf16.gmra.mrb[0].mxu0 %v357
      %v503 = vpop.f32.mrb[0].mxu0
      %v504 = vadd.f32 0.0, %v503
      %v505 = vpop.f32.mrb[0].mxu0
      %v506 = vpop.f32.mrb[0].mxu0
      %v507 = vadd.f32 0.0, %v506
      %v508 = vpop.f32.mrb[0].mxu0
      %509 = vmatprep.mubr.bf16.mxu0 0
      %510 = vmatmul.mubr.bf16.gmra.mrb[0].mxu0 %v360
      %v511 = vpop.f32.mrb[0].mxu0
      %v512 = vadd.f32 0.0, %v511
      %v513 = vpop.f32.mrb[0].mxu0
      %v514 = vpop.f32.mrb[0].mxu0
      %v515 = vadd.f32 0.0, %v514
      %v516 = vpop.f32.mrb[0].mxu0
      %517 = vmatprep.mubr.bf16.mxu0 0
      %518 = vmatmul.mubr.bf16.gmra.mrb[0].mxu0 %v363
      %v519 = vpop.f32.mrb[0].mxu0
      %v520 = vadd.f32 0.0, %v519
      %v521 = vpop.f32.mrb[0].mxu0
      %v522 = vpop.f32.mrb[0].mxu0
      %v523 = vadd.f32 0.0, %v522
      %v524 = vpop.f32.mrb[0].mxu0
      %525 = vdwg.mxu0
      %v526 = vadd.f32 %v236, %v400
      %v527 = vadd.f32 %v237, %v403
      %v528 = vadd.f32 %v238, %v408
      %v529 = vadd.f32 %v239, %v411
      %v530 = vadd.f32 %v240, %v416
      %v531 = vadd.f32 %v241, %v419
      %v532 = vadd.f32 %v242, %v424
      %v533 = vadd.f32 %v243, %v427
      %v534 = vadd.f32 %v244, %v432
      %v535 = vadd.f32 %v245, %v435
      %v536 = vadd.f32 %v246, %v440
      %v537 = vadd.f32 %v247, %v443
      %v538 = vadd.f32 %v248, %v448
      %v539 = vadd.f32 %v249, %v451
      %v540 = vadd.f32 %v250, %v456
      %v541 = vadd.f32 %v251, %v459
      %v542 = vadd.f32 %v252, %v464
      %v543 = vadd.f32 %v253, %v467
      %v544 = vadd.f32 %v254, %v472
      %v545 = vadd.f32 %v255, %v475
      %v546 = vadd.f32 %v256, %v480
      %v547 = vadd.f32 %v257, %v483
      %v548 = vadd.f32 %v258, %v488
      %v549 = vadd.f32 %v259, %v491
      %v550 = vadd.f32 %v260, %v496
      %v551 = vadd.f32 %v261, %v499
      %v552 = vadd.f32 %v262, %v504
      %v553 = vadd.f32 %v263, %v507
      %v554 = vadd.f32 %v264, %v512
      %v555 = vadd.f32 %v265, %v515
      %v556 = vadd.f32 %v266, %v520
      %v557 = vadd.f32 %v267, %v523
      %558 = vst [vmem:[#allocation2] sm:$0xff] %v526
      %559 = vst [vmem:[#allocation2 + $0x8] sm:$0xff] %v527
      %560 = vst [vmem:[#allocation2 + $0x10] sm:$0xff] %v528
      %561 = vst [vmem:[#allocation2 + $0x18] sm:$0xff] %v529
      %562 = vst [vmem:[#allocation2 + $0x20] sm:$0xff] %v530
      %563 = vst [vmem:[#allocation2 + $0x28] sm:$0xff] %v531
      %564 = vst [vmem:[#allocation2 + $0x30] sm:$0xff] %v532
      %565 = vst [vmem:[#allocation2 + $0x38] sm:$0xff] %v533
      %566 = vst [vmem:[#allocation2 + $0x40] sm:$0xff] %v534
      %567 = vst [vmem:[#allocation2 + $0x48] sm:$0xff] %v535
      %568 = vst [vmem:[#allocation2 + $0x50] sm:$0xff] %v536
      %569 = vst [vmem:[#allocation2 + $0x58] sm:$0xff] %v537
      %570 = vst [vmem:[#allocation2 + $0x60] sm:$0xff] %v538
      %571 = vst [vmem:[#allocation2 + $0x68] sm:$0xff] %v539
      %572 = vst [vmem:[#allocation2 + $0x70] sm:$0xff] %v540
      %573 = vst [vmem:[#allocation2 + $0x78] sm:$0xff] %v541
      %574 = vst [vmem:[#allocation2 + $0x80] sm:$0xff] %v542
      %575 = vst [vmem:[#allocation2 + $0x88] sm:$0xff] %v543
      %576 = vst [vmem:[#allocation2 + $0x90] sm:$0xff] %v544
      %577 = vst [vmem:[#allocation2 + $0x98] sm:$0xff] %v545
      %578 = vst [vmem:[#allocation2 + $0xa0] sm:$0xff] %v546
      %579 = vst [vmem:[#allocation2 + $0xa8] sm:$0xff] %v547
      %580 = vst [vmem:[#allocation2 + $0xb0] sm:$0xff] %v548
      %581 = vst [vmem:[#allocation2 + $0xb8] sm:$0xff] %v549
      %582 = vst [vmem:[#allocation2 + $0xc0] sm:$0xff] %v550
      %583 = vst [vmem:[#allocation2 + $0xc8] sm:$0xff] %v551
      %584 = vst [vmem:[#allocation2 + $0xd0] sm:$0xff] %v552
      %585 = vst [vmem:[#allocation2 + $0xd8] sm:$0xff] %v553
      %586 = vst [vmem:[#allocation2 + $0xe0] sm:$0xff] %v554
      %587 = vst [vmem:[#allocation2 + $0xe8] sm:$0xff] %v555
      %588 = vst [vmem:[#allocation2 + $0xf0] sm:$0xff] %v556
      %589 = vst [vmem:[#allocation2 + $0xf8] sm:$0xff] %v557
      %v590 = vld [vmem:[%s165 + $0x1] sm:$0xff]
      %v591 = vld [vmem:[%s165 + $0x9] sm:$0xff]
      %v592 = vld [vmem:[%s165 + $0x19] sm:$0xff]
      %v593 = vld [vmem:[%s165 + $0x21] sm:$0xff]
      %v594 = vld [vmem:[%s165 + $0x31] sm:$0xff]
      %v595 = vld [vmem:[%s165 + $0x39] sm:$0xff]
      %v596 = vld [vmem:[%s165 + $0x49] sm:$0xff]
      %v597 = vld [vmem:[%s165 + $0x51] sm:$0xff]
      %v598 = vld [vmem:[%s165 + $0x61] sm:$0xff]
      %v599 = vld [vmem:[%s165 + $0x69] sm:$0xff]
      %v600 = vld [vmem:[%s165 + $0x79] sm:$0xff]
      %v601 = vld [vmem:[%s165 + $0x81] sm:$0xff]
      %v602 = vld [vmem:[%s165 + $0x91] sm:$0xff]
      %v603 = vld [vmem:[%s165 + $0x99] sm:$0xff]
      %v604 = vld [vmem:[%s165 + $0xa9] sm:$0xff]
      %v605 = vld [vmem:[%s165 + $0xb1] sm:$0xff]
      %v606 = vld [vmem:[%s165 + $0xc1] sm:$0xff]
      %v607 = vld [vmem:[%s165 + $0xc9] sm:$0xff]
      %v608 = vld [vmem:[%s165 + $0xd9] sm:$0xff]
      %v609 = vld [vmem:[%s165 + $0xe1] sm:$0xff]
      %v610 = vld [vmem:[%s165 + $0xf1] sm:$0xff]
      %v611 = vld [vmem:[%s165 + $0xf9] sm:$0xff]
      %v612 = vld [vmem:[%s165 + $0x109] sm:$0xff]
      %v613 = vld [vmem:[%s165 + $0x111] sm:$0xff]
      %v614 = vld [vmem:[%s165 + $0x121] sm:$0xff]
      %v615 = vld [vmem:[%s165 + $0x129] sm:$0xff]
      %v616 = vld [vmem:[%s165 + $0x139] sm:$0xff]
      %v617 = vld [vmem:[%s165 + $0x141] sm:$0xff]
      %v618 = vld [vmem:[%s165 + $0x151] sm:$0xff]
      %v619 = vld [vmem:[%s165 + $0x159] sm:$0xff]
      %v620 = vld [vmem:[%s165 + $0x169] sm:$0xff]
      %v621 = vld [vmem:[%s165 + $0x171] sm:$0xff]
      %v622 = vld [vmem:[#allocation2] sm:$0xff]
      %v623 = vld [vmem:[#allocation2 + $0x8] sm:$0xff]
      %v624 = vld [vmem:[#allocation2 + $0x10] sm:$0xff]
      %v625 = vld [vmem:[#allocation2 + $0x18] sm:$0xff]
      %v626 = vld [vmem:[#allocation2 + $0x20] sm:$0xff]
      %v627 = vld [vmem:[#allocation2 + $0x28] sm:$0xff]
      %v628 = vld [vmem:[#allocation2 + $0x30] sm:$0xff]
      %v629 = vld [vmem:[#allocation2 + $0x38] sm:$0xff]
      %v630 = vld [vmem:[#allocation2 + $0x40] sm:$0xff]
      %v631 = vld [vmem:[#allocation2 + $0x48] sm:$0xff]
      %v632 = vld [vmem:[#allocation2 + $0x50] sm:$0xff]
      %v633 = vld [vmem:[#allocation2 + $0x58] sm:$0xff]
      %v634 = vld [vmem:[#allocation2 + $0x60] sm:$0xff]
      %v635 = vld [vmem:[#allocation2 + $0x68] sm:$0xff]
      %v636 = vld [vmem:[#allocation2 + $0x70] sm:$0xff]
      %v637 = vld [vmem:[#allocation2 + $0x78] sm:$0xff]
      %v638 = vld [vmem:[#allocation2 + $0x80] sm:$0xff]
      %v639 = vld [vmem:[#allocation2 + $0x88] sm:$0xff]
      %v640 = vld [vmem:[#allocation2 + $0x90] sm:$0xff]
      %v641 = vld [vmem:[#allocation2 + $0x98] sm:$0xff]
      %v642 = vld [vmem:[#allocation2 + $0xa0] sm:$0xff]
      %v643 = vld [vmem:[#allocation2 + $0xa8] sm:$0xff]
      %v644 = vld [vmem:[#allocation2 + $0xb0] sm:$0xff]
      %v645 = vld [vmem:[#allocation2 + $0xb8] sm:$0xff]
      %v646 = vld [vmem:[#allocation2 + $0xc0] sm:$0xff]
      %v647 = vld [vmem:[#allocation2 + $0xc8] sm:$0xff]
      %v648 = vld [vmem:[#allocation2 + $0xd0] sm:$0xff]
      %v649 = vld [vmem:[#allocation2 + $0xd8] sm:$0xff]
      %v650 = vld [vmem:[#allocation2 + $0xe0] sm:$0xff]
      %v651 = vld [vmem:[#allocation2 + $0xe8] sm:$0xff]
      %v652 = vld [vmem:[#allocation2 + $0xf0] sm:$0xff]
      %v653 = vld [vmem:[#allocation2 + $0xf8] sm:$0xff]
      %v654 = vpack.c.bf16 %v591, %v590
      %v655 = vpack.c.bf16 %v593, %v592
      %v656 = vpack.c.bf16 %v595, %v594
      %v657 = vpack.c.bf16 %v597, %v596
      %v658 = vpack.c.bf16 %v599, %v598
      %v659 = vpack.c.bf16 %v601, %v600
      %v660 = vpack.c.bf16 %v603, %v602
      %v661 = vpack.c.bf16 %v605, %v604
      %v662 = vpack.c.bf16 %v607, %v606
      %v663 = vpack.c.bf16 %v609, %v608
      %v664 = vpack.c.bf16 %v611, %v610
      %v665 = vpack.c.bf16 %v613, %v612
      %v666 = vpack.c.bf16 %v615, %v614
      %v667 = vpack.c.bf16 %v617, %v616
      %v668 = vpack.c.bf16 %v619, %v618
      %v669 = vpack.c.bf16 %v621, %v620
      %s670 = scalar_lea.vmem %s1, 32
      %v671 = vld [vmem:[%s670] sm:$0xf]
      %v672 = vld [vmem:[%s670 + $0x4] sm:$0xf]
      %v673 = vld [vmem:[%s670 + $0x8] sm:$0xf]
      %v674 = vld [vmem:[%s670 + $0xc] sm:$0xf]
      %v675 = vld [vmem:[%s670 + $0x10] sm:$0xf]
      %v676 = vld [vmem:[%s670 + $0x14] sm:$0xf]
      %v677 = vld [vmem:[%s670 + $0x18] sm:$0xf]
      %v678 = vld [vmem:[%s670 + $0x1c] sm:$0xf]
      %v687 = vunpack.c.l.b16 %v671
      %v688 = vunpack.c.l.b16 %v672
      %v689 = vunpack.c.l.b16 %v673
      %v690 = vunpack.c.l.b16 %v674
      %v691 = vunpack.c.l.b16 %v675
      %v692 = vunpack.c.l.b16 %v676
      %v693 = vunpack.c.l.b16 %v677
      %v694 = vunpack.c.l.b16 %v678
      %v695 = vpack.c.b16 %v688, %v687
      %v696 = vpack.c.b16 %v690, %v689
      %v697 = vpack.c.b16 %v692, %v691
      %v698 = vpack.c.b16 %v694, %v693
      %v704 = vsel %vm316, %v654, 0
      %v707 = vsel %vm316, %v655, 0
      %v710 = vsel %vm316, %v656, 0
      %v713 = vsel %vm316, %v657, 0
      %v716 = vsel %vm316, %v658, 0
      %v719 = vsel %vm316, %v659, 0
      %v722 = vsel %vm316, %v660, 0
      %v725 = vsel %vm316, %v661, 0
      %v728 = vsel %vm316, %v662, 0
      %v731 = vsel %vm316, %v663, 0
      %v734 = vsel %vm316, %v664, 0
      %v737 = vsel %vm316, %v665, 0
      %v740 = vsel %vm316, %v666, 0
      %v743 = vsel %vm316, %v667, 0
      %v746 = vsel %vm316, %v668, 0
      %v749 = vsel %vm316, %v669, 0
      %751 = vmatprep.subr.bf16.mxu0 0
      %752 = vmatpush1.bf16.msra.mxu0 %v695
      %753 = vmatprep.subr.bf16.mxu0 0
      %754 = vmatpush1.bf16.msra.mxu0 %v696
      %755 = vmatprep.subr.bf16.mxu0 0
      %756 = vmatpush1.bf16.msra.mxu0 %v697
      %757 = vmatprep.subr.bf16.mxu0 0
      %758 = vmatpush1.bf16.msra.mxu0 %v698
      %759 = vmatprep.subr.bf16.mxu0 0
      %760 = vmatpush1.bf16.msra.mxu0 0
      %761 = vmatprep.subr.bf16.mxu0 0
      %762 = vmatpush1.bf16.msra.mxu0 0
      %763 = vmatprep.subr.bf16.mxu0 0
      %764 = vmatpush1.bf16.msra.mxu0 0
      %765 = vmatprep.subr.bf16.mxu0 0
      %766 = vmatpush1.bf16.msra.mxu0 0
      %767 = vmatprep.subr.bf16.mxu0 0
      %768 = vmatpush1.bf16.msra.mxu0 0
      %769 = vmatprep.subr.bf16.mxu0 0
      %770 = vmatpush1.bf16.msra.mxu0 0
      %771 = vmatprep.subr.bf16.mxu0 0
      %772 = vmatpush1.bf16.msra.mxu0 0
      %773 = vmatprep.subr.bf16.mxu0 0
      %774 = vmatpush1.bf16.msra.mxu0 0
      %775 = vmatprep.subr.bf16.mxu0 0
      %776 = vmatpush1.bf16.msra.mxu0 0
      %777 = vmatprep.subr.bf16.mxu0 0
      %778 = vmatpush1.bf16.msra.mxu0 0
      %779 = vmatprep.subr.bf16.mxu0 0
      %780 = vmatpush1.bf16.msra.mxu0 0
      %781 = vmatprep.subr.bf16.mxu0 0
      %782 = vmatpush1.bf16.msra.mxu0 0
      %783 = vmatprep.mubr.bf16.mxu0 0
      %784 = vmatmul.mubr.bf16.gmra.mrb[0].mxu0 %v704
      %v785 = vpop.f32.mrb[0].mxu0
      %v786 = vadd.f32 0.0, %v785
      %v787 = vpop.f32.mrb[0].mxu0
      %v788 = vpop.f32.mrb[0].mxu0
      %v789 = vadd.f32 0.0, %v788
      %v790 = vpop.f32.mrb[0].mxu0
      %791 = vmatprep.mubr.bf16.mxu0 0
      %792 = vmatmul.mubr.bf16.gmra.mrb[0].mxu0 %v707
      %v793 = vpop.f32.mrb[0].mxu0
      %v794 = vadd.f32 0.0, %v793
      %v795 = vpop.f32.mrb[0].mxu0
      %v796 = vpop.f32.mrb[0].mxu0
      %v797 = vadd.f32 0.0, %v796
      %v798 = vpop.f32.mrb[0].mxu0
      %799 = vmatprep.mubr.bf16.mxu0 0
      %800 = vmatmul.mubr.bf16.gmra.mrb[0].mxu0 %v710
      %v801 = vpop.f32.mrb[0].mxu0
      %v802 = vadd.f32 0.0, %v801
      %v803 = vpop.f32.mrb[0].mxu0
      %v804 = vpop.f32.mrb[0].mxu0
      %v805 = vadd.f32 0.0, %v804
      %v806 = vpop.f32.mrb[0].mxu0
      %807 = vmatprep.mubr.bf16.mxu0 0
      %808 = vmatmul.mubr.bf16.gmra.mrb[0].mxu0 %v713
      %v809 = vpop.f32.mrb[0].mxu0
      %v810 = vadd.f32 0.0, %v809
      %v811 = vpop.f32.mrb[0].mxu0
      %v812 = vpop.f32.mrb[0].mxu0
      %v813 = vadd.f32 0.0, %v812
      %v814 = vpop.f32.mrb[0].mxu0
      %815 = vmatprep.mubr.bf16.mxu0 0
      %816 = vmatmul.mubr.bf16.gmra.mrb[0].mxu0 %v716
      %v817 = vpop.f32.mrb[0].mxu0
      %v818 = vadd.f32 0.0, %v817
      %v819 = vpop.f32.mrb[0].mxu0
      %v820 = vpop.f32.mrb[0].mxu0
      %v821 = vadd.f32 0.0, %v820
      %v822 = vpop.f32.mrb[0].mxu0
      %823 = vmatprep.mubr.bf16.mxu0 0
      %824 = vmatmul.mubr.bf16.gmra.mrb[0].mxu0 %v719
      %v825 = vpop.f32.mrb[0].mxu0
      %v826 = vadd.f32 0.0, %v825
      %v827 = vpop.f32.mrb[0].mxu0
      %v828 = vpop.f32.mrb[0].mxu0
      %v829 = vadd.f32 0.0, %v828
      %v830 = vpop.f32.mrb[0].mxu0
      %831 = vmatprep.mubr.bf16.mxu0 0
      %832 = vmatmul.mubr.bf16.gmra.mrb[0].mxu0 %v722
      %v833 = vpop.f32.mrb[0].mxu0
      %v834 = vadd.f32 0.0, %v833
      %v835 = vpop.f32.mrb[0].mxu0
      %v836 = vpop.f32.mrb[0].mxu0
      %v837 = vadd.f32 0.0, %v836
      %v838 = vpop.f32.mrb[0].mxu0
      %839 = vmatprep.mubr.bf16.mxu0 0
      %840 = vmatmul.mubr.bf16.gmra.mrb[0].mxu0 %v725
      %v841 = vpop.f32.mrb[0].mxu0
      %v842 = vadd.f32 0.0, %v841
      %v843 = vpop.f32.mrb[0].mxu0
      %v844 = vpop.f32.mrb[0].mxu0
      %v845 = vadd.f32 0.0, %v844
      %v846 = vpop.f32.mrb[0].mxu0
      %847 = vmatprep.mubr.bf16.mxu0 0
      %848 = vmatmul.mubr.bf16.gmra.mrb[0].mxu0 %v728
      %v849 = vpop.f32.mrb[0].mxu0
      %v850 = vadd.f32 0.0, %v849
      %v851 = vpop.f32.mrb[0].mxu0
      %v852 = vpop.f32.mrb[0].mxu0
      %v853 = vadd.f32 0.0, %v852
      %v854 = vpop.f32.mrb[0].mxu0
      %855 = vmatprep.mubr.bf16.mxu0 0
      %856 = vmatmul.mubr.bf16.gmra.mrb[0].mxu0 %v731
      %v857 = vpop.f32.mrb[0].mxu0
      %v858 = vadd.f32 0.0, %v857
      %v859 = vpop.f32.mrb[0].mxu0
      %v860 = vpop.f32.mrb[0].mxu0
      %v861 = vadd.f32 0.0, %v860
      %v862 = vpop.f32.mrb[0].mxu0
      %863 = vmatprep.mubr.bf16.mxu0 0
      %864 = vmatmul.mubr.bf16.gmra.mrb[0].mxu0 %v734
      %v865 = vpop.f32.mrb[0].mxu0
      %v866 = vadd.f32 0.0, %v865
      %v867 = vpop.f32.mrb[0].mxu0
      %v868 = vpop.f32.mrb[0].mxu0
      %v869 = vadd.f32 0.0, %v868
      %v870 = vpop.f32.mrb[0].mxu0
      %871 = vmatprep.mubr.bf16.mxu0 0
      %872 = vmatmul.mubr.bf16.gmra.mrb[0].mxu0 %v737
      %v873 = vpop.f32.mrb[0].mxu0
      %v874 = vadd.f32 0.0, %v873
      %v875 = vpop.f32.mrb[0].mxu0
      %v876 = vpop.f32.mrb[0].mxu0
      %v877 = vadd.f32 0.0, %v876
      %v878 = vpop.f32.mrb[0].mxu0
      %879 = vmatprep.mubr.bf16.mxu0 0
      %880 = vmatmul.mubr.bf16.gmra.mrb[0].mxu0 %v740
      %v881 = vpop.f32.mrb[0].mxu0
      %v882 = vadd.f32 0.0, %v881
      %v883 = vpop.f32.mrb[0].mxu0
      %v884 = vpop.f32.mrb[0].mxu0
      %v885 = vadd.f32 0.0, %v884
      %v886 = vpop.f32.mrb[0].mxu0
      %887 = vmatprep.mubr.bf16.mxu0 0
      %888 = vmatmul.mubr.bf16.gmra.mrb[0].mxu0 %v743
      %v889 = vpop.f32.mrb[0].mxu0
      %v890 = vadd.f32 0.0, %v889
      %v891 = vpop.f32.mrb[0].mxu0
      %v892 = vpop.f32.mrb[0].mxu0
      %v893 = vadd.f32 0.0, %v892
      %v894 = vpop.f32.mrb[0].mxu0
      %895 = vmatprep.mubr.bf16.mxu0 0
      %896 = vmatmul.mubr.bf16.gmra.mrb[0].mxu0 %v746
      %v897 = vpop.f32.mrb[0].mxu0
      %v898 = vadd.f32 0.0, %v897
      %v899 = vpop.f32.mrb[0].mxu0
      %v900 = vpop.f32.mrb[0].mxu0
      %v901 = vadd.f32 0.0, %v900
      %v902 = vpop.f32.mrb[0].mxu0
      %903 = vmatprep.mubr.bf16.mxu0 0
      %904 = vmatmul.mubr.bf16.gmra.mrb[0].mxu0 %v749
      %v905 = vpop.f32.mrb[0].mxu0
      %v906 = vadd.f32 0.0, %v905
      %v907 = vpop.f32.mrb[0].mxu0
      %v908 = vpop.f32.mrb[0].mxu0
      %v909 = vadd.f32 0.0, %v908
      %v910 = vpop.f32.mrb[0].mxu0
      %911 = vdwg.mxu0
      %v912 = vadd.f32 %v622, %v786
      %v913 = vadd.f32 %v623, %v789
      %v914 = vadd.f32 %v624, %v794
      %v915 = vadd.f32 %v625, %v797
      %v916 = vadd.f32 %v626, %v802
      %v917 = vadd.f32 %v627, %v805
      %v918 = vadd.f32 %v628, %v810
      %v919 = vadd.f32 %v629, %v813
      %v920 = vadd.f32 %v630, %v818
      %v921 = vadd.f32 %v631, %v821
      %v922 = vadd.f32 %v632, %v826
      %v923 = vadd.f32 %v633, %v829
      %v924 = vadd.f32 %v634, %v834
      %v925 = vadd.f32 %v635, %v837
      %v926 = vadd.f32 %v636, %v842
      %v927 = vadd.f32 %v637, %v845
      %v928 = vadd.f32 %v638, %v850
      %v929 = vadd.f32 %v639, %v853
      %v930 = vadd.f32 %v640, %v858
      %v931 = vadd.f32 %v641, %v861
      %v932 = vadd.f32 %v642, %v866
      %v933 = vadd.f32 %v643, %v869
      %v934 = vadd.f32 %v644, %v874
      %v935 = vadd.f32 %v645, %v877
      %v936 = vadd.f32 %v646, %v882
      %v937 = vadd.f32 %v647, %v885
      %v938 = vadd.f32 %v648, %v890
      %v939 = vadd.f32 %v649, %v893
      %v940 = vadd.f32 %v650, %v898
      %v941 = vadd.f32 %v651, %v901
      %v942 = vadd.f32 %v652, %v906
      %v943 = vadd.f32 %v653, %v909
      %944 = vst [vmem:[#allocation2] sm:$0xff] %v912
      %945 = vst [vmem:[#allocation2 + $0x8] sm:$0xff] %v913
      %946 = vst [vmem:[#allocation2 + $0x10] sm:$0xff] %v914
      %947 = vst [vmem:[#allocation2 + $0x18] sm:$0xff] %v915
      %948 = vst [vmem:[#allocation2 + $0x20] sm:$0xff] %v916
      %949 = vst [vmem:[#allocation2 + $0x28] sm:$0xff] %v917
      %950 = vst [vmem:[#allocation2 + $0x30] sm:$0xff] %v918
      %951 = vst [vmem:[#allocation2 + $0x38] sm:$0xff] %v919
      %952 = vst [vmem:[#allocation2 + $0x40] sm:$0xff] %v920
      %953 = vst [vmem:[#allocation2 + $0x48] sm:$0xff] %v921
      %954 = vst [vmem:[#allocation2 + $0x50] sm:$0xff] %v922
      %955 = vst [vmem:[#allocation2 + $0x58] sm:$0xff] %v923
      %956 = vst [vmem:[#allocation2 + $0x60] sm:$0xff] %v924
      %957 = vst [vmem:[#allocation2 + $0x68] sm:$0xff] %v925
      %958 = vst [vmem:[#allocation2 + $0x70] sm:$0xff] %v926
      %959 = vst [vmem:[#allocation2 + $0x78] sm:$0xff] %v927
      %960 = vst [vmem:[#allocation2 + $0x80] sm:$0xff] %v928
      %961 = vst [vmem:[#allocation2 + $0x88] sm:$0xff] %v929
      %962 = vst [vmem:[#allocation2 + $0x90] sm:$0xff] %v930
      %963 = vst [vmem:[#allocation2 + $0x98] sm:$0xff] %v931
      %964 = vst [vmem:[#allocation2 + $0xa0] sm:$0xff] %v932
      %965 = vst [vmem:[#allocation2 + $0xa8] sm:$0xff] %v933
      %966 = vst [vmem:[#allocation2 + $0xb0] sm:$0xff] %v934
      %967 = vst [vmem:[#allocation2 + $0xb8] sm:$0xff] %v935
      %968 = vst [vmem:[#allocation2 + $0xc0] sm:$0xff] %v936
      %969 = vst [vmem:[#allocation2 + $0xc8] sm:$0xff] %v937
      %970 = vst [vmem:[#allocation2 + $0xd0] sm:$0xff] %v938
      %971 = vst [vmem:[#allocation2 + $0xd8] sm:$0xff] %v939
      %972 = vst [vmem:[#allocation2 + $0xe0] sm:$0xff] %v940
      %973 = vst [vmem:[#allocation2 + $0xe8] sm:$0xff] %v941
      %974 = vst [vmem:[#allocation2 + $0xf0] sm:$0xff] %v942
      %975 = vst [vmem:[#allocation2 + $0xf8] sm:$0xff] %v943
      %v976 = vld [vmem:[%s165 + $0x2] sm:$0xff]
      %v977 = vld [vmem:[%s165 + $0xa] sm:$0xff]
      %v978 = vld [vmem:[%s165 + $0x1a] sm:$0xff]
      %v979 = vld [vmem:[%s165 + $0x22] sm:$0xff]
      %v980 = vld [vmem:[%s165 + $0x32] sm:$0xff]
      %v981 = vld [vmem:[%s165 + $0x3a] sm:$0xff]
      %v982 = vld [vmem:[%s165 + $0x4a] sm:$0xff]
      %v983 = vld [vmem:[%s165 + $0x52] sm:$0xff]
      %v984 = vld [vmem:[%s165 + $0x62] sm:$0xff]
      %v985 = vld [vmem:[%s165 + $0x6a] sm:$0xff]
      %v986 = vld [vmem:[%s165 + $0x7a] sm:$0xff]
      %v987 = vld [vmem:[%s165 + $0x82] sm:$0xff]
      %v988 = vld [vmem:[%s165 + $0x92] sm:$0xff]
      %v989 = vld [vmem:[%s165 + $0x9a] sm:$0xff]
      %v990 = vld [vmem:[%s165 + $0xaa] sm:$0xff]
      %v991 = vld [vmem:[%s165 + $0xb2] sm:$0xff]
      %v992 = vld [vmem:[%s165 + $0xc2] sm:$0xff]
      %v993 = vld [vmem:[%s165 + $0xca] sm:$0xff]
      %v994 = vld [vmem:[%s165 + $0xda] sm:$0xff]
      %v995 = vld [vmem:[%s165 + $0xe2] sm:$0xff]
      %v996 = vld [vmem:[%s165 + $0xf2] sm:$0xff]
      %v997 = vld [vmem:[%s165 + $0xfa] sm:$0xff]
      %v998 = vld [vmem:[%s165 + $0x10a] sm:$0xff]
      %v999 = vld [vmem:[%s165 + $0x112] sm:$0xff]
      %v1000 = vld [vmem:[%s165 + $0x122] sm:$0xff]
      %v1001 = vld [vmem:[%s165 + $0x12a] sm:$0xff]
      %v1002 = vld [vmem:[%s165 + $0x13a] sm:$0xff]
      %v1003 = vld [vmem:[%s165 + $0x142] sm:$0xff]
      %v1004 = vld [vmem:[%s165 + $0x152] sm:$0xff]
      %v1005 = vld [vmem:[%s165 + $0x15a] sm:$0xff]
      %v1006 = vld [vmem:[%s165 + $0x16a] sm:$0xff]
      %v1007 = vld [vmem:[%s165 + $0x172] sm:$0xff]
      %v1008 = vld [vmem:[#allocation2] sm:$0xff]
      %v1009 = vld [vmem:[#allocation2 + $0x8] sm:$0xff]
      %v1010 = vld [vmem:[#allocation2 + $0x10] sm:$0xff]
      %v1011 = vld [vmem:[#allocation2 + $0x18] sm:$0xff]
      %v1012 = vld [vmem:[#allocation2 + $0x20] sm:$0xff]
      %v1013 = vld [vmem:[#allocation2 + $0x28] sm:$0xff]
      %v1014 = vld [vmem:[#allocation2 + $0x30] sm:$0xff]
      %v1015 = vld [vmem:[#allocation2 + $0x38] sm:$0xff]
      %v1016 = vld [vmem:[#allocation2 + $0x40] sm:$0xff]
      %v1017 = vld [vmem:[#allocation2 + $0x48] sm:$0xff]
      %v1018 = vld [vmem:[#allocation2 + $0x50] sm:$0xff]
      %v1019 = vld [vmem:[#allocation2 + $0x58] sm:$0xff]
      %v1020 = vld [vmem:[#allocation2 + $0x60] sm:$0xff]
      %v1021 = vld [vmem:[#allocation2 + $0x68] sm:$0xff]
      %v1022 = vld [vmem:[#allocation2 + $0x70] sm:$0xff]
      %v1023 = vld [vmem:[#allocation2 + $0x78] sm:$0xff]
      %v1024 = vld [vmem:[#allocation2 + $0x80] sm:$0xff]
      %v1025 = vld [vmem:[#allocation2 + $0x88] sm:$0xff]
      %v1026 = vld [vmem:[#allocation2 + $0x90] sm:$0xff]
      %v1027 = vld [vmem:[#allocation2 + $0x98] sm:$0xff]
      %v1028 = vld [vmem:[#allocation2 + $0xa0] sm:$0xff]
      %v1029 = vld [vmem:[#allocation2 + $0xa8] sm:$0xff]
      %v1030 = vld [vmem:[#allocation2 + $0xb0] sm:$0xff]
      %v1031 = vld [vmem:[#allocation2 + $0xb8] sm:$0xff]
      %v1032 = vld [vmem:[#allocation2 + $0xc0] sm:$0xff]
      %v1033 = vld [vmem:[#allocation2 + $0xc8] sm:$0xff]
      %v1034 = vld [vmem:[#allocation2 + $0xd0] sm:$0xff]
      %v1035 = vld [vmem:[#allocation2 + $0xd8] sm:$0xff]
      %v1036 = vld [vmem:[#allocation2 + $0xe0] sm:$0xff]
      %v1037 = vld [vmem:[#allocation2 + $0xe8] sm:$0xff]
      %v1038 = vld [vmem:[#allocation2 + $0xf0] sm:$0xff]
      %v1039 = vld [vmem:[#allocation2 + $0xf8] sm:$0xff]
      %v1040 = vpack.c.bf16 %v977, %v976
      %v1041 = vpack.c.bf16 %v979, %v978
      %v1042 = vpack.c.bf16 %v981, %v980
      %v1043 = vpack.c.bf16 %v983, %v982
      %v1044 = vpack.c.bf16 %v985, %v984
      %v1045 = vpack.c.bf16 %v987, %v986
      %v1046 = vpack.c.bf16 %v989, %v988
      %v1047 = vpack.c.bf16 %v991, %v990
      %v1048 = vpack.c.bf16 %v993, %v992
      %v1049 = vpack.c.bf16 %v995, %v994
      %v1050 = vpack.c.bf16 %v997, %v996
      %v1051 = vpack.c.bf16 %v999, %v998
      %v1052 = vpack.c.bf16 %v1001, %v1000
      %v1053 = vpack.c.bf16 %v1003, %v1002
      %v1054 = vpack.c.bf16 %v1005, %v1004
      %v1055 = vpack.c.bf16 %v1007, %v1006
      %s1056 = scalar_lea.vmem %s1, 64
      %v1057 = vld [vmem:[%s1056] sm:$0xf]
      %v1058 = vld [vmem:[%s1056 + $0x4] sm:$0xf]
      %v1059 = vld [vmem:[%s1056 + $0x8] sm:$0xf]
      %v1060 = vld [vmem:[%s1056 + $0xc] sm:$0xf]
      %v1061 = vld [vmem:[%s1056 + $0x10] sm:$0xf]
      %v1062 = vld [vmem:[%s1056 + $0x14] sm:$0xf]
      %v1063 = vld [vmem:[%s1056 + $0x18] sm:$0xf]
      %v1064 = vld [vmem:[%s1056 + $0x1c] sm:$0xf]
      %v1073 = vunpack.c.l.b16 %v1057
      %v1074 = vunpack.c.l.b16 %v1058
      %v1075 = vunpack.c.l.b16 %v1059
      %v1076 = vunpack.c.l.b16 %v1060
      %v1077 = vunpack.c.l.b16 %v1061
      %v1078 = vunpack.c.l.b16 %v1062
      %v1079 = vunpack.c.l.b16 %v1063
      %v1080 = vunpack.c.l.b16 %v1064
      %v1081 = vpack.c.b16 %v1074, %v1073
      %v1082 = vpack.c.b16 %v1076, %v1075
      %v1083 = vpack.c.b16 %v1078, %v1077
      %v1084 = vpack.c.b16 %v1080, %v1079
      %v1090 = vsel %vm316, %v1040, 0
      %v1093 = vsel %vm316, %v1041, 0
      %v1096 = vsel %vm316, %v1042, 0
      %v1099 = vsel %vm316, %v1043, 0
      %v1102 = vsel %vm316, %v1044, 0
      %v1105 = vsel %vm316, %v1045, 0
      %v1108 = vsel %vm316, %v1046, 0
      %v1111 = vsel %vm316, %v1047, 0
      %v1114 = vsel %vm316, %v1048, 0
      %v1117 = vsel %vm316, %v1049, 0
      %v1120 = vsel %vm316, %v1050, 0
      %v1123 = vsel %vm316, %v1051, 0
      %v1126 = vsel %vm316, %v1052, 0
      %v1129 = vsel %vm316, %v1053, 0
      %v1132 = vsel %vm316, %v1054, 0
      %v1135 = vsel %vm316, %v1055, 0
      %1137 = vmatprep.subr.bf16.mxu0 0
      %1138 = vmatpush1.bf16.msra.mxu0 %v1081
      %1139 = vmatprep.subr.bf16.mxu0 0
      %1140 = vmatpush1.bf16.msra.mxu0 %v1082
      %1141 = vmatprep.subr.bf16.mxu0 0
      %1142 = vmatpush1.bf16.msra.mxu0 %v1083
      %1143 = vmatprep.subr.bf16.mxu0 0
      %1144 = vmatpush1.bf16.msra.mxu0 %v1084
      %1145 = vmatprep.subr.bf16.mxu0 0
      %1146 = vmatpush1.bf16.msra.mxu0 0
      %1147 = vmatprep.subr.bf16.mxu0 0
      %1148 = vmatpush1.bf16.msra.mxu0 0
      %1149 = vmatprep.subr.bf16.mxu0 0
      %1150 = vmatpush1.bf16.msra.mxu0 0
      %1151 = vmatprep.subr.bf16.mxu0 0
      %1152 = vmatpush1.bf16.msra.mxu0 0
      %1153 = vmatprep.subr.bf16.mxu0 0
      %1154 = vmatpush1.bf16.msra.mxu0 0
      %1155 = vmatprep.subr.bf16.mxu0 0
      %1156 = vmatpush1.bf16.msra.mxu0 0
      %1157 = vmatprep.subr.bf16.mxu0 0
      %1158 = vmatpush1.bf16.msra.mxu0 0
      %1159 = vmatprep.subr.bf16.mxu0 0
      %1160 = vmatpush1.bf16.msra.mxu0 0
      %1161 = vmatprep.subr.bf16.mxu0 0
      %1162 = vmatpush1.bf16.msra.mxu0 0
      %1163 = vmatprep.subr.bf16.mxu0 0
      %1164 = vmatpush1.bf16.msra.mxu0 0
      %1165 = vmatprep.subr.bf16.mxu0 0
      %1166 = vmatpush1.bf16.msra.mxu0 0
      %1167 = vmatprep.subr.bf16.mxu0 0
      %1168 = vmatpush1.bf16.msra.mxu0 0
      %1169 = vmatprep.mubr.bf16.mxu0 0
      %1170 = vmatmul.mubr.bf16.gmra.mrb[0].mxu0 %v1090
      %v1171 = vpop.f32.mrb[0].mxu0
      %v1172 = vadd.f32 0.0, %v1171
      %v1173 = vpop.f32.mrb[0].mxu0
      %v1174 = vpop.f32.mrb[0].mxu0
      %v1175 = vadd.f32 0.0, %v1174
      %v1176 = vpop.f32.mrb[0].mxu0
      %1177 = vmatprep.mubr.bf16.mxu0 0
      %1178 = vmatmul.mubr.bf16.gmra.mrb[0].mxu0 %v1093
      %v1179 = vpop.f32.mrb[0].mxu0
      %v1180 = vadd.f32 0.0, %v1179
      %v1181 = vpop.f32.mrb[0].mxu0
      %v1182 = vpop.f32.mrb[0].mxu0
      %v1183 = vadd.f32 0.0, %v1182
      %v1184 = vpop.f32.mrb[0].mxu0
      %1185 = vmatprep.mubr.bf16.mxu0 0
      %1186 = vmatmul.mubr.bf16.gmra.mrb[0].mxu0 %v1096
      %v1187 = vpop.f32.mrb[0].mxu0
      %v1188 = vadd.f32 0.0, %v1187
      %v1189 = vpop.f32.mrb[0].mxu0
      %v1190 = vpop.f32.mrb[0].mxu0
      %v1191 = vadd.f32 0.0, %v1190
      %v1192 = vpop.f32.mrb[0].mxu0
      %1193 = vmatprep.mubr.bf16.mxu0 0
      %1194 = vmatmul.mubr.bf16.gmra.mrb[0].mxu0 %v1099
      %v1195 = vpop.f32.mrb[0].mxu0
      %v1196 = vadd.f32 0.0, %v1195
      %v1197 = vpop.f32.mrb[0].mxu0
      %v1198 = vpop.f32.mrb[0].mxu0
      %v1199 = vadd.f32 0.0, %v1198
      %v1200 = vpop.f32.mrb[0].mxu0
      %1201 = vmatprep.mubr.bf16.mxu0 0
      %1202 = vmatmul.mubr.bf16.gmra.mrb[0].mxu0 %v1102
      %v1203 = vpop.f32.mrb[0].mxu0
      %v1204 = vadd.f32 0.0, %v1203
      %v1205 = vpop.f32.mrb[0].mxu0
      %v1206 = vpop.f32.mrb[0].mxu0
      %v1207 = vadd.f32 0.0, %v1206
      %v1208 = vpop.f32.mrb[0].mxu0
      %1209 = vmatprep.mubr.bf16.mxu0 0
      %1210 = vmatmul.mubr.bf16.gmra.mrb[0].mxu0 %v1105
      %v1211 = vpop.f32.mrb[0].mxu0
      %v1212 = vadd.f32 0.0, %v1211
      %v1213 = vpop.f32.mrb[0].mxu0
      %v1214 = vpop.f32.mrb[0].mxu0
      %v1215 = vadd.f32 0.0, %v1214
      %v1216 = vpop.f32.mrb[0].mxu0
      %1217 = vmatprep.mubr.bf16.mxu0 0
      %1218 = vmatmul.mubr.bf16.gmra.mrb[0].mxu0 %v1108
      %v1219 = vpop.f32.mrb[0].mxu0
      %v1220 = vadd.f32 0.0, %v1219
      %v1221 = vpop.f32.mrb[0].mxu0
      %v1222 = vpop.f32.mrb[0].mxu0
      %v1223 = vadd.f32 0.0, %v1222
      %v1224 = vpop.f32.mrb[0].mxu0
      %1225 = vmatprep.mubr.bf16.mxu0 0
      %1226 = vmatmul.mubr.bf16.gmra.mrb[0].mxu0 %v1111
      %v1227 = vpop.f32.mrb[0].mxu0
      %v1228 = vadd.f32 0.0, %v1227
      %v1229 = vpop.f32.mrb[0].mxu0
      %v1230 = vpop.f32.mrb[0].mxu0
      %v1231 = vadd.f32 0.0, %v1230
      %v1232 = vpop.f32.mrb[0].mxu0
      %1233 = vmatprep.mubr.bf16.mxu0 0
      %1234 = vmatmul.mubr.bf16.gmra.mrb[0].mxu0 %v1114
      %v1235 = vpop.f32.mrb[0].mxu0
      %v1236 = vadd.f32 0.0, %v1235
      %v1237 = vpop.f32.mrb[0].mxu0
      %v1238 = vpop.f32.mrb[0].mxu0
      %v1239 = vadd.f32 0.0, %v1238
      %v1240 = vpop.f32.mrb[0].mxu0
      %1241 = vmatprep.mubr.bf16.mxu0 0
      %1242 = vmatmul.mubr.bf16.gmra.mrb[0].mxu0 %v1117
      %v1243 = vpop.f32.mrb[0].mxu0
      %v1244 = vadd.f32 0.0, %v1243
      %v1245 = vpop.f32.mrb[0].mxu0
      %v1246 = vpop.f32.mrb[0].mxu0
      %v1247 = vadd.f32 0.0, %v1246
      %v1248 = vpop.f32.mrb[0].mxu0
      %1249 = vmatprep.mubr.bf16.mxu0 0
      %1250 = vmatmul.mubr.bf16.gmra.mrb[0].mxu0 %v1120
      %v1251 = vpop.f32.mrb[0].mxu0
      %v1252 = vadd.f32 0.0, %v1251
      %v1253 = vpop.f32.mrb[0].mxu0
      %v1254 = vpop.f32.mrb[0].mxu0
      %v1255 = vadd.f32 0.0, %v1254
      %v1256 = vpop.f32.mrb[0].mxu0
      %1257 = vmatprep.mubr.bf16.mxu0 0
      %1258 = vmatmul.mubr.bf16.gmra.mrb[0].mxu0 %v1123
      %v1259 = vpop.f32.mrb[0].mxu0
      %v1260 = vadd.f32 0.0, %v1259
      %v1261 = vpop.f32.mrb[0].mxu0
      %v1262 = vpop.f32.mrb[0].mxu0
      %v1263 = vadd.f32 0.0, %v1262
      %v1264 = vpop.f32.mrb[0].mxu0
      %1265 = vmatprep.mubr.bf16.mxu0 0
      %1266 = vmatmul.mubr.bf16.gmra.mrb[0].mxu0 %v1126
      %v1267 = vpop.f32.mrb[0].mxu0
      %v1268 = vadd.f32 0.0, %v1267
      %v1269 = vpop.f32.mrb[0].mxu0
      %v1270 = vpop.f32.mrb[0].mxu0
      %v1271 = vadd.f32 0.0, %v1270
      %v1272 = vpop.f32.mrb[0].mxu0
      %1273 = vmatprep.mubr.bf16.mxu0 0
      %1274 = vmatmul.mubr.bf16.gmra.mrb[0].mxu0 %v1129
      %v1275 = vpop.f32.mrb[0].mxu0
      %v1276 = vadd.f32 0.0, %v1275
      %v1277 = vpop.f32.mrb[0].mxu0
      %v1278 = vpop.f32.mrb[0].mxu0
      %v1279 = vadd.f32 0.0, %v1278
      %v1280 = vpop.f32.mrb[0].mxu0
      %1281 = vmatprep.mubr.bf16.mxu0 0
      %1282 = vmatmul.mubr.bf16.gmra.mrb[0].mxu0 %v1132
      %v1283 = vpop.f32.mrb[0].mxu0
      %v1284 = vadd.f32 0.0, %v1283
      %v1285 = vpop.f32.mrb[0].mxu0
      %v1286 = vpop.f32.mrb[0].mxu0
      %v1287 = vadd.f32 0.0, %v1286
      %v1288 = vpop.f32.mrb[0].mxu0
      %1289 = vmatprep.mubr.bf16.mxu0 0
      %1290 = vmatmul.mubr.bf16.gmra.mrb[0].mxu0 %v1135
      %v1291 = vpop.f32.mrb[0].mxu0
      %v1292 = vadd.f32 0.0, %v1291
      %v1293 = vpop.f32.mrb[0].mxu0
      %v1294 = vpop.f32.mrb[0].mxu0
      %v1295 = vadd.f32 0.0, %v1294
      %v1296 = vpop.f32.mrb[0].mxu0
      %1297 = vdwg.mxu0
      %v1298 = vadd.f32 %v1008, %v1172
      %v1299 = vadd.f32 %v1009, %v1175
      %v1300 = vadd.f32 %v1010, %v1180
      %v1301 = vadd.f32 %v1011, %v1183
      %v1302 = vadd.f32 %v1012, %v1188
      %v1303 = vadd.f32 %v1013, %v1191
      %v1304 = vadd.f32 %v1014, %v1196
      %v1305 = vadd.f32 %v1015, %v1199
      %v1306 = vadd.f32 %v1016, %v1204
      %v1307 = vadd.f32 %v1017, %v1207
      %v1308 = vadd.f32 %v1018, %v1212
      %v1309 = vadd.f32 %v1019, %v1215
      %v1310 = vadd.f32 %v1020, %v1220
      %v1311 = vadd.f32 %v1021, %v1223
      %v1312 = vadd.f32 %v1022, %v1228
      %v1313 = vadd.f32 %v1023, %v1231
      %v1314 = vadd.f32 %v1024, %v1236
      %v1315 = vadd.f32 %v1025, %v1239
      %v1316 = vadd.f32 %v1026, %v1244
      %v1317 = vadd.f32 %v1027, %v1247
      %v1318 = vadd.f32 %v1028, %v1252
      %v1319 = vadd.f32 %v1029, %v1255
      %v1320 = vadd.f32 %v1030, %v1260
      %v1321 = vadd.f32 %v1031, %v1263
      %v1322 = vadd.f32 %v1032, %v1268
      %v1323 = vadd.f32 %v1033, %v1271
      %v1324 = vadd.f32 %v1034, %v1276
      %v1325 = vadd.f32 %v1035, %v1279
      %v1326 = vadd.f32 %v1036, %v1284
      %v1327 = vadd.f32 %v1037, %v1287
      %v1328 = vadd.f32 %v1038, %v1292
      %v1329 = vadd.f32 %v1039, %v1295
      %1330 = vst [vmem:[#allocation2] sm:$0xff] %v1298
      %1331 = vst [vmem:[#allocation2 + $0x8] sm:$0xff] %v1299
      %1332 = vst [vmem:[#allocation2 + $0x10] sm:$0xff] %v1300
      %1333 = vst [vmem:[#allocation2 + $0x18] sm:$0xff] %v1301
      %1334 = vst [vmem:[#allocation2 + $0x20] sm:$0xff] %v1302
      %1335 = vst [vmem:[#allocation2 + $0x28] sm:$0xff] %v1303
      %1336 = vst [vmem:[#allocation2 + $0x30] sm:$0xff] %v1304
      %1337 = vst [vmem:[#allocation2 + $0x38] sm:$0xff] %v1305
      %1338 = vst [vmem:[#allocation2 + $0x40] sm:$0xff] %v1306
      %1339 = vst [vmem:[#allocation2 + $0x48] sm:$0xff] %v1307
      %1340 = vst [vmem:[#allocation2 + $0x50] sm:$0xff] %v1308
      %1341 = vst [vmem:[#allocation2 + $0x58] sm:$0xff] %v1309
      %1342 = vst [vmem:[#allocation2 + $0x60] sm:$0xff] %v1310
      %1343 = vst [vmem:[#allocation2 + $0x68] sm:$0xff] %v1311
      %1344 = vst [vmem:[#allocation2 + $0x70] sm:$0xff] %v1312
      %1345 = vst [vmem:[#allocation2 + $0x78] sm:$0xff] %v1313
      %1346 = vst [vmem:[#allocation2 + $0x80] sm:$0xff] %v1314
      %1347 = vst [vmem:[#allocation2 + $0x88] sm:$0xff] %v1315
      %1348 = vst [vmem:[#allocation2 + $0x90] sm:$0xff] %v1316
      %1349 = vst [vmem:[#allocation2 + $0x98] sm:$0xff] %v1317
      %1350 = vst [vmem:[#allocation2 + $0xa0] sm:$0xff] %v1318
      %1351 = vst [vmem:[#allocation2 + $0xa8] sm:$0xff] %v1319
      %1352 = vst [vmem:[#allocation2 + $0xb0] sm:$0xff] %v1320
      %1353 = vst [vmem:[#allocation2 + $0xb8] sm:$0xff] %v1321
      %1354 = vst [vmem:[#allocation2 + $0xc0] sm:$0xff] %v1322
      %1355 = vst [vmem:[#allocation2 + $0xc8] sm:$0xff] %v1323
      %1356 = vst [vmem:[#allocation2 + $0xd0] sm:$0xff] %v1324
      %1357 = vst [vmem:[#allocation2 + $0xd8] sm:$0xff] %v1325
      %1358 = vst [vmem:[#allocation2 + $0xe0] sm:$0xff] %v1326
      %1359 = vst [vmem:[#allocation2 + $0xe8] sm:$0xff] %v1327
      %1360 = vst [vmem:[#allocation2 + $0xf0] sm:$0xff] %v1328
      %1361 = vst [vmem:[#allocation2 + $0xf8] sm:$0xff] %v1329
      %s1362 = scalar_lea.vmem %s165, 24
      %v1363 = vld [vmem:[%s1362] sm:$0xff]
      %v1364 = vld [vmem:[%s1362 + $0x8] sm:$0xff]
      %v1365 = vld [vmem:[%s1362 + $0x18] sm:$0xff]
      %v1366 = vld [vmem:[%s1362 + $0x20] sm:$0xff]
      %v1367 = vld [vmem:[%s1362 + $0x30] sm:$0xff]
      %v1368 = vld [vmem:[%s1362 + $0x38] sm:$0xff]
      %v1369 = vld [vmem:[%s1362 + $0x48] sm:$0xff]
      %v1370 = vld [vmem:[%s1362 + $0x50] sm:$0xff]
      %v1371 = vld [vmem:[%s1362 + $0x60] sm:$0xff]
      %v1372 = vld [vmem:[%s1362 + $0x68] sm:$0xff]
      %v1373 = vld [vmem:[%s1362 + $0x78] sm:$0xff]
      %v1374 = vld [vmem:[%s1362 + $0x80] sm:$0xff]
      %v1375 = vld [vmem:[%s1362 + $0x90] sm:$0xff]
      %v1376 = vld [vmem:[%s1362 + $0x98] sm:$0xff]
      %v1377 = vld [vmem:[%s1362 + $0xa8] sm:$0xff]
      %v1378 = vld [vmem:[%s1362 + $0xb0] sm:$0xff]
      %v1379 = vld [vmem:[%s1362 + $0xc0] sm:$0xff]
      %v1380 = vld [vmem:[%s1362 + $0xc8] sm:$0xff]
      %v1381 = vld [vmem:[%s1362 + $0xd8] sm:$0xff]
      %v1382 = vld [vmem:[%s1362 + $0xe0] sm:$0xff]
      %v1383 = vld [vmem:[%s1362 + $0xf0] sm:$0xff]
      %v1384 = vld [vmem:[%s1362 + $0xf8] sm:$0xff]
      %v1385 = vld [vmem:[%s1362 + $0x108] sm:$0xff]
      %v1386 = vld [vmem:[%s1362 + $0x110] sm:$0xff]
      %v1387 = vld [vmem:[%s1362 + $0x120] sm:$0xff]
      %v1388 = vld [vmem:[%s1362 + $0x128] sm:$0xff]
      %v1389 = vld [vmem:[%s1362 + $0x138] sm:$0xff]
      %v1390 = vld [vmem:[%s1362 + $0x140] sm:$0xff]
      %v1391 = vld [vmem:[%s1362 + $0x150] sm:$0xff]
      %v1392 = vld [vmem:[%s1362 + $0x158] sm:$0xff]
      %v1393 = vld [vmem:[%s1362 + $0x168] sm:$0xff]
      %v1394 = vld [vmem:[%s1362 + $0x170] sm:$0xff]
      %v1395 = vld [vmem:[#allocation2] sm:$0xff]
      %v1396 = vld [vmem:[#allocation2 + $0x8] sm:$0xff]
      %v1397 = vld [vmem:[#allocation2 + $0x10] sm:$0xff]
      %v1398 = vld [vmem:[#allocation2 + $0x18] sm:$0xff]
      %v1399 = vld [vmem:[#allocation2 + $0x20] sm:$0xff]
      %v1400 = vld [vmem:[#allocation2 + $0x28] sm:$0xff]
      %v1401 = vld [vmem:[#allocation2 + $0x30] sm:$0xff]
      %v1402 = vld [vmem:[#allocation2 + $0x38] sm:$0xff]
      %v1403 = vld [vmem:[#allocation2 + $0x40] sm:$0xff]
      %v1404 = vld [vmem:[#allocation2 + $0x48] sm:$0xff]
      %v1405 = vld [vmem:[#allocation2 + $0x50] sm:$0xff]
      %v1406 = vld [vmem:[#allocation2 + $0x58] sm:$0xff]
      %v1407 = vld [vmem:[#allocation2 + $0x60] sm:$0xff]
      %v1408 = vld [vmem:[#allocation2 + $0x68] sm:$0xff]
      %v1409 = vld [vmem:[#allocation2 + $0x70] sm:$0xff]
      %v1410 = vld [vmem:[#allocation2 + $0x78] sm:$0xff]
      %v1411 = vld [vmem:[#allocation2 + $0x80] sm:$0xff]
      %v1412 = vld [vmem:[#allocation2 + $0x88] sm:$0xff]
      %v1413 = vld [vmem:[#allocation2 + $0x90] sm:$0xff]
      %v1414 = vld [vmem:[#allocation2 + $0x98] sm:$0xff]
      %v1415 = vld [vmem:[#allocation2 + $0xa0] sm:$0xff]
      %v1416 = vld [vmem:[#allocation2 + $0xa8] sm:$0xff]
      %v1417 = vld [vmem:[#allocation2 + $0xb0] sm:$0xff]
      %v1418 = vld [vmem:[#allocation2 + $0xb8] sm:$0xff]
      %v1419 = vld [vmem:[#allocation2 + $0xc0] sm:$0xff]
      %v1420 = vld [vmem:[#allocation2 + $0xc8] sm:$0xff]
      %v1421 = vld [vmem:[#allocation2 + $0xd0] sm:$0xff]
      %v1422 = vld [vmem:[#allocation2 + $0xd8] sm:$0xff]
      %v1423 = vld [vmem:[#allocation2 + $0xe0] sm:$0xff]
      %v1424 = vld [vmem:[#allocation2 + $0xe8] sm:$0xff]
      %v1425 = vld [vmem:[#allocation2 + $0xf0] sm:$0xff]
      %v1426 = vld [vmem:[#allocation2 + $0xf8] sm:$0xff]
      %v1427 = vpack.c.bf16 %v1364, %v1363
      %v1428 = vpack.c.bf16 %v1366, %v1365
      %v1429 = vpack.c.bf16 %v1368, %v1367
      %v1430 = vpack.c.bf16 %v1370, %v1369
      %v1431 = vpack.c.bf16 %v1372, %v1371
      %v1432 = vpack.c.bf16 %v1374, %v1373
      %v1433 = vpack.c.bf16 %v1376, %v1375
      %v1434 = vpack.c.bf16 %v1378, %v1377
      %v1435 = vpack.c.bf16 %v1380, %v1379
      %v1436 = vpack.c.bf16 %v1382, %v1381
      %v1437 = vpack.c.bf16 %v1384, %v1383
      %v1438 = vpack.c.bf16 %v1386, %v1385
      %v1439 = vpack.c.bf16 %v1388, %v1387
      %v1440 = vpack.c.bf16 %v1390, %v1389
      %v1441 = vpack.c.bf16 %v1392, %v1391
      %v1442 = vpack.c.bf16 %v1394, %v1393
      %s1443 = scalar_lea.vmem %s1, 96
      %v1444 = vld [vmem:[%s1443] sm:$0xf]
      %v1445 = vld [vmem:[%s1443 + $0x4] sm:$0xf]
      %v1446 = vld [vmem:[%s1443 + $0x8] sm:$0xf]
      %v1447 = vld [vmem:[%s1443 + $0xc] sm:$0xf]
      %v1448 = vld [vmem:[%s1443 + $0x10] sm:$0xf]
      %v1449 = vld [vmem:[%s1443 + $0x14] sm:$0xf]
      %v1450 = vld [vmem:[%s1443 + $0x18] sm:$0xf]
      %v1451 = vld [vmem:[%s1443 + $0x1c] sm:$0xf]
      %v1460 = vunpack.c.l.b16 %v1444
      %v1461 = vunpack.c.l.b16 %v1445
      %v1462 = vunpack.c.l.b16 %v1446
      %v1463 = vunpack.c.l.b16 %v1447
      %v1464 = vunpack.c.l.b16 %v1448
      %v1465 = vunpack.c.l.b16 %v1449
      %v1466 = vunpack.c.l.b16 %v1450
      %v1467 = vunpack.c.l.b16 %v1451
      %v1468 = vpack.c.b16 %v1461, %v1460
      %v1469 = vpack.c.b16 %v1463, %v1462
      %v1470 = vpack.c.b16 %v1465, %v1464
      %v1471 = vpack.c.b16 %v1467, %v1466
      %v1477 = vsel %vm316, %v1427, 0
      %v1480 = vsel %vm316, %v1428, 0
      %v1483 = vsel %vm316, %v1429, 0
      %v1486 = vsel %vm316, %v1430, 0
      %v1489 = vsel %vm316, %v1431, 0
      %v1492 = vsel %vm316, %v1432, 0
      %v1495 = vsel %vm316, %v1433, 0
      %v1498 = vsel %vm316, %v1434, 0
      %v1501 = vsel %vm316, %v1435, 0
      %v1504 = vsel %vm316, %v1436, 0
      %v1507 = vsel %vm316, %v1437, 0
      %v1510 = vsel %vm316, %v1438, 0
      %v1513 = vsel %vm316, %v1439, 0
      %v1516 = vsel %vm316, %v1440, 0
      %v1519 = vsel %vm316, %v1441, 0
      %v1522 = vsel %vm316, %v1442, 0
      %1524 = vmatprep.subr.bf16.mxu0 0
      %1525 = vmatpush1.bf16.msra.mxu0 %v1468
      %1526 = vmatprep.subr.bf16.mxu0 0
      %1527 = vmatpush1.bf16.msra.mxu0 %v1469
      %1528 = vmatprep.subr.bf16.mxu0 0
      %1529 = vmatpush1.bf16.msra.mxu0 %v1470
      %1530 = vmatprep.subr.bf16.mxu0 0
      %1531 = vmatpush1.bf16.msra.mxu0 %v1471
      %1532 = vmatprep.subr.bf16.mxu0 0
      %1533 = vmatpush1.bf16.msra.mxu0 0
      %1534 = vmatprep.subr.bf16.mxu0 0
      %1535 = vmatpush1.bf16.msra.mxu0 0
      %1536 = vmatprep.subr.bf16.mxu0 0
      %1537 = vmatpush1.bf16.msra.mxu0 0
      %1538 = vmatprep.subr.bf16.mxu0 0
      %1539 = vmatpush1.bf16.msra.mxu0 0
      %1540 = vmatprep.subr.bf16.mxu0 0
      %1541 = vmatpush1.bf16.msra.mxu0 0
      %1542 = vmatprep.subr.bf16.mxu0 0
      %1543 = vmatpush1.bf16.msra.mxu0 0
      %1544 = vmatprep.subr.bf16.mxu0 0
      %1545 = vmatpush1.bf16.msra.mxu0 0
      %1546 = vmatprep.subr.bf16.mxu0 0
      %1547 = vmatpush1.bf16.msra.mxu0 0
      %1548 = vmatprep.subr.bf16.mxu0 0
      %1549 = vmatpush1.bf16.msra.mxu0 0
      %1550 = vmatprep.subr.bf16.mxu0 0
      %1551 = vmatpush1.bf16.msra.mxu0 0
      %1552 = vmatprep.subr.bf16.mxu0 0
      %1553 = vmatpush1.bf16.msra.mxu0 0
      %1554 = vmatprep.subr.bf16.mxu0 0
      %1555 = vmatpush1.bf16.msra.mxu0 0
      %1556 = vmatprep.mubr.bf16.mxu0 0
      %1557 = vmatmul.mubr.bf16.gmra.mrb[0].mxu0 %v1477
      %v1558 = vpop.f32.mrb[0].mxu0
      %v1559 = vadd.f32 0.0, %v1558
      %v1560 = vpop.f32.mrb[0].mxu0
      %v1561 = vpop.f32.mrb[0].mxu0
      %v1562 = vadd.f32 0.0, %v1561
      %v1563 = vpop.f32.mrb[0].mxu0
      %1564 = vmatprep.mubr.bf16.mxu0 0
      %1565 = vmatmul.mubr.bf16.gmra.mrb[0].mxu0 %v1480
      %v1566 = vpop.f32.mrb[0].mxu0
      %v1567 = vadd.f32 0.0, %v1566
      %v1568 = vpop.f32.mrb[0].mxu0
      %v1569 = vpop.f32.mrb[0].mxu0
      %v1570 = vadd.f32 0.0, %v1569
      %v1571 = vpop.f32.mrb[0].mxu0
      %1572 = vmatprep.mubr.bf16.mxu0 0
      %1573 = vmatmul.mubr.bf16.gmra.mrb[0].mxu0 %v1483
      %v1574 = vpop.f32.mrb[0].mxu0
      %v1575 = vadd.f32 0.0, %v1574
      %v1576 = vpop.f32.mrb[0].mxu0
      %v1577 = vpop.f32.mrb[0].mxu0
      %v1578 = vadd.f32 0.0, %v1577
      %v1579 = vpop.f32.mrb[0].mxu0
      %1580 = vmatprep.mubr.bf16.mxu0 0
      %1581 = vmatmul.mubr.bf16.gmra.mrb[0].mxu0 %v1486
      %v1582 = vpop.f32.mrb[0].mxu0
      %v1583 = vadd.f32 0.0, %v1582
      %v1584 = vpop.f32.mrb[0].mxu0
      %v1585 = vpop.f32.mrb[0].mxu0
      %v1586 = vadd.f32 0.0, %v1585
      %v1587 = vpop.f32.mrb[0].mxu0
      %1588 = vmatprep.mubr.bf16.mxu0 0
      %1589 = vmatmul.mubr.bf16.gmra.mrb[0].mxu0 %v1489
      %v1590 = vpop.f32.mrb[0].mxu0
      %v1591 = vadd.f32 0.0, %v1590
      %v1592 = vpop.f32.mrb[0].mxu0
      %v1593 = vpop.f32.mrb[0].mxu0
      %v1594 = vadd.f32 0.0, %v1593
      %v1595 = vpop.f32.mrb[0].mxu0
      %1596 = vmatprep.mubr.bf16.mxu0 0
      %1597 = vmatmul.mubr.bf16.gmra.mrb[0].mxu0 %v1492
      %v1598 = vpop.f32.mrb[0].mxu0
      %v1599 = vadd.f32 0.0, %v1598
      %v1600 = vpop.f32.mrb[0].mxu0
      %v1601 = vpop.f32.mrb[0].mxu0
      %v1602 = vadd.f32 0.0, %v1601
      %v1603 = vpop.f32.mrb[0].mxu0
      %1604 = vmatprep.mubr.bf16.mxu0 0
      %1605 = vmatmul.mubr.bf16.gmra.mrb[0].mxu0 %v1495
      %v1606 = vpop.f32.mrb[0].mxu0
      %v1607 = vadd.f32 0.0, %v1606
      %v1608 = vpop.f32.mrb[0].mxu0
      %v1609 = vpop.f32.mrb[0].mxu0
      %v1610 = vadd.f32 0.0, %v1609
      %v1611 = vpop.f32.mrb[0].mxu0
      %1612 = vmatprep.mubr.bf16.mxu0 0
      %1613 = vmatmul.mubr.bf16.gmra.mrb[0].mxu0 %v1498
      %v1614 = vpop.f32.mrb[0].mxu0
      %v1615 = vadd.f32 0.0, %v1614
      %v1616 = vpop.f32.mrb[0].mxu0
      %v1617 = vpop.f32.mrb[0].mxu0
      %v1618 = vadd.f32 0.0, %v1617
      %v1619 = vpop.f32.mrb[0].mxu0
      %1620 = vmatprep.mubr.bf16.mxu0 0
      %1621 = vmatmul.mubr.bf16.gmra.mrb[0].mxu0 %v1501
      %v1622 = vpop.f32.mrb[0].mxu0
      %v1623 = vadd.f32 0.0, %v1622
      %v1624 = vpop.f32.mrb[0].mxu0
      %v1625 = vpop.f32.mrb[0].mxu0
      %v1626 = vadd.f32 0.0, %v1625
      %v1627 = vpop.f32.mrb[0].mxu0
      %1628 = vmatprep.mubr.bf16.mxu0 0
      %1629 = vmatmul.mubr.bf16.gmra.mrb[0].mxu0 %v1504
      %v1630 = vpop.f32.mrb[0].mxu0
      %v1631 = vadd.f32 0.0, %v1630
      %v1632 = vpop.f32.mrb[0].mxu0
      %v1633 = vpop.f32.mrb[0].mxu0
      %v1634 = vadd.f32 0.0, %v1633
      %v1635 = vpop.f32.mrb[0].mxu0
      %1636 = vmatprep.mubr.bf16.mxu0 0
      %1637 = vmatmul.mubr.bf16.gmra.mrb[0].mxu0 %v1507
      %v1638 = vpop.f32.mrb[0].mxu0
      %v1639 = vadd.f32 0.0, %v1638
      %v1640 = vpop.f32.mrb[0].mxu0
      %v1641 = vpop.f32.mrb[0].mxu0
      %v1642 = vadd.f32 0.0, %v1641
      %v1643 = vpop.f32.mrb[0].mxu0
      %1644 = vmatprep.mubr.bf16.mxu0 0
      %1645 = vmatmul.mubr.bf16.gmra.mrb[0].mxu0 %v1510
      %v1646 = vpop.f32.mrb[0].mxu0
      %v1647 = vadd.f32 0.0, %v1646
      %v1648 = vpop.f32.mrb[0].mxu0
      %v1649 = vpop.f32.mrb[0].mxu0
      %v1650 = vadd.f32 0.0, %v1649
      %v1651 = vpop.f32.mrb[0].mxu0
      %1652 = vmatprep.mubr.bf16.mxu0 0
      %1653 = vmatmul.mubr.bf16.gmra.mrb[0].mxu0 %v1513
      %v1654 = vpop.f32.mrb[0].mxu0
      %v1655 = vadd.f32 0.0, %v1654
      %v1656 = vpop.f32.mrb[0].mxu0
      %v1657 = vpop.f32.mrb[0].mxu0
      %v1658 = vadd.f32 0.0, %v1657
      %v1659 = vpop.f32.mrb[0].mxu0
      %1660 = vmatprep.mubr.bf16.mxu0 0
      %1661 = vmatmul.mubr.bf16.gmra.mrb[0].mxu0 %v1516
      %v1662 = vpop.f32.mrb[0].mxu0
      %v1663 = vadd.f32 0.0, %v1662
      %v1664 = vpop.f32.mrb[0].mxu0
      %v1665 = vpop.f32.mrb[0].mxu0
      %v1666 = vadd.f32 0.0, %v1665
      %v1667 = vpop.f32.mrb[0].mxu0
      %1668 = vmatprep.mubr.bf16.mxu0 0
      %1669 = vmatmul.mubr.bf16.gmra.mrb[0].mxu0 %v1519
      %v1670 = vpop.f32.mrb[0].mxu0
      %v1671 = vadd.f32 0.0, %v1670
      %v1672 = vpop.f32.mrb[0].mxu0
      %v1673 = vpop.f32.mrb[0].mxu0
      %v1674 = vadd.f32 0.0, %v1673
      %v1675 = vpop.f32.mrb[0].mxu0
      %1676 = vmatprep.mubr.bf16.mxu0 0
      %1677 = vmatmul.mubr.bf16.gmra.mrb[0].mxu0 %v1522
      %v1678 = vpop.f32.mrb[0].mxu0
      %v1679 = vadd.f32 0.0, %v1678
      %v1680 = vpop.f32.mrb[0].mxu0
      %v1681 = vpop.f32.mrb[0].mxu0
      %v1682 = vadd.f32 0.0, %v1681
      %v1683 = vpop.f32.mrb[0].mxu0
      %1684 = vdwg.mxu0
      %v1685 = vadd.f32 %v1395, %v1559
      %v1686 = vadd.f32 %v1396, %v1562
      %v1687 = vadd.f32 %v1397, %v1567
      %v1688 = vadd.f32 %v1398, %v1570
      %v1689 = vadd.f32 %v1399, %v1575
      %v1690 = vadd.f32 %v1400, %v1578
      %v1691 = vadd.f32 %v1401, %v1583
      %v1692 = vadd.f32 %v1402, %v1586
      %v1693 = vadd.f32 %v1403, %v1591
      %v1694 = vadd.f32 %v1404, %v1594
      %v1695 = vadd.f32 %v1405, %v1599
      %v1696 = vadd.f32 %v1406, %v1602
      %v1697 = vadd.f32 %v1407, %v1607
      %v1698 = vadd.f32 %v1408, %v1610
      %v1699 = vadd.f32 %v1409, %v1615
      %v1700 = vadd.f32 %v1410, %v1618
      %v1701 = vadd.f32 %v1411, %v1623
      %v1702 = vadd.f32 %v1412, %v1626
      %v1703 = vadd.f32 %v1413, %v1631
      %v1704 = vadd.f32 %v1414, %v1634
      %v1705 = vadd.f32 %v1415, %v1639
      %v1706 = vadd.f32 %v1416, %v1642
      %v1707 = vadd.f32 %v1417, %v1647
      %v1708 = vadd.f32 %v1418, %v1650
      %v1709 = vadd.f32 %v1419, %v1655
      %v1710 = vadd.f32 %v1420, %v1658
      %v1711 = vadd.f32 %v1421, %v1663
      %v1712 = vadd.f32 %v1422, %v1666
      %v1713 = vadd.f32 %v1423, %v1671
      %v1714 = vadd.f32 %v1424, %v1674
      %v1715 = vadd.f32 %v1425, %v1679
      %v1716 = vadd.f32 %v1426, %v1682
      %1717 = vst [vmem:[#allocation2] sm:$0xff] %v1685
      %1718 = vst [vmem:[#allocation2 + $0x8] sm:$0xff] %v1686
      %1719 = vst [vmem:[#allocation2 + $0x10] sm:$0xff] %v1687
      %1720 = vst [vmem:[#allocation2 + $0x18] sm:$0xff] %v1688
      %1721 = vst [vmem:[#allocation2 + $0x20] sm:$0xff] %v1689
      %1722 = vst [vmem:[#allocation2 + $0x28] sm:$0xff] %v1690
      %1723 = vst [vmem:[#allocation2 + $0x30] sm:$0xff] %v1691
      %1724 = vst [vmem:[#allocation2 + $0x38] sm:$0xff] %v1692
      %1725 = vst [vmem:[#allocation2 + $0x40] sm:$0xff] %v1693
      %1726 = vst [vmem:[#allocation2 + $0x48] sm:$0xff] %v1694
      %1727 = vst [vmem:[#allocation2 + $0x50] sm:$0xff] %v1695
      %1728 = vst [vmem:[#allocation2 + $0x58] sm:$0xff] %v1696
      %1729 = vst [vmem:[#allocation2 + $0x60] sm:$0xff] %v1697
      %1730 = vst [vmem:[#allocation2 + $0x68] sm:$0xff] %v1698
      %1731 = vst [vmem:[#allocation2 + $0x70] sm:$0xff] %v1699
      %1732 = vst [vmem:[#allocation2 + $0x78] sm:$0xff] %v1700
      %1733 = vst [vmem:[#allocation2 + $0x80] sm:$0xff] %v1701
      %1734 = vst [vmem:[#allocation2 + $0x88] sm:$0xff] %v1702
      %1735 = vst [vmem:[#allocation2 + $0x90] sm:$0xff] %v1703
      %1736 = vst [vmem:[#allocation2 + $0x98] sm:$0xff] %v1704
      %1737 = vst [vmem:[#allocation2 + $0xa0] sm:$0xff] %v1705
      %1738 = vst [vmem:[#allocation2 + $0xa8] sm:$0xff] %v1706
      %1739 = vst [vmem:[#allocation2 + $0xb0] sm:$0xff] %v1707
      %1740 = vst [vmem:[#allocation2 + $0xb8] sm:$0xff] %v1708
      %1741 = vst [vmem:[#allocation2 + $0xc0] sm:$0xff] %v1709
      %1742 = vst [vmem:[#allocation2 + $0xc8] sm:$0xff] %v1710
      %1743 = vst [vmem:[#allocation2 + $0xd0] sm:$0xff] %v1711
      %1744 = vst [vmem:[#allocation2 + $0xd8] sm:$0xff] %v1712
      %1745 = vst [vmem:[#allocation2 + $0xe0] sm:$0xff] %v1713
      %1746 = vst [vmem:[#allocation2 + $0xe8] sm:$0xff] %v1714
      %1747 = vst [vmem:[#allocation2 + $0xf0] sm:$0xff] %v1715
      %1748 = vst [vmem:[#allocation2 + $0xf8] sm:$0xff] %v1716
      %v1749 = vld [vmem:[%s1362 + $0x1] sm:$0xff]
      %v1750 = vld [vmem:[%s1362 + $0x9] sm:$0xff]
      %v1751 = vld [vmem:[%s1362 + $0x19] sm:$0xff]
      %v1752 = vld [vmem:[%s1362 + $0x21] sm:$0xff]
      %v1753 = vld [vmem:[%s1362 + $0x31] sm:$0xff]
      %v1754 = vld [vmem:[%s1362 + $0x39] sm:$0xff]
      %v1755 = vld [vmem:[%s1362 + $0x49] sm:$0xff]
      %v1756 = vld [vmem:[%s1362 + $0x51] sm:$0xff]
      %v1757 = vld [vmem:[%s1362 + $0x61] sm:$0xff]
      %v1758 = vld [vmem:[%s1362 + $0x69] sm:$0xff]
      %v1759 = vld [vmem:[%s1362 + $0x79] sm:$0xff]
      %v1760 = vld [vmem:[%s1362 + $0x81] sm:$0xff]
      %v1761 = vld [vmem:[%s1362 + $0x91] sm:$0xff]
      %v1762 = vld [vmem:[%s1362 + $0x99] sm:$0xff]
      %v1763 = vld [vmem:[%s1362 + $0xa9] sm:$0xff]
      %v1764 = vld [vmem:[%s1362 + $0xb1] sm:$0xff]
      %v1765 = vld [vmem:[%s1362 + $0xc1] sm:$0xff]
      %v1766 = vld [vmem:[%s1362 + $0xc9] sm:$0xff]
      %v1767 = vld [vmem:[%s1362 + $0xd9] sm:$0xff]
      %v1768 = vld [vmem:[%s1362 + $0xe1] sm:$0xff]
      %v1769 = vld [vmem:[%s1362 + $0xf1] sm:$0xff]
      %v1770 = vld [vmem:[%s1362 + $0xf9] sm:$0xff]
      %v1771 = vld [vmem:[%s1362 + $0x109] sm:$0xff]
      %v1772 = vld [vmem:[%s1362 + $0x111] sm:$0xff]
      %v1773 = vld [vmem:[%s1362 + $0x121] sm:$0xff]
      %v1774 = vld [vmem:[%s1362 + $0x129] sm:$0xff]
      %v1775 = vld [vmem:[%s1362 + $0x139] sm:$0xff]
      %v1776 = vld [vmem:[%s1362 + $0x141] sm:$0xff]
      %v1777 = vld [vmem:[%s1362 + $0x151] sm:$0xff]
      %v1778 = vld [vmem:[%s1362 + $0x159] sm:$0xff]
      %v1779 = vld [vmem:[%s1362 + $0x169] sm:$0xff]
      %v1780 = vld [vmem:[%s1362 + $0x171] sm:$0xff]
      %v1781 = vld [vmem:[#allocation2] sm:$0xff]
      %v1782 = vld [vmem:[#allocation2 + $0x8] sm:$0xff]
      %v1783 = vld [vmem:[#allocation2 + $0x10] sm:$0xff]
      %v1784 = vld [vmem:[#allocation2 + $0x18] sm:$0xff]
      %v1785 = vld [vmem:[#allocation2 + $0x20] sm:$0xff]
      %v1786 = vld [vmem:[#allocation2 + $0x28] sm:$0xff]
      %v1787 = vld [vmem:[#allocation2 + $0x30] sm:$0xff]
      %v1788 = vld [vmem:[#allocation2 + $0x38] sm:$0xff]
      %v1789 = vld [vmem:[#allocation2 + $0x40] sm:$0xff]
      %v1790 = vld [vmem:[#allocation2 + $0x48] sm:$0xff]
      %v1791 = vld [vmem:[#allocation2 + $0x50] sm:$0xff]
      %v1792 = vld [vmem:[#allocation2 + $0x58] sm:$0xff]
      %v1793 = vld [vmem:[#allocation2 + $0x60] sm:$0xff]
      %v1794 = vld [vmem:[#allocation2 + $0x68] sm:$0xff]
      %v1795 = vld [vmem:[#allocation2 + $0x70] sm:$0xff]
      %v1796 = vld [vmem:[#allocation2 + $0x78] sm:$0xff]
      %v1797 = vld [vmem:[#allocation2 + $0x80] sm:$0xff]
      %v1798 = vld [vmem:[#allocation2 + $0x88] sm:$0xff]
      %v1799 = vld [vmem:[#allocation2 + $0x90] sm:$0xff]
      %v1800 = vld [vmem:[#allocation2 + $0x98] sm:$0xff]
      %v1801 = vld [vmem:[#allocation2 + $0xa0] sm:$0xff]
      %v1802 = vld [vmem:[#allocation2 + $0xa8] sm:$0xff]
      %v1803 = vld [vmem:[#allocation2 + $0xb0] sm:$0xff]
      %v1804 = vld [vmem:[#allocation2 + $0xb8] sm:$0xff]
      %v1805 = vld [vmem:[#allocation2 + $0xc0] sm:$0xff]
      %v1806 = vld [vmem:[#allocation2 + $0xc8] sm:$0xff]
      %v1807 = vld [vmem:[#allocation2 + $0xd0] sm:$0xff]
      %v1808 = vld [vmem:[#allocation2 + $0xd8] sm:$0xff]
      %v1809 = vld [vmem:[#allocation2 + $0xe0] sm:$0xff]
      %v1810 = vld [vmem:[#allocation2 + $0xe8] sm:$0xff]
      %v1811 = vld [vmem:[#allocation2 + $0xf0] sm:$0xff]
      %v1812 = vld [vmem:[#allocation2 + $0xf8] sm:$0xff]
      %v1813 = vpack.c.bf16 %v1750, %v1749
      %v1814 = vpack.c.bf16 %v1752, %v1751
      %v1815 = vpack.c.bf16 %v1754, %v1753
      %v1816 = vpack.c.bf16 %v1756, %v1755
      %v1817 = vpack.c.bf16 %v1758, %v1757
      %v1818 = vpack.c.bf16 %v1760, %v1759
      %v1819 = vpack.c.bf16 %v1762, %v1761
      %v1820 = vpack.c.bf16 %v1764, %v1763
      %v1821 = vpack.c.bf16 %v1766, %v1765
      %v1822 = vpack.c.bf16 %v1768, %v1767
      %v1823 = vpack.c.bf16 %v1770, %v1769
      %v1824 = vpack.c.bf16 %v1772, %v1771
      %v1825 = vpack.c.bf16 %v1774, %v1773
      %v1826 = vpack.c.bf16 %v1776, %v1775
      %v1827 = vpack.c.bf16 %v1778, %v1777
      %v1828 = vpack.c.bf16 %v1780, %v1779
      %s1829 = scalar_lea.vmem %s1, 128
      %v1830 = vld [vmem:[%s1829] sm:$0xf]
      %v1831 = vld [vmem:[%s1829 + $0x4] sm:$0xf]
      %v1832 = vld [vmem:[%s1829 + $0x8] sm:$0xf]
      %v1833 = vld [vmem:[%s1829 + $0xc] sm:$0xf]
      %v1834 = vld [vmem:[%s1829 + $0x10] sm:$0xf]
      %v1835 = vld [vmem:[%s1829 + $0x14] sm:$0xf]
      %v1836 = vld [vmem:[%s1829 + $0x18] sm:$0xf]
      %v1837 = vld [vmem:[%s1829 + $0x1c] sm:$0xf]
      %v1846 = vunpack.c.l.b16 %v1830
      %v1847 = vunpack.c.l.b16 %v1831
      %v1848 = vunpack.c.l.b16 %v1832
      %v1849 = vunpack.c.l.b16 %v1833
      %v1850 = vunpack.c.l.b16 %v1834
      %v1851 = vunpack.c.l.b16 %v1835
      %v1852 = vunpack.c.l.b16 %v1836
      %v1853 = vunpack.c.l.b16 %v1837
      %v1854 = vpack.c.b16 %v1847, %v1846
      %v1855 = vpack.c.b16 %v1849, %v1848
      %v1856 = vpack.c.b16 %v1851, %v1850
      %v1857 = vpack.c.b16 %v1853, %v1852
      %v1863 = vsel %vm316, %v1813, 0
      %v1866 = vsel %vm316, %v1814, 0
      %v1869 = vsel %vm316, %v1815, 0
      %v1872 = vsel %vm316, %v1816, 0
      %v1875 = vsel %vm316, %v1817, 0
      %v1878 = vsel %vm316, %v1818, 0
      %v1881 = vsel %vm316, %v1819, 0
      %v1884 = vsel %vm316, %v1820, 0
      %v1887 = vsel %vm316, %v1821, 0
      %v1890 = vsel %vm316, %v1822, 0
      %v1893 = vsel %vm316, %v1823, 0
      %v1896 = vsel %vm316, %v1824, 0
      %v1899 = vsel %vm316, %v1825, 0
      %v1902 = vsel %vm316, %v1826, 0
      %v1905 = vsel %vm316, %v1827, 0
      %v1908 = vsel %vm316, %v1828, 0
      %1910 = vmatprep.subr.bf16.mxu0 0
      %1911 = vmatpush1.bf16.msra.mxu0 %v1854
      %1912 = vmatprep.subr.bf16.mxu0 0
      %1913 = vmatpush1.bf16.msra.mxu0 %v1855
      %1914 = vmatprep.subr.bf16.mxu0 0
      %1915 = vmatpush1.bf16.msra.mxu0 %v1856
      %1916 = vmatprep.subr.bf16.mxu0 0
      %1917 = vmatpush1.bf16.msra.mxu0 %v1857
      %1918 = vmatprep.subr.bf16.mxu0 0
      %1919 = vmatpush1.bf16.msra.mxu0 0
      %1920 = vmatprep.subr.bf16.mxu0 0
      %1921 = vmatpush1.bf16.msra.mxu0 0
      %1922 = vmatprep.subr.bf16.mxu0 0
      %1923 = vmatpush1.bf16.msra.mxu0 0
      %1924 = vmatprep.subr.bf16.mxu0 0
      %1925 = vmatpush1.bf16.msra.mxu0 0
      %1926 = vmatprep.subr.bf16.mxu0 0
      %1927 = vmatpush1.bf16.msra.mxu0 0
      %1928 = vmatprep.subr.bf16.mxu0 0
      %1929 = vmatpush1.bf16.msra.mxu0 0
      %1930 = vmatprep.subr.bf16.mxu0 0
      %1931 = vmatpush1.bf16.msra.mxu0 0
      %1932 = vmatprep.subr.bf16.mxu0 0
      %1933 = vmatpush1.bf16.msra.mxu0 0
      %1934 = vmatprep.subr.bf16.mxu0 0
      %1935 = vmatpush1.bf16.msra.mxu0 0
      %1936 = vmatprep.subr.bf16.mxu0 0
      %1937 = vmatpush1.bf16.msra.mxu0 0
      %1938 = vmatprep.subr.bf16.mxu0 0
      %1939 = vmatpush1.bf16.msra.mxu0 0
      %1940 = vmatprep.subr.bf16.mxu0 0
      %1941 = vmatpush1.bf16.msra.mxu0 0
      %1942 = vmatprep.mubr.bf16.mxu0 0
      %1943 = vmatmul.mubr.bf16.gmra.mrb[0].mxu0 %v1863
      %v1944 = vpop.f32.mrb[0].mxu0
      %v1945 = vadd.f32 0.0, %v1944
      %v1946 = vpop.f32.mrb[0].mxu0
      %v1947 = vpop.f32.mrb[0].mxu0
      %v1948 = vadd.f32 0.0, %v1947
      %v1949 = vpop.f32.mrb[0].mxu0
      %1950 = vmatprep.mubr.bf16.mxu0 0
      %1951 = vmatmul.mubr.bf16.gmra.mrb[0].mxu0 %v1866
      %v1952 = vpop.f32.mrb[0].mxu0
      %v1953 = vadd.f32 0.0, %v1952
      %v1954 = vpop.f32.mrb[0].mxu0
      %v1955 = vpop.f32.mrb[0].mxu0
      %v1956 = vadd.f32 0.0, %v1955
      %v1957 = vpop.f32.mrb[0].mxu0
      %1958 = vmatprep.mubr.bf16.mxu0 0
      %1959 = vmatmul.mubr.bf16.gmra.mrb[0].mxu0 %v1869
      %v1960 = vpop.f32.mrb[0].mxu0
      %v1961 = vadd.f32 0.0, %v1960
      %v1962 = vpop.f32.mrb[0].mxu0
      %v1963 = vpop.f32.mrb[0].mxu0
      %v1964 = vadd.f32 0.0, %v1963
      %v1965 = vpop.f32.mrb[0].mxu0
      %1966 = vmatprep.mubr.bf16.mxu0 0
      %1967 = vmatmul.mubr.bf16.gmra.mrb[0].mxu0 %v1872
      %v1968 = vpop.f32.mrb[0].mxu0
      %v1969 = vadd.f32 0.0, %v1968
      %v1970 = vpop.f32.mrb[0].mxu0
      %v1971 = vpop.f32.mrb[0].mxu0
      %v1972 = vadd.f32 0.0, %v1971
      %v1973 = vpop.f32.mrb[0].mxu0
      %1974 = vmatprep.mubr.bf16.mxu0 0
      %1975 = vmatmul.mubr.bf16.gmra.mrb[0].mxu0 %v1875
      %v1976 = vpop.f32.mrb[0].mxu0
      %v1977 = vadd.f32 0.0, %v1976
      %v1978 = vpop.f32.mrb[0].mxu0
      %v1979 = vpop.f32.mrb[0].mxu0
      %v1980 = vadd.f32 0.0, %v1979
      %v1981 = vpop.f32.mrb[0].mxu0
      %1982 = vmatprep.mubr.bf16.mxu0 0
      %1983 = vmatmul.mubr.bf16.gmra.mrb[0].mxu0 %v1878
      %v1984 = vpop.f32.mrb[0].mxu0
      %v1985 = vadd.f32 0.0, %v1984
      %v1986 = vpop.f32.mrb[0].mxu0
      %v1987 = vpop.f32.mrb[0].mxu0
      %v1988 = vadd.f32 0.0, %v1987
      %v1989 = vpop.f32.mrb[0].mxu0
      %1990 = vmatprep.mubr.bf16.mxu0 0
      %1991 = vmatmul.mubr.bf16.gmra.mrb[0].mxu0 %v1881
      %v1992 = vpop.f32.mrb[0].mxu0
      %v1993 = vadd.f32 0.0, %v1992
      %v1994 = vpop.f32.mrb[0].mxu0
      %v1995 = vpop.f32.mrb[0].mxu0
      %v1996 = vadd.f32 0.0, %v1995
      %v1997 = vpop.f32.mrb[0].mxu0
      %1998 = vmatprep.mubr.bf16.mxu0 0
      %1999 = vmatmul.mubr.bf16.gmra.mrb[0].mxu0 %v1884
      %v2000 = vpop.f32.mrb[0].mxu0
      %v2001 = vadd.f32 0.0, %v2000
      %v2002 = vpop.f32.mrb[0].mxu0
      %v2003 = vpop.f32.mrb[0].mxu0
      %v2004 = vadd.f32 0.0, %v2003
      %v2005 = vpop.f32.mrb[0].mxu0
      %2006 = vmatprep.mubr.bf16.mxu0 0
      %2007 = vmatmul.mubr.bf16.gmra.mrb[0].mxu0 %v1887
      %v2008 = vpop.f32.mrb[0].mxu0
      %v2009 = vadd.f32 0.0, %v2008
      %v2010 = vpop.f32.mrb[0].mxu0
      %v2011 = vpop.f32.mrb[0].mxu0
      %v2012 = vadd.f32 0.0, %v2011
      %v2013 = vpop.f32.mrb[0].mxu0
      %2014 = vmatprep.mubr.bf16.mxu0 0
      %2015 = vmatmul.mubr.bf16.gmra.mrb[0].mxu0 %v1890
      %v2016 = vpop.f32.mrb[0].mxu0
      %v2017 = vadd.f32 0.0, %v2016
      %v2018 = vpop.f32.mrb[0].mxu0
      %v2019 = vpop.f32.mrb[0].mxu0
      %v2020 = vadd.f32 0.0, %v2019
      %v2021 = vpop.f32.mrb[0].mxu0
      %2022 = vmatprep.mubr.bf16.mxu0 0
      %2023 = vmatmul.mubr.bf16.gmra.mrb[0].mxu0 %v1893
      %v2024 = vpop.f32.mrb[0].mxu0
      %v2025 = vadd.f32 0.0, %v2024
      %v2026 = vpop.f32.mrb[0].mxu0
      %v2027 = vpop.f32.mrb[0].mxu0
      %v2028 = vadd.f32 0.0, %v2027
      %v2029 = vpop.f32.mrb[0].mxu0
      %2030 = vmatprep.mubr.bf16.mxu0 0
      %2031 = vmatmul.mubr.bf16.gmra.mrb[0].mxu0 %v1896
      %v2032 = vpop.f32.mrb[0].mxu0
      %v2033 = vadd.f32 0.0, %v2032
      %v2034 = vpop.f32.mrb[0].mxu0
      %v2035 = vpop.f32.mrb[0].mxu0
      %v2036 = vadd.f32 0.0, %v2035
      %v2037 = vpop.f32.mrb[0].mxu0
      %2038 = vmatprep.mubr.bf16.mxu0 0
      %2039 = vmatmul.mubr.bf16.gmra.mrb[0].mxu0 %v1899
      %v2040 = vpop.f32.mrb[0].mxu0
      %v2041 = vadd.f32 0.0, %v2040
      %v2042 = vpop.f32.mrb[0].mxu0
      %v2043 = vpop.f32.mrb[0].mxu0
      %v2044 = vadd.f32 0.0, %v2043
      %v2045 = vpop.f32.mrb[0].mxu0
      %2046 = vmatprep.mubr.bf16.mxu0 0
      %2047 = vmatmul.mubr.bf16.gmra.mrb[0].mxu0 %v1902
      %v2048 = vpop.f32.mrb[0].mxu0
      %v2049 = vadd.f32 0.0, %v2048
      %v2050 = vpop.f32.mrb[0].mxu0
      %v2051 = vpop.f32.mrb[0].mxu0
      %v2052 = vadd.f32 0.0, %v2051
      %v2053 = vpop.f32.mrb[0].mxu0
      %2054 = vmatprep.mubr.bf16.mxu0 0
      %2055 = vmatmul.mubr.bf16.gmra.mrb[0].mxu0 %v1905
      %v2056 = vpop.f32.mrb[0].mxu0
      %v2057 = vadd.f32 0.0, %v2056
      %v2058 = vpop.f32.mrb[0].mxu0
      %v2059 = vpop.f32.mrb[0].mxu0
      %v2060 = vadd.f32 0.0, %v2059
      %v2061 = vpop.f32.mrb[0].mxu0
      %2062 = vmatprep.mubr.bf16.mxu0 0
      %2063 = vmatmul.mubr.bf16.gmra.mrb[0].mxu0 %v1908
      %v2064 = vpop.f32.mrb[0].mxu0
      %v2065 = vadd.f32 0.0, %v2064
      %v2066 = vpop.f32.mrb[0].mxu0
      %v2067 = vpop.f32.mrb[0].mxu0
      %v2068 = vadd.f32 0.0, %v2067
      %v2069 = vpop.f32.mrb[0].mxu0
      %2070 = vdwg.mxu0
      %v2071 = vadd.f32 %v1781, %v1945
      %v2072 = vadd.f32 %v1782, %v1948
      %v2073 = vadd.f32 %v1783, %v1953
      %v2074 = vadd.f32 %v1784, %v1956
      %v2075 = vadd.f32 %v1785, %v1961
      %v2076 = vadd.f32 %v1786, %v1964
      %v2077 = vadd.f32 %v1787, %v1969
      %v2078 = vadd.f32 %v1788, %v1972
      %v2079 = vadd.f32 %v1789, %v1977
      %v2080 = vadd.f32 %v1790, %v1980
      %v2081 = vadd.f32 %v1791, %v1985
      %v2082 = vadd.f32 %v1792, %v1988
      %v2083 = vadd.f32 %v1793, %v1993
      %v2084 = vadd.f32 %v1794, %v1996
      %v2085 = vadd.f32 %v1795, %v2001
      %v2086 = vadd.f32 %v1796, %v2004
      %v2087 = vadd.f32 %v1797, %v2009
      %v2088 = vadd.f32 %v1798, %v2012
      %v2089 = vadd.f32 %v1799, %v2017
      %v2090 = vadd.f32 %v1800, %v2020
      %v2091 = vadd.f32 %v1801, %v2025
      %v2092 = vadd.f32 %v1802, %v2028
      %v2093 = vadd.f32 %v1803, %v2033
      %v2094 = vadd.f32 %v1804, %v2036
      %v2095 = vadd.f32 %v1805, %v2041
      %v2096 = vadd.f32 %v1806, %v2044
      %v2097 = vadd.f32 %v1807, %v2049
      %v2098 = vadd.f32 %v1808, %v2052
      %v2099 = vadd.f32 %v1809, %v2057
      %v2100 = vadd.f32 %v1810, %v2060
      %v2101 = vadd.f32 %v1811, %v2065
      %v2102 = vadd.f32 %v1812, %v2068
      %2103 = vst [vmem:[#allocation2] sm:$0xff] %v2071
      %2104 = vst [vmem:[#allocation2 + $0x8] sm:$0xff] %v2072
      %2105 = vst [vmem:[#allocation2 + $0x10] sm:$0xff] %v2073
      %2106 = vst [vmem:[#allocation2 + $0x18] sm:$0xff] %v2074
      %2107 = vst [vmem:[#allocation2 + $0x20] sm:$0xff] %v2075
      %2108 = vst [vmem:[#allocation2 + $0x28] sm:$0xff] %v2076
      %2109 = vst [vmem:[#allocation2 + $0x30] sm:$0xff] %v2077
      %2110 = vst [vmem:[#allocation2 + $0x38] sm:$0xff] %v2078
      %2111 = vst [vmem:[#allocation2 + $0x40] sm:$0xff] %v2079
      %2112 = vst [vmem:[#allocation2 + $0x48] sm:$0xff] %v2080
      %2113 = vst [vmem:[#allocation2 + $0x50] sm:$0xff] %v2081
      %2114 = vst [vmem:[#allocation2 + $0x58] sm:$0xff] %v2082
      %2115 = vst [vmem:[#allocation2 + $0x60] sm:$0xff] %v2083
      %2116 = vst [vmem:[#allocation2 + $0x68] sm:$0xff] %v2084
      %2117 = vst [vmem:[#allocation2 + $0x70] sm:$0xff] %v2085
      %2118 = vst [vmem:[#allocation2 + $0x78] sm:$0xff] %v2086
      %2119 = vst [vmem:[#allocation2 + $0x80] sm:$0xff] %v2087
      %2120 = vst [vmem:[#allocation2 + $0x88] sm:$0xff] %v2088
      %2121 = vst [vmem:[#allocation2 + $0x90] sm:$0xff] %v2089
      %2122 = vst [vmem:[#allocation2 + $0x98] sm:$0xff] %v2090
      %2123 = vst [vmem:[#allocation2 + $0xa0] sm:$0xff] %v2091
      %2124 = vst [vmem:[#allocation2 + $0xa8] sm:$0xff] %v2092
      %2125 = vst [vmem:[#allocation2 + $0xb0] sm:$0xff] %v2093
      %2126 = vst [vmem:[#allocation2 + $0xb8] sm:$0xff] %v2094
      %2127 = vst [vmem:[#allocation2 + $0xc0] sm:$0xff] %v2095
      %2128 = vst [vmem:[#allocation2 + $0xc8] sm:$0xff] %v2096
      %2129 = vst [vmem:[#allocation2 + $0xd0] sm:$0xff] %v2097
      %2130 = vst [vmem:[#allocation2 + $0xd8] sm:$0xff] %v2098
      %2131 = vst [vmem:[#allocation2 + $0xe0] sm:$0xff] %v2099
      %2132 = vst [vmem:[#allocation2 + $0xe8] sm:$0xff] %v2100
      %2133 = vst [vmem:[#allocation2 + $0xf0] sm:$0xff] %v2101
      %2134 = vst [vmem:[#allocation2 + $0xf8] sm:$0xff] %v2102
      %v2135 = vld [vmem:[%s1362 + $0x2] sm:$0xff]
      %v2136 = vld [vmem:[%s1362 + $0xa] sm:$0xff]
      %v2137 = vld [vmem:[%s1362 + $0x1a] sm:$0xff]
      %v2138 = vld [vmem:[%s1362 + $0x22] sm:$0xff]
      %v2139 = vld [vmem:[%s1362 + $0x32] sm:$0xff]
      %v2140 = vld [vmem:[%s1362 + $0x3a] sm:$0xff]
      %v2141 = vld [vmem:[%s1362 + $0x4a] sm:$0xff]
      %v2142 = vld [vmem:[%s1362 + $0x52] sm:$0xff]
      %v2143 = vld [vmem:[%s1362 + $0x62] sm:$0xff]
      %v2144 = vld [vmem:[%s1362 + $0x6a] sm:$0xff]
      %v2145 = vld [vmem:[%s1362 + $0x7a] sm:$0xff]
      %v2146 = vld [vmem:[%s1362 + $0x82] sm:$0xff]
      %v2147 = vld [vmem:[%s1362 + $0x92] sm:$0xff]
      %v2148 = vld [vmem:[%s1362 + $0x9a] sm:$0xff]
      %v2149 = vld [vmem:[%s1362 + $0xaa] sm:$0xff]
      %v2150 = vld [vmem:[%s1362 + $0xb2] sm:$0xff]
      %v2151 = vld [vmem:[%s1362 + $0xc2] sm:$0xff]
      %v2152 = vld [vmem:[%s1362 + $0xca] sm:$0xff]
      %v2153 = vld [vmem:[%s1362 + $0xda] sm:$0xff]
      %v2154 = vld [vmem:[%s1362 + $0xe2] sm:$0xff]
      %v2155 = vld [vmem:[%s1362 + $0xf2] sm:$0xff]
      %v2156 = vld [vmem:[%s1362 + $0xfa] sm:$0xff]
      %v2157 = vld [vmem:[%s1362 + $0x10a] sm:$0xff]
      %v2158 = vld [vmem:[%s1362 + $0x112] sm:$0xff]
      %v2159 = vld [vmem:[%s1362 + $0x122] sm:$0xff]
      %v2160 = vld [vmem:[%s1362 + $0x12a] sm:$0xff]
      %v2161 = vld [vmem:[%s1362 + $0x13a] sm:$0xff]
      %v2162 = vld [vmem:[%s1362 + $0x142] sm:$0xff]
      %v2163 = vld [vmem:[%s1362 + $0x152] sm:$0xff]
      %v2164 = vld [vmem:[%s1362 + $0x15a] sm:$0xff]
      %v2165 = vld [vmem:[%s1362 + $0x16a] sm:$0xff]
      %v2166 = vld [vmem:[%s1362 + $0x172] sm:$0xff]
      %v2167 = vld [vmem:[#allocation2] sm:$0xff]
      %v2168 = vld [vmem:[#allocation2 + $0x8] sm:$0xff]
      %v2169 = vld [vmem:[#allocation2 + $0x10] sm:$0xff]
      %v2170 = vld [vmem:[#allocation2 + $0x18] sm:$0xff]
      %v2171 = vld [vmem:[#allocation2 + $0x20] sm:$0xff]
      %v2172 = vld [vmem:[#allocation2 + $0x28] sm:$0xff]
      %v2173 = vld [vmem:[#allocation2 + $0x30] sm:$0xff]
      %v2174 = vld [vmem:[#allocation2 + $0x38] sm:$0xff]
      %v2175 = vld [vmem:[#allocation2 + $0x40] sm:$0xff]
      %v2176 = vld [vmem:[#allocation2 + $0x48] sm:$0xff]
      %v2177 = vld [vmem:[#allocation2 + $0x50] sm:$0xff]
      %v2178 = vld [vmem:[#allocation2 + $0x58] sm:$0xff]
      %v2179 = vld [vmem:[#allocation2 + $0x60] sm:$0xff]
      %v2180 = vld [vmem:[#allocation2 + $0x68] sm:$0xff]
      %v2181 = vld [vmem:[#allocation2 + $0x70] sm:$0xff]
      %v2182 = vld [vmem:[#allocation2 + $0x78] sm:$0xff]
      %v2183 = vld [vmem:[#allocation2 + $0x80] sm:$0xff]
      %v2184 = vld [vmem:[#allocation2 + $0x88] sm:$0xff]
      %v2185 = vld [vmem:[#allocation2 + $0x90] sm:$0xff]
      %v2186 = vld [vmem:[#allocation2 + $0x98] sm:$0xff]
      %v2187 = vld [vmem:[#allocation2 + $0xa0] sm:$0xff]
      %v2188 = vld [vmem:[#allocation2 + $0xa8] sm:$0xff]
      %v2189 = vld [vmem:[#allocation2 + $0xb0] sm:$0xff]
      %v2190 = vld [vmem:[#allocation2 + $0xb8] sm:$0xff]
      %v2191 = vld [vmem:[#allocation2 + $0xc0] sm:$0xff]
      %v2192 = vld [vmem:[#allocation2 + $0xc8] sm:$0xff]
      %v2193 = vld [vmem:[#allocation2 + $0xd0] sm:$0xff]
      %v2194 = vld [vmem:[#allocation2 + $0xd8] sm:$0xff]
      %v2195 = vld [vmem:[#allocation2 + $0xe0] sm:$0xff]
      %v2196 = vld [vmem:[#allocation2 + $0xe8] sm:$0xff]
      %v2197 = vld [vmem:[#allocation2 + $0xf0] sm:$0xff]
      %v2198 = vld [vmem:[#allocation2 + $0xf8] sm:$0xff]
      %v2199 = vpack.c.bf16 %v2136, %v2135
      %v2200 = vpack.c.bf16 %v2138, %v2137
      %v2201 = vpack.c.bf16 %v2140, %v2139
      %v2202 = vpack.c.bf16 %v2142, %v2141
      %v2203 = vpack.c.bf16 %v2144, %v2143
      %v2204 = vpack.c.bf16 %v2146, %v2145
      %v2205 = vpack.c.bf16 %v2148, %v2147
      %v2206 = vpack.c.bf16 %v2150, %v2149
      %v2207 = vpack.c.bf16 %v2152, %v2151
      %v2208 = vpack.c.bf16 %v2154, %v2153
      %v2209 = vpack.c.bf16 %v2156, %v2155
      %v2210 = vpack.c.bf16 %v2158, %v2157
      %v2211 = vpack.c.bf16 %v2160, %v2159
      %v2212 = vpack.c.bf16 %v2162, %v2161
      %v2213 = vpack.c.bf16 %v2164, %v2163
      %v2214 = vpack.c.bf16 %v2166, %v2165
      %s2215 = scalar_lea.vmem %s1, 160
      %v2216 = vld [vmem:[%s2215] sm:$0xf]
      %v2217 = vld [vmem:[%s2215 + $0x4] sm:$0xf]
      %v2218 = vld [vmem:[%s2215 + $0x8] sm:$0xf]
      %v2219 = vld [vmem:[%s2215 + $0xc] sm:$0xf]
      %v2220 = vld [vmem:[%s2215 + $0x10] sm:$0xf]
      %v2221 = vld [vmem:[%s2215 + $0x14] sm:$0xf]
      %v2222 = vld [vmem:[%s2215 + $0x18] sm:$0xf]
      %v2223 = vld [vmem:[%s2215 + $0x1c] sm:$0xf]
      %v2232 = vunpack.c.l.b16 %v2216
      %v2233 = vunpack.c.l.b16 %v2217
      %v2234 = vunpack.c.l.b16 %v2218
      %v2235 = vunpack.c.l.b16 %v2219
      %v2236 = vunpack.c.l.b16 %v2220
      %v2237 = vunpack.c.l.b16 %v2221
      %v2238 = vunpack.c.l.b16 %v2222
      %v2239 = vunpack.c.l.b16 %v2223
      %v2240 = vpack.c.b16 %v2233, %v2232
      %v2241 = vpack.c.b16 %v2235, %v2234
      %v2242 = vpack.c.b16 %v2237, %v2236
      %v2243 = vpack.c.b16 %v2239, %v2238
      %v2249 = vsel %vm316, %v2199, 0
      %v2252 = vsel %vm316, %v2200, 0
      %v2255 = vsel %vm316, %v2201, 0
      %v2258 = vsel %vm316, %v2202, 0
      %v2261 = vsel %vm316, %v2203, 0
      %v2264 = vsel %vm316, %v2204, 0
      %v2267 = vsel %vm316, %v2205, 0
      %v2270 = vsel %vm316, %v2206, 0
      %v2273 = vsel %vm316, %v2207, 0
      %v2276 = vsel %vm316, %v2208, 0
      %v2279 = vsel %vm316, %v2209, 0
      %v2282 = vsel %vm316, %v2210, 0
      %v2285 = vsel %vm316, %v2211, 0
      %v2288 = vsel %vm316, %v2212, 0
      %v2291 = vsel %vm316, %v2213, 0
      %v2294 = vsel %vm316, %v2214, 0
      %2296 = vmatprep.subr.bf16.mxu0 0
      %2297 = vmatpush1.bf16.msra.mxu0 %v2240
      %2298 = vmatprep.subr.bf16.mxu0 0
      %2299 = vmatpush1.bf16.msra.mxu0 %v2241
      %2300 = vmatprep.subr.bf16.mxu0 0
      %2301 = vmatpush1.bf16.msra.mxu0 %v2242
      %2302 = vmatprep.subr.bf16.mxu0 0
      %2303 = vmatpush1.bf16.msra.mxu0 %v2243
      %2304 = vmatprep.subr.bf16.mxu0 0
      %2305 = vmatpush1.bf16.msra.mxu0 0
      %2306 = vmatprep.subr.bf16.mxu0 0
      %2307 = vmatpush1.bf16.msra.mxu0 0
      %2308 = vmatprep.subr.bf16.mxu0 0
      %2309 = vmatpush1.bf16.msra.mxu0 0
      %2310 = vmatprep.subr.bf16.mxu0 0
      %2311 = vmatpush1.bf16.msra.mxu0 0
      %2312 = vmatprep.subr.bf16.mxu0 0
      %2313 = vmatpush1.bf16.msra.mxu0 0
      %2314 = vmatprep.subr.bf16.mxu0 0
      %2315 = vmatpush1.bf16.msra.mxu0 0
      %2316 = vmatprep.subr.bf16.mxu0 0
      %2317 = vmatpush1.bf16.msra.mxu0 0
      %2318 = vmatprep.subr.bf16.mxu0 0
      %2319 = vmatpush1.bf16.msra.mxu0 0
      %2320 = vmatprep.subr.bf16.mxu0 0
      %2321 = vmatpush1.bf16.msra.mxu0 0
      %2322 = vmatprep.subr.bf16.mxu0 0
      %2323 = vmatpush1.bf16.msra.mxu0 0
      %2324 = vmatprep.subr.bf16.mxu0 0
      %2325 = vmatpush1.bf16.msra.mxu0 0
      %2326 = vmatprep.subr.bf16.mxu0 0
      %2327 = vmatpush1.bf16.msra.mxu0 0
      %2328 = vmatprep.mubr.bf16.mxu0 0
      %2329 = vmatmul.mubr.bf16.gmra.mrb[0].mxu0 %v2249
      %v2330 = vpop.f32.mrb[0].mxu0
      %v2331 = vadd.f32 0.0, %v2330
      %v2332 = vpop.f32.mrb[0].mxu0
      %v2333 = vpop.f32.mrb[0].mxu0
      %v2334 = vadd.f32 0.0, %v2333
      %v2335 = vpop.f32.mrb[0].mxu0
      %2336 = vmatprep.mubr.bf16.mxu0 0
      %2337 = vmatmul.mubr.bf16.gmra.mrb[0].mxu0 %v2252
      %v2338 = vpop.f32.mrb[0].mxu0
      %v2339 = vadd.f32 0.0, %v2338
      %v2340 = vpop.f32.mrb[0].mxu0
      %v2341 = vpop.f32.mrb[0].mxu0
      %v2342 = vadd.f32 0.0, %v2341
      %v2343 = vpop.f32.mrb[0].mxu0
      %2344 = vmatprep.mubr.bf16.mxu0 0
      %2345 = vmatmul.mubr.bf16.gmra.mrb[0].mxu0 %v2255
      %v2346 = vpop.f32.mrb[0].mxu0
      %v2347 = vadd.f32 0.0, %v2346
      %v2348 = vpop.f32.mrb[0].mxu0
      %v2349 = vpop.f32.mrb[0].mxu0
      %v2350 = vadd.f32 0.0, %v2349
      %v2351 = vpop.f32.mrb[0].mxu0
      %2352 = vmatprep.mubr.bf16.mxu0 0
      %2353 = vmatmul.mubr.bf16.gmra.mrb[0].mxu0 %v2258
      %v2354 = vpop.f32.mrb[0].mxu0
      %v2355 = vadd.f32 0.0, %v2354
      %v2356 = vpop.f32.mrb[0].mxu0
      %v2357 = vpop.f32.mrb[0].mxu0
      %v2358 = vadd.f32 0.0, %v2357
      %v2359 = vpop.f32.mrb[0].mxu0
      %2360 = vmatprep.mubr.bf16.mxu0 0
      %2361 = vmatmul.mubr.bf16.gmra.mrb[0].mxu0 %v2261
      %v2362 = vpop.f32.mrb[0].mxu0
      %v2363 = vadd.f32 0.0, %v2362
      %v2364 = vpop.f32.mrb[0].mxu0
      %v2365 = vpop.f32.mrb[0].mxu0
      %v2366 = vadd.f32 0.0, %v2365
      %v2367 = vpop.f32.mrb[0].mxu0
      %2368 = vmatprep.mubr.bf16.mxu0 0
      %2369 = vmatmul.mubr.bf16.gmra.mrb[0].mxu0 %v2264
      %v2370 = vpop.f32.mrb[0].mxu0
      %v2371 = vadd.f32 0.0, %v2370
      %v2372 = vpop.f32.mrb[0].mxu0
      %v2373 = vpop.f32.mrb[0].mxu0
      %v2374 = vadd.f32 0.0, %v2373
      %v2375 = vpop.f32.mrb[0].mxu0
      %2376 = vmatprep.mubr.bf16.mxu0 0
      %2377 = vmatmul.mubr.bf16.gmra.mrb[0].mxu0 %v2267
      %v2378 = vpop.f32.mrb[0].mxu0
      %v2379 = vadd.f32 0.0, %v2378
      %v2380 = vpop.f32.mrb[0].mxu0
      %v2381 = vpop.f32.mrb[0].mxu0
      %v2382 = vadd.f32 0.0, %v2381
      %v2383 = vpop.f32.mrb[0].mxu0
      %2384 = vmatprep.mubr.bf16.mxu0 0
      %2385 = vmatmul.mubr.bf16.gmra.mrb[0].mxu0 %v2270
      %v2386 = vpop.f32.mrb[0].mxu0
      %v2387 = vadd.f32 0.0, %v2386
      %v2388 = vpop.f32.mrb[0].mxu0
      %v2389 = vpop.f32.mrb[0].mxu0
      %v2390 = vadd.f32 0.0, %v2389
      %v2391 = vpop.f32.mrb[0].mxu0
      %2392 = vmatprep.mubr.bf16.mxu0 0
      %2393 = vmatmul.mubr.bf16.gmra.mrb[0].mxu0 %v2273
      %v2394 = vpop.f32.mrb[0].mxu0
      %v2395 = vadd.f32 0.0, %v2394
      %v2396 = vpop.f32.mrb[0].mxu0
      %v2397 = vpop.f32.mrb[0].mxu0
      %v2398 = vadd.f32 0.0, %v2397
      %v2399 = vpop.f32.mrb[0].mxu0
      %2400 = vmatprep.mubr.bf16.mxu0 0
      %2401 = vmatmul.mubr.bf16.gmra.mrb[0].mxu0 %v2276
      %v2402 = vpop.f32.mrb[0].mxu0
      %v2403 = vadd.f32 0.0, %v2402
      %v2404 = vpop.f32.mrb[0].mxu0
      %v2405 = vpop.f32.mrb[0].mxu0
      %v2406 = vadd.f32 0.0, %v2405
      %v2407 = vpop.f32.mrb[0].mxu0
      %2408 = vmatprep.mubr.bf16.mxu0 0
      %2409 = vmatmul.mubr.bf16.gmra.mrb[0].mxu0 %v2279
      %v2410 = vpop.f32.mrb[0].mxu0
      %v2411 = vadd.f32 0.0, %v2410
      %v2412 = vpop.f32.mrb[0].mxu0
      %v2413 = vpop.f32.mrb[0].mxu0
      %v2414 = vadd.f32 0.0, %v2413
      %v2415 = vpop.f32.mrb[0].mxu0
      %2416 = vmatprep.mubr.bf16.mxu0 0
      %2417 = vmatmul.mubr.bf16.gmra.mrb[0].mxu0 %v2282
      %v2418 = vpop.f32.mrb[0].mxu0
      %v2419 = vadd.f32 0.0, %v2418
      %v2420 = vpop.f32.mrb[0].mxu0
      %v2421 = vpop.f32.mrb[0].mxu0
      %v2422 = vadd.f32 0.0, %v2421
      %v2423 = vpop.f32.mrb[0].mxu0
      %2424 = vmatprep.mubr.bf16.mxu0 0
      %2425 = vmatmul.mubr.bf16.gmra.mrb[0].mxu0 %v2285
      %v2426 = vpop.f32.mrb[0].mxu0
      %v2427 = vadd.f32 0.0, %v2426
      %v2428 = vpop.f32.mrb[0].mxu0
      %v2429 = vpop.f32.mrb[0].mxu0
      %v2430 = vadd.f32 0.0, %v2429
      %v2431 = vpop.f32.mrb[0].mxu0
      %2432 = vmatprep.mubr.bf16.mxu0 0
      %2433 = vmatmul.mubr.bf16.gmra.mrb[0].mxu0 %v2288
      %v2434 = vpop.f32.mrb[0].mxu0
      %v2435 = vadd.f32 0.0, %v2434
      %v2436 = vpop.f32.mrb[0].mxu0
      %v2437 = vpop.f32.mrb[0].mxu0
      %v2438 = vadd.f32 0.0, %v2437
      %v2439 = vpop.f32.mrb[0].mxu0
      %2440 = vmatprep.mubr.bf16.mxu0 0
      %2441 = vmatmul.mubr.bf16.gmra.mrb[0].mxu0 %v2291
      %v2442 = vpop.f32.mrb[0].mxu0
      %v2443 = vadd.f32 0.0, %v2442
      %v2444 = vpop.f32.mrb[0].mxu0
      %v2445 = vpop.f32.mrb[0].mxu0
      %v2446 = vadd.f32 0.0, %v2445
      %v2447 = vpop.f32.mrb[0].mxu0
      %2448 = vmatprep.mubr.bf16.mxu0 0
      %2449 = vmatmul.mubr.bf16.gmra.mrb[0].mxu0 %v2294
      %v2450 = vpop.f32.mrb[0].mxu0
      %v2451 = vadd.f32 0.0, %v2450
      %v2452 = vpop.f32.mrb[0].mxu0
      %v2453 = vpop.f32.mrb[0].mxu0
      %v2454 = vadd.f32 0.0, %v2453
      %v2455 = vpop.f32.mrb[0].mxu0
      %2456 = vdwg.mxu0
      %v2457 = vadd.f32 %v2167, %v2331
      %v2458 = vadd.f32 %v2168, %v2334
      %v2459 = vadd.f32 %v2169, %v2339
      %v2460 = vadd.f32 %v2170, %v2342
      %v2461 = vadd.f32 %v2171, %v2347
      %v2462 = vadd.f32 %v2172, %v2350
      %v2463 = vadd.f32 %v2173, %v2355
      %v2464 = vadd.f32 %v2174, %v2358
      %v2465 = vadd.f32 %v2175, %v2363
      %v2466 = vadd.f32 %v2176, %v2366
      %v2467 = vadd.f32 %v2177, %v2371
      %v2468 = vadd.f32 %v2178, %v2374
      %v2469 = vadd.f32 %v2179, %v2379
      %v2470 = vadd.f32 %v2180, %v2382
      %v2471 = vadd.f32 %v2181, %v2387
      %v2472 = vadd.f32 %v2182, %v2390
      %v2473 = vadd.f32 %v2183, %v2395
      %v2474 = vadd.f32 %v2184, %v2398
      %v2475 = vadd.f32 %v2185, %v2403
      %v2476 = vadd.f32 %v2186, %v2406
      %v2477 = vadd.f32 %v2187, %v2411
      %v2478 = vadd.f32 %v2188, %v2414
      %v2479 = vadd.f32 %v2189, %v2419
      %v2480 = vadd.f32 %v2190, %v2422
      %v2481 = vadd.f32 %v2191, %v2427
      %v2482 = vadd.f32 %v2192, %v2430
      %v2483 = vadd.f32 %v2193, %v2435
      %v2484 = vadd.f32 %v2194, %v2438
      %v2485 = vadd.f32 %v2195, %v2443
      %v2486 = vadd.f32 %v2196, %v2446
      %v2487 = vadd.f32 %v2197, %v2451
      %v2488 = vadd.f32 %v2198, %v2454
      %2489 = vst [vmem:[#allocation2] sm:$0xff] %v2457
      %2490 = vst [vmem:[#allocation2 + $0x8] sm:$0xff] %v2458
      %2491 = vst [vmem:[#allocation2 + $0x10] sm:$0xff] %v2459
      %2492 = vst [vmem:[#allocation2 + $0x18] sm:$0xff] %v2460
      %2493 = vst [vmem:[#allocation2 + $0x20] sm:$0xff] %v2461
      %2494 = vst [vmem:[#allocation2 + $0x28] sm:$0xff] %v2462
      %2495 = vst [vmem:[#allocation2 + $0x30] sm:$0xff] %v2463
      %2496 = vst [vmem:[#allocation2 + $0x38] sm:$0xff] %v2464
      %2497 = vst [vmem:[#allocation2 + $0x40] sm:$0xff] %v2465
      %2498 = vst [vmem:[#allocation2 + $0x48] sm:$0xff] %v2466
      %2499 = vst [vmem:[#allocation2 + $0x50] sm:$0xff] %v2467
      %2500 = vst [vmem:[#allocation2 + $0x58] sm:$0xff] %v2468
      %2501 = vst [vmem:[#allocation2 + $0x60] sm:$0xff] %v2469
      %2502 = vst [vmem:[#allocation2 + $0x68] sm:$0xff] %v2470
      %2503 = vst [vmem:[#allocation2 + $0x70] sm:$0xff] %v2471
      %2504 = vst [vmem:[#allocation2 + $0x78] sm:$0xff] %v2472
      %2505 = vst [vmem:[#allocation2 + $0x80] sm:$0xff] %v2473
      %2506 = vst [vmem:[#allocation2 + $0x88] sm:$0xff] %v2474
      %2507 = vst [vmem:[#allocation2 + $0x90] sm:$0xff] %v2475
      %2508 = vst [vmem:[#allocation2 + $0x98] sm:$0xff] %v2476
      %2509 = vst [vmem:[#allocation2 + $0xa0] sm:$0xff] %v2477
      %2510 = vst [vmem:[#allocation2 + $0xa8] sm:$0xff] %v2478
      %2511 = vst [vmem:[#allocation2 + $0xb0] sm:$0xff] %v2479
      %2512 = vst [vmem:[#allocation2 + $0xb8] sm:$0xff] %v2480
      %2513 = vst [vmem:[#allocation2 + $0xc0] sm:$0xff] %v2481
      %2514 = vst [vmem:[#allocation2 + $0xc8] sm:$0xff] %v2482
      %2515 = vst [vmem:[#allocation2 + $0xd0] sm:$0xff] %v2483
      %2516 = vst [vmem:[#allocation2 + $0xd8] sm:$0xff] %v2484
      %2517 = vst [vmem:[#allocation2 + $0xe0] sm:$0xff] %v2485
      %2518 = vst [vmem:[#allocation2 + $0xe8] sm:$0xff] %v2486
      %2519 = vst [vmem:[#allocation2 + $0xf0] sm:$0xff] %v2487
      %2520 = vst [vmem:[#allocation2 + $0xf8] sm:$0xff] %v2488
      %s2521 = scalar_lea.vmem %s165, 48
      %v2522 = vld [vmem:[%s2521] sm:$0xff]
      %v2523 = vld [vmem:[%s2521 + $0x8] sm:$0xff]
      %v2524 = vld [vmem:[%s2521 + $0x18] sm:$0xff]
      %v2525 = vld [vmem:[%s2521 + $0x20] sm:$0xff]
      %v2526 = vld [vmem:[%s2521 + $0x30] sm:$0xff]
      %v2527 = vld [vmem:[%s2521 + $0x38] sm:$0xff]
      %v2528 = vld [vmem:[%s2521 + $0x48] sm:$0xff]
      %v2529 = vld [vmem:[%s2521 + $0x50] sm:$0xff]
      %v2530 = vld [vmem:[%s2521 + $0x60] sm:$0xff]
      %v2531 = vld [vmem:[%s2521 + $0x68] sm:$0xff]
      %v2532 = vld [vmem:[%s2521 + $0x78] sm:$0xff]
      %v2533 = vld [vmem:[%s2521 + $0x80] sm:$0xff]
      %v2534 = vld [vmem:[%s2521 + $0x90] sm:$0xff]
      %v2535 = vld [vmem:[%s2521 + $0x98] sm:$0xff]
      %v2536 = vld [vmem:[%s2521 + $0xa8] sm:$0xff]
      %v2537 = vld [vmem:[%s2521 + $0xb0] sm:$0xff]
      %v2538 = vld [vmem:[%s2521 + $0xc0] sm:$0xff]
      %v2539 = vld [vmem:[%s2521 + $0xc8] sm:$0xff]
      %v2540 = vld [vmem:[%s2521 + $0xd8] sm:$0xff]
      %v2541 = vld [vmem:[%s2521 + $0xe0] sm:$0xff]
      %v2542 = vld [vmem:[%s2521 + $0xf0] sm:$0xff]
      %v2543 = vld [vmem:[%s2521 + $0xf8] sm:$0xff]
      %v2544 = vld [vmem:[%s2521 + $0x108] sm:$0xff]
      %v2545 = vld [vmem:[%s2521 + $0x110] sm:$0xff]
      %v2546 = vld [vmem:[%s2521 + $0x120] sm:$0xff]
      %v2547 = vld [vmem:[%s2521 + $0x128] sm:$0xff]
      %v2548 = vld [vmem:[%s2521 + $0x138] sm:$0xff]
      %v2549 = vld [vmem:[%s2521 + $0x140] sm:$0xff]
      %v2550 = vld [vmem:[%s2521 + $0x150] sm:$0xff]
      %v2551 = vld [vmem:[%s2521 + $0x158] sm:$0xff]
      %v2552 = vld [vmem:[%s2521 + $0x168] sm:$0xff]
      %v2553 = vld [vmem:[%s2521 + $0x170] sm:$0xff]
      %v2554 = vld [vmem:[#allocation2] sm:$0xff]
      %v2555 = vld [vmem:[#allocation2 + $0x8] sm:$0xff]
      %v2556 = vld [vmem:[#allocation2 + $0x10] sm:$0xff]
      %v2557 = vld [vmem:[#allocation2 + $0x18] sm:$0xff]
      %v2558 = vld [vmem:[#allocation2 + $0x20] sm:$0xff]
      %v2559 = vld [vmem:[#allocation2 + $0x28] sm:$0xff]
      %v2560 = vld [vmem:[#allocation2 + $0x30] sm:$0xff]
      %v2561 = vld [vmem:[#allocation2 + $0x38] sm:$0xff]
      %v2562 = vld [vmem:[#allocation2 + $0x40] sm:$0xff]
      %v2563 = vld [vmem:[#allocation2 + $0x48] sm:$0xff]
      %v2564 = vld [vmem:[#allocation2 + $0x50] sm:$0xff]
      %v2565 = vld [vmem:[#allocation2 + $0x58] sm:$0xff]
      %v2566 = vld [vmem:[#allocation2 + $0x60] sm:$0xff]
      %v2567 = vld [vmem:[#allocation2 + $0x68] sm:$0xff]
      %v2568 = vld [vmem:[#allocation2 + $0x70] sm:$0xff]
      %v2569 = vld [vmem:[#allocation2 + $0x78] sm:$0xff]
      %v2570 = vld [vmem:[#allocation2 + $0x80] sm:$0xff]
      %v2571 = vld [vmem:[#allocation2 + $0x88] sm:$0xff]
      %v2572 = vld [vmem:[#allocation2 + $0x90] sm:$0xff]
      %v2573 = vld [vmem:[#allocation2 + $0x98] sm:$0xff]
      %v2574 = vld [vmem:[#allocation2 + $0xa0] sm:$0xff]
      %v2575 = vld [vmem:[#allocation2 + $0xa8] sm:$0xff]
      %v2576 = vld [vmem:[#allocation2 + $0xb0] sm:$0xff]
      %v2577 = vld [vmem:[#allocation2 + $0xb8] sm:$0xff]
      %v2578 = vld [vmem:[#allocation2 + $0xc0] sm:$0xff]
      %v2579 = vld [vmem:[#allocation2 + $0xc8] sm:$0xff]
      %v2580 = vld [vmem:[#allocation2 + $0xd0] sm:$0xff]
      %v2581 = vld [vmem:[#allocation2 + $0xd8] sm:$0xff]
      %v2582 = vld [vmem:[#allocation2 + $0xe0] sm:$0xff]
      %v2583 = vld [vmem:[#allocation2 + $0xe8] sm:$0xff]
      %v2584 = vld [vmem:[#allocation2 + $0xf0] sm:$0xff]
      %v2585 = vld [vmem:[#allocation2 + $0xf8] sm:$0xff]
      %v2586 = vpack.c.bf16 %v2523, %v2522
      %v2587 = vpack.c.bf16 %v2525, %v2524
      %v2588 = vpack.c.bf16 %v2527, %v2526
      %v2589 = vpack.c.bf16 %v2529, %v2528
      %v2590 = vpack.c.bf16 %v2531, %v2530
      %v2591 = vpack.c.bf16 %v2533, %v2532
      %v2592 = vpack.c.bf16 %v2535, %v2534
      %v2593 = vpack.c.bf16 %v2537, %v2536
      %v2594 = vpack.c.bf16 %v2539, %v2538
      %v2595 = vpack.c.bf16 %v2541, %v2540
      %v2596 = vpack.c.bf16 %v2543, %v2542
      %v2597 = vpack.c.bf16 %v2545, %v2544
      %v2598 = vpack.c.bf16 %v2547, %v2546
      %v2599 = vpack.c.bf16 %v2549, %v2548
      %v2600 = vpack.c.bf16 %v2551, %v2550
      %v2601 = vpack.c.bf16 %v2553, %v2552
      %s2602 = scalar_lea.vmem %s1, 192
      %v2603 = vld [vmem:[%s2602] sm:$0xf]
      %v2604 = vld [vmem:[%s2602 + $0x4] sm:$0xf]
      %v2605 = vld [vmem:[%s2602 + $0x8] sm:$0xf]
      %v2606 = vld [vmem:[%s2602 + $0xc] sm:$0xf]
      %v2607 = vld [vmem:[%s2602 + $0x10] sm:$0xf]
      %v2608 = vld [vmem:[%s2602 + $0x14] sm:$0xf]
      %v2609 = vld [vmem:[%s2602 + $0x18] sm:$0xf]
      %v2610 = vld [vmem:[%s2602 + $0x1c] sm:$0xf]
      %v2619 = vunpack.c.l.b16 %v2603
      %v2620 = vunpack.c.l.b16 %v2604
      %v2621 = vunpack.c.l.b16 %v2605
      %v2622 = vunpack.c.l.b16 %v2606
      %v2623 = vunpack.c.l.b16 %v2607
      %v2624 = vunpack.c.l.b16 %v2608
      %v2625 = vunpack.c.l.b16 %v2609
      %v2626 = vunpack.c.l.b16 %v2610
      %v2627 = vpack.c.b16 %v2620, %v2619
      %v2628 = vpack.c.b16 %v2622, %v2621
      %v2629 = vpack.c.b16 %v2624, %v2623
      %v2630 = vpack.c.b16 %v2626, %v2625
      %v2636 = vsel %vm316, %v2586, 0
      %v2639 = vsel %vm316, %v2587, 0
      %v2642 = vsel %vm316, %v2588, 0
      %v2645 = vsel %vm316, %v2589, 0
      %v2648 = vsel %vm316, %v2590, 0
      %v2651 = vsel %vm316, %v2591, 0
      %v2654 = vsel %vm316, %v2592, 0
      %v2657 = vsel %vm316, %v2593, 0
      %v2660 = vsel %vm316, %v2594, 0
      %v2663 = vsel %vm316, %v2595, 0
      %v2666 = vsel %vm316, %v2596, 0
      %v2669 = vsel %vm316, %v2597, 0
      %v2672 = vsel %vm316, %v2598, 0
      %v2675 = vsel %vm316, %v2599, 0
      %v2678 = vsel %vm316, %v2600, 0
      %v2681 = vsel %vm316, %v2601, 0
      %2683 = vmatprep.subr.bf16.mxu0 0
      %2684 = vmatpush1.bf16.msra.mxu0 %v2627
      %2685 = vmatprep.subr.bf16.mxu0 0
      %2686 = vmatpush1.bf16.msra.mxu0 %v2628
      %2687 = vmatprep.subr.bf16.mxu0 0
      %2688 = vmatpush1.bf16.msra.mxu0 %v2629
      %2689 = vmatprep.subr.bf16.mxu0 0
      %2690 = vmatpush1.bf16.msra.mxu0 %v2630
      %2691 = vmatprep.subr.bf16.mxu0 0
      %2692 = vmatpush1.bf16.msra.mxu0 0
      %2693 = vmatprep.subr.bf16.mxu0 0
      %2694 = vmatpush1.bf16.msra.mxu0 0
      %2695 = vmatprep.subr.bf16.mxu0 0
      %2696 = vmatpush1.bf16.msra.mxu0 0
      %2697 = vmatprep.subr.bf16.mxu0 0
      %2698 = vmatpush1.bf16.msra.mxu0 0
      %2699 = vmatprep.subr.bf16.mxu0 0
      %2700 = vmatpush1.bf16.msra.mxu0 0
      %2701 = vmatprep.subr.bf16.mxu0 0
      %2702 = vmatpush1.bf16.msra.mxu0 0
      %2703 = vmatprep.subr.bf16.mxu0 0
      %2704 = vmatpush1.bf16.msra.mxu0 0
      %2705 = vmatprep.subr.bf16.mxu0 0
      %2706 = vmatpush1.bf16.msra.mxu0 0
      %2707 = vmatprep.subr.bf16.mxu0 0
      %2708 = vmatpush1.bf16.msra.mxu0 0
      %2709 = vmatprep.subr.bf16.mxu0 0
      %2710 = vmatpush1.bf16.msra.mxu0 0
      %2711 = vmatprep.subr.bf16.mxu0 0
      %2712 = vmatpush1.bf16.msra.mxu0 0
      %2713 = vmatprep.subr.bf16.mxu0 0
      %2714 = vmatpush1.bf16.msra.mxu0 0
      %2715 = vmatprep.mubr.bf16.mxu0 0
      %2716 = vmatmul.mubr.bf16.gmra.mrb[0].mxu0 %v2636
      %v2717 = vpop.f32.mrb[0].mxu0
      %v2718 = vadd.f32 0.0, %v2717
      %v2719 = vpop.f32.mrb[0].mxu0
      %v2720 = vpop.f32.mrb[0].mxu0
      %v2721 = vadd.f32 0.0, %v2720
      %v2722 = vpop.f32.mrb[0].mxu0
      %2723 = vmatprep.mubr.bf16.mxu0 0
      %2724 = vmatmul.mubr.bf16.gmra.mrb[0].mxu0 %v2639
      %v2725 = vpop.f32.mrb[0].mxu0
      %v2726 = vadd.f32 0.0, %v2725
      %v2727 = vpop.f32.mrb[0].mxu0
      %v2728 = vpop.f32.mrb[0].mxu0
      %v2729 = vadd.f32 0.0, %v2728
      %v2730 = vpop.f32.mrb[0].mxu0
      %2731 = vmatprep.mubr.bf16.mxu0 0
      %2732 = vmatmul.mubr.bf16.gmra.mrb[0].mxu0 %v2642
      %v2733 = vpop.f32.mrb[0].mxu0
      %v2734 = vadd.f32 0.0, %v2733
      %v2735 = vpop.f32.mrb[0].mxu0
      %v2736 = vpop.f32.mrb[0].mxu0
      %v2737 = vadd.f32 0.0, %v2736
      %v2738 = vpop.f32.mrb[0].mxu0
      %2739 = vmatprep.mubr.bf16.mxu0 0
      %2740 = vmatmul.mubr.bf16.gmra.mrb[0].mxu0 %v2645
      %v2741 = vpop.f32.mrb[0].mxu0
      %v2742 = vadd.f32 0.0, %v2741
      %v2743 = vpop.f32.mrb[0].mxu0
      %v2744 = vpop.f32.mrb[0].mxu0
      %v2745 = vadd.f32 0.0, %v2744
      %v2746 = vpop.f32.mrb[0].mxu0
      %2747 = vmatprep.mubr.bf16.mxu0 0
      %2748 = vmatmul.mubr.bf16.gmra.mrb[0].mxu0 %v2648
      %v2749 = vpop.f32.mrb[0].mxu0
      %v2750 = vadd.f32 0.0, %v2749
      %v2751 = vpop.f32.mrb[0].mxu0
      %v2752 = vpop.f32.mrb[0].mxu0
      %v2753 = vadd.f32 0.0, %v2752
      %v2754 = vpop.f32.mrb[0].mxu0
      %2755 = vmatprep.mubr.bf16.mxu0 0
      %2756 = vmatmul.mubr.bf16.gmra.mrb[0].mxu0 %v2651
      %v2757 = vpop.f32.mrb[0].mxu0
      %v2758 = vadd.f32 0.0, %v2757
      %v2759 = vpop.f32.mrb[0].mxu0
      %v2760 = vpop.f32.mrb[0].mxu0
      %v2761 = vadd.f32 0.0, %v2760
      %v2762 = vpop.f32.mrb[0].mxu0
      %2763 = vmatprep.mubr.bf16.mxu0 0
      %2764 = vmatmul.mubr.bf16.gmra.mrb[0].mxu0 %v2654
      %v2765 = vpop.f32.mrb[0].mxu0
      %v2766 = vadd.f32 0.0, %v2765
      %v2767 = vpop.f32.mrb[0].mxu0
      %v2768 = vpop.f32.mrb[0].mxu0
      %v2769 = vadd.f32 0.0, %v2768
      %v2770 = vpop.f32.mrb[0].mxu0
      %2771 = vmatprep.mubr.bf16.mxu0 0
      %2772 = vmatmul.mubr.bf16.gmra.mrb[0].mxu0 %v2657
      %v2773 = vpop.f32.mrb[0].mxu0
      %v2774 = vadd.f32 0.0, %v2773
      %v2775 = vpop.f32.mrb[0].mxu0
      %v2776 = vpop.f32.mrb[0].mxu0
      %v2777 = vadd.f32 0.0, %v2776
      %v2778 = vpop.f32.mrb[0].mxu0
      %2779 = vmatprep.mubr.bf16.mxu0 0
      %2780 = vmatmul.mubr.bf16.gmra.mrb[0].mxu0 %v2660
      %v2781 = vpop.f32.mrb[0].mxu0
      %v2782 = vadd.f32 0.0, %v2781
      %v2783 = vpop.f32.mrb[0].mxu0
      %v2784 = vpop.f32.mrb[0].mxu0
      %v2785 = vadd.f32 0.0, %v2784
      %v2786 = vpop.f32.mrb[0].mxu0
      %2787 = vmatprep.mubr.bf16.mxu0 0
      %2788 = vmatmul.mubr.bf16.gmra.mrb[0].mxu0 %v2663
      %v2789 = vpop.f32.mrb[0].mxu0
      %v2790 = vadd.f32 0.0, %v2789
      %v2791 = vpop.f32.mrb[0].mxu0
      %v2792 = vpop.f32.mrb[0].mxu0
      %v2793 = vadd.f32 0.0, %v2792
      %v2794 = vpop.f32.mrb[0].mxu0
      %2795 = vmatprep.mubr.bf16.mxu0 0
      %2796 = vmatmul.mubr.bf16.gmra.mrb[0].mxu0 %v2666
      %v2797 = vpop.f32.mrb[0].mxu0
      %v2798 = vadd.f32 0.0, %v2797
      %v2799 = vpop.f32.mrb[0].mxu0
      %v2800 = vpop.f32.mrb[0].mxu0
      %v2801 = vadd.f32 0.0, %v2800
      %v2802 = vpop.f32.mrb[0].mxu0
      %2803 = vmatprep.mubr.bf16.mxu0 0
      %2804 = vmatmul.mubr.bf16.gmra.mrb[0].mxu0 %v2669
      %v2805 = vpop.f32.mrb[0].mxu0
      %v2806 = vadd.f32 0.0, %v2805
      %v2807 = vpop.f32.mrb[0].mxu0
      %v2808 = vpop.f32.mrb[0].mxu0
      %v2809 = vadd.f32 0.0, %v2808
      %v2810 = vpop.f32.mrb[0].mxu0
      %2811 = vmatprep.mubr.bf16.mxu0 0
      %2812 = vmatmul.mubr.bf16.gmra.mrb[0].mxu0 %v2672
      %v2813 = vpop.f32.mrb[0].mxu0
      %v2814 = vadd.f32 0.0, %v2813
      %v2815 = vpop.f32.mrb[0].mxu0
      %v2816 = vpop.f32.mrb[0].mxu0
      %v2817 = vadd.f32 0.0, %v2816
      %v2818 = vpop.f32.mrb[0].mxu0
      %2819 = vmatprep.mubr.bf16.mxu0 0
      %2820 = vmatmul.mubr.bf16.gmra.mrb[0].mxu0 %v2675
      %v2821 = vpop.f32.mrb[0].mxu0
      %v2822 = vadd.f32 0.0, %v2821
      %v2823 = vpop.f32.mrb[0].mxu0
      %v2824 = vpop.f32.mrb[0].mxu0
      %v2825 = vadd.f32 0.0, %v2824
      %v2826 = vpop.f32.mrb[0].mxu0
      %2827 = vmatprep.mubr.bf16.mxu0 0
      %2828 = vmatmul.mubr.bf16.gmra.mrb[0].mxu0 %v2678
      %v2829 = vpop.f32.mrb[0].mxu0
      %v2830 = vadd.f32 0.0, %v2829
      %v2831 = vpop.f32.mrb[0].mxu0
      %v2832 = vpop.f32.mrb[0].mxu0
      %v2833 = vadd.f32 0.0, %v2832
      %v2834 = vpop.f32.mrb[0].mxu0
      %2835 = vmatprep.mubr.bf16.mxu0 0
      %2836 = vmatmul.mubr.bf16.gmra.mrb[0].mxu0 %v2681
      %v2837 = vpop.f32.mrb[0].mxu0
      %v2838 = vadd.f32 0.0, %v2837
      %v2839 = vpop.f32.mrb[0].mxu0
      %v2840 = vpop.f32.mrb[0].mxu0
      %v2841 = vadd.f32 0.0, %v2840
      %v2842 = vpop.f32.mrb[0].mxu0
      %2843 = vdwg.mxu0
      %v2844 = vadd.f32 %v2554, %v2718
      %v2845 = vadd.f32 %v2555, %v2721
      %v2846 = vadd.f32 %v2556, %v2726
      %v2847 = vadd.f32 %v2557, %v2729
      %v2848 = vadd.f32 %v2558, %v2734
      %v2849 = vadd.f32 %v2559, %v2737
      %v2850 = vadd.f32 %v2560, %v2742
      %v2851 = vadd.f32 %v2561, %v2745
      %v2852 = vadd.f32 %v2562, %v2750
      %v2853 = vadd.f32 %v2563, %v2753
      %v2854 = vadd.f32 %v2564, %v2758
      %v2855 = vadd.f32 %v2565, %v2761
      %v2856 = vadd.f32 %v2566, %v2766
      %v2857 = vadd.f32 %v2567, %v2769
      %v2858 = vadd.f32 %v2568, %v2774
      %v2859 = vadd.f32 %v2569, %v2777
      %v2860 = vadd.f32 %v2570, %v2782
      %v2861 = vadd.f32 %v2571, %v2785
      %v2862 = vadd.f32 %v2572, %v2790
      %v2863 = vadd.f32 %v2573, %v2793
      %v2864 = vadd.f32 %v2574, %v2798
      %v2865 = vadd.f32 %v2575, %v2801
      %v2866 = vadd.f32 %v2576, %v2806
      %v2867 = vadd.f32 %v2577, %v2809
      %v2868 = vadd.f32 %v2578, %v2814
      %v2869 = vadd.f32 %v2579, %v2817
      %v2870 = vadd.f32 %v2580, %v2822
      %v2871 = vadd.f32 %v2581, %v2825
      %v2872 = vadd.f32 %v2582, %v2830
      %v2873 = vadd.f32 %v2583, %v2833
      %v2874 = vadd.f32 %v2584, %v2838
      %v2875 = vadd.f32 %v2585, %v2841
      %2876 = vst [vmem:[#allocation2] sm:$0xff] %v2844
      %2877 = vst [vmem:[#allocation2 + $0x8] sm:$0xff] %v2845
      %2878 = vst [vmem:[#allocation2 + $0x10] sm:$0xff] %v2846
      %2879 = vst [vmem:[#allocation2 + $0x18] sm:$0xff] %v2847
      %2880 = vst [vmem:[#allocation2 + $0x20] sm:$0xff] %v2848
      %2881 = vst [vmem:[#allocation2 + $0x28] sm:$0xff] %v2849
      %2882 = vst [vmem:[#allocation2 + $0x30] sm:$0xff] %v2850
      %2883 = vst [vmem:[#allocation2 + $0x38] sm:$0xff] %v2851
      %2884 = vst [vmem:[#allocation2 + $0x40] sm:$0xff] %v2852
      %2885 = vst [vmem:[#allocation2 + $0x48] sm:$0xff] %v2853
      %2886 = vst [vmem:[#allocation2 + $0x50] sm:$0xff] %v2854
      %2887 = vst [vmem:[#allocation2 + $0x58] sm:$0xff] %v2855
      %2888 = vst [vmem:[#allocation2 + $0x60] sm:$0xff] %v2856
      %2889 = vst [vmem:[#allocation2 + $0x68] sm:$0xff] %v2857
      %2890 = vst [vmem:[#allocation2 + $0x70] sm:$0xff] %v2858
      %2891 = vst [vmem:[#allocation2 + $0x78] sm:$0xff] %v2859
      %2892 = vst [vmem:[#allocation2 + $0x80] sm:$0xff] %v2860
      %2893 = vst [vmem:[#allocation2 + $0x88] sm:$0xff] %v2861
      %2894 = vst [vmem:[#allocation2 + $0x90] sm:$0xff] %v2862
      %2895 = vst [vmem:[#allocation2 + $0x98] sm:$0xff] %v2863
      %2896 = vst [vmem:[#allocation2 + $0xa0] sm:$0xff] %v2864
      %2897 = vst [vmem:[#allocation2 + $0xa8] sm:$0xff] %v2865
      %2898 = vst [vmem:[#allocation2 + $0xb0] sm:$0xff] %v2866
      %2899 = vst [vmem:[#allocation2 + $0xb8] sm:$0xff] %v2867
      %2900 = vst [vmem:[#allocation2 + $0xc0] sm:$0xff] %v2868
      %2901 = vst [vmem:[#allocation2 + $0xc8] sm:$0xff] %v2869
      %2902 = vst [vmem:[#allocation2 + $0xd0] sm:$0xff] %v2870
      %2903 = vst [vmem:[#allocation2 + $0xd8] sm:$0xff] %v2871
      %2904 = vst [vmem:[#allocation2 + $0xe0] sm:$0xff] %v2872
      %2905 = vst [vmem:[#allocation2 + $0xe8] sm:$0xff] %v2873
      %2906 = vst [vmem:[#allocation2 + $0xf0] sm:$0xff] %v2874
      %2907 = vst [vmem:[#allocation2 + $0xf8] sm:$0xff] %v2875
      %v2908 = vld [vmem:[%s2521 + $0x1] sm:$0xff]
      %v2909 = vld [vmem:[%s2521 + $0x9] sm:$0xff]
      %v2910 = vld [vmem:[%s2521 + $0x19] sm:$0xff]
      %v2911 = vld [vmem:[%s2521 + $0x21] sm:$0xff]
      %v2912 = vld [vmem:[%s2521 + $0x31] sm:$0xff]
      %v2913 = vld [vmem:[%s2521 + $0x39] sm:$0xff]
      %v2914 = vld [vmem:[%s2521 + $0x49] sm:$0xff]
      %v2915 = vld [vmem:[%s2521 + $0x51] sm:$0xff]
      %v2916 = vld [vmem:[%s2521 + $0x61] sm:$0xff]
      %v2917 = vld [vmem:[%s2521 + $0x69] sm:$0xff]
      %v2918 = vld [vmem:[%s2521 + $0x79] sm:$0xff]
      %v2919 = vld [vmem:[%s2521 + $0x81] sm:$0xff]
      %v2920 = vld [vmem:[%s2521 + $0x91] sm:$0xff]
      %v2921 = vld [vmem:[%s2521 + $0x99] sm:$0xff]
      %v2922 = vld [vmem:[%s2521 + $0xa9] sm:$0xff]
      %v2923 = vld [vmem:[%s2521 + $0xb1] sm:$0xff]
      %v2924 = vld [vmem:[%s2521 + $0xc1] sm:$0xff]
      %v2925 = vld [vmem:[%s2521 + $0xc9] sm:$0xff]
      %v2926 = vld [vmem:[%s2521 + $0xd9] sm:$0xff]
      %v2927 = vld [vmem:[%s2521 + $0xe1] sm:$0xff]
      %v2928 = vld [vmem:[%s2521 + $0xf1] sm:$0xff]
      %v2929 = vld [vmem:[%s2521 + $0xf9] sm:$0xff]
      %v2930 = vld [vmem:[%s2521 + $0x109] sm:$0xff]
      %v2931 = vld [vmem:[%s2521 + $0x111] sm:$0xff]
      %v2932 = vld [vmem:[%s2521 + $0x121] sm:$0xff]
      %v2933 = vld [vmem:[%s2521 + $0x129] sm:$0xff]
      %v2934 = vld [vmem:[%s2521 + $0x139] sm:$0xff]
      %v2935 = vld [vmem:[%s2521 + $0x141] sm:$0xff]
      %v2936 = vld [vmem:[%s2521 + $0x151] sm:$0xff]
      %v2937 = vld [vmem:[%s2521 + $0x159] sm:$0xff]
      %v2938 = vld [vmem:[%s2521 + $0x169] sm:$0xff]
      %v2939 = vld [vmem:[%s2521 + $0x171] sm:$0xff]
      %v2940 = vld [vmem:[#allocation2] sm:$0xff]
      %v2941 = vld [vmem:[#allocation2 + $0x8] sm:$0xff]
      %v2942 = vld [vmem:[#allocation2 + $0x10] sm:$0xff]
      %v2943 = vld [vmem:[#allocation2 + $0x18] sm:$0xff]
      %v2944 = vld [vmem:[#allocation2 + $0x20] sm:$0xff]
      %v2945 = vld [vmem:[#allocation2 + $0x28] sm:$0xff]
      %v2946 = vld [vmem:[#allocation2 + $0x30] sm:$0xff]
      %v2947 = vld [vmem:[#allocation2 + $0x38] sm:$0xff]
      %v2948 = vld [vmem:[#allocation2 + $0x40] sm:$0xff]
      %v2949 = vld [vmem:[#allocation2 + $0x48] sm:$0xff]
      %v2950 = vld [vmem:[#allocation2 + $0x50] sm:$0xff]
      %v2951 = vld [vmem:[#allocation2 + $0x58] sm:$0xff]
      %v2952 = vld [vmem:[#allocation2 + $0x60] sm:$0xff]
      %v2953 = vld [vmem:[#allocation2 + $0x68] sm:$0xff]
      %v2954 = vld [vmem:[#allocation2 + $0x70] sm:$0xff]
      %v2955 = vld [vmem:[#allocation2 + $0x78] sm:$0xff]
      %v2956 = vld [vmem:[#allocation2 + $0x80] sm:$0xff]
      %v2957 = vld [vmem:[#allocation2 + $0x88] sm:$0xff]
      %v2958 = vld [vmem:[#allocation2 + $0x90] sm:$0xff]
      %v2959 = vld [vmem:[#allocation2 + $0x98] sm:$0xff]
      %v2960 = vld [vmem:[#allocation2 + $0xa0] sm:$0xff]
      %v2961 = vld [vmem:[#allocation2 + $0xa8] sm:$0xff]
      %v2962 = vld [vmem:[#allocation2 + $0xb0] sm:$0xff]
      %v2963 = vld [vmem:[#allocation2 + $0xb8] sm:$0xff]
      %v2964 = vld [vmem:[#allocation2 + $0xc0] sm:$0xff]
      %v2965 = vld [vmem:[#allocation2 + $0xc8] sm:$0xff]
      %v2966 = vld [vmem:[#allocation2 + $0xd0] sm:$0xff]
      %v2967 = vld [vmem:[#allocation2 + $0xd8] sm:$0xff]
      %v2968 = vld [vmem:[#allocation2 + $0xe0] sm:$0xff]
      %v2969 = vld [vmem:[#allocation2 + $0xe8] sm:$0xff]
      %v2970 = vld [vmem:[#allocation2 + $0xf0] sm:$0xff]
      %v2971 = vld [vmem:[#allocation2 + $0xf8] sm:$0xff]
      %v2972 = vpack.c.bf16 %v2909, %v2908
      %v2973 = vpack.c.bf16 %v2911, %v2910
      %v2974 = vpack.c.bf16 %v2913, %v2912
      %v2975 = vpack.c.bf16 %v2915, %v2914
      %v2976 = vpack.c.bf16 %v2917, %v2916
      %v2977 = vpack.c.bf16 %v2919, %v2918
      %v2978 = vpack.c.bf16 %v2921, %v2920
      %v2979 = vpack.c.bf16 %v2923, %v2922
      %v2980 = vpack.c.bf16 %v2925, %v2924
      %v2981 = vpack.c.bf16 %v2927, %v2926
      %v2982 = vpack.c.bf16 %v2929, %v2928
      %v2983 = vpack.c.bf16 %v2931, %v2930
      %v2984 = vpack.c.bf16 %v2933, %v2932
      %v2985 = vpack.c.bf16 %v2935, %v2934
      %v2986 = vpack.c.bf16 %v2937, %v2936
      %v2987 = vpack.c.bf16 %v2939, %v2938
      %s2988 = scalar_lea.vmem %s1, 224
      %v2989 = vld [vmem:[%s2988] sm:$0xf]
      %v2990 = vld [vmem:[%s2988 + $0x4] sm:$0xf]
      %v2991 = vld [vmem:[%s2988 + $0x8] sm:$0xf]
      %v2992 = vld [vmem:[%s2988 + $0xc] sm:$0xf]
      %v2993 = vld [vmem:[%s2988 + $0x10] sm:$0xf]
      %v2994 = vld [vmem:[%s2988 + $0x14] sm:$0xf]
      %v2995 = vld [vmem:[%s2988 + $0x18] sm:$0xf]
      %v2996 = vld [vmem:[%s2988 + $0x1c] sm:$0xf]
      %v3005 = vunpack.c.l.b16 %v2989
      %v3006 = vunpack.c.l.b16 %v2990
      %v3007 = vunpack.c.l.b16 %v2991
      %v3008 = vunpack.c.l.b16 %v2992
      %v3009 = vunpack.c.l.b16 %v2993
      %v3010 = vunpack.c.l.b16 %v2994
      %v3011 = vunpack.c.l.b16 %v2995
      %v3012 = vunpack.c.l.b16 %v2996
      %v3013 = vpack.c.b16 %v3006, %v3005
      %v3014 = vpack.c.b16 %v3008, %v3007
      %v3015 = vpack.c.b16 %v3010, %v3009
      %v3016 = vpack.c.b16 %v3012, %v3011
      %v3022 = vsel %vm316, %v2972, 0
      %v3025 = vsel %vm316, %v2973, 0
      %v3028 = vsel %vm316, %v2974, 0
      %v3031 = vsel %vm316, %v2975, 0
      %v3034 = vsel %vm316, %v2976, 0
      %v3037 = vsel %vm316, %v2977, 0
      %v3040 = vsel %vm316, %v2978, 0
      %v3043 = vsel %vm316, %v2979, 0
      %v3046 = vsel %vm316, %v2980, 0
      %v3049 = vsel %vm316, %v2981, 0
      %v3052 = vsel %vm316, %v2982, 0
      %v3055 = vsel %vm316, %v2983, 0
      %v3058 = vsel %vm316, %v2984, 0
      %v3061 = vsel %vm316, %v2985, 0
      %v3064 = vsel %vm316, %v2986, 0
      %v3067 = vsel %vm316, %v2987, 0
      %3069 = vmatprep.subr.bf16.mxu0 0
      %3070 = vmatpush1.bf16.msra.mxu0 %v3013
      %3071 = vmatprep.subr.bf16.mxu0 0
      %3072 = vmatpush1.bf16.msra.mxu0 %v3014
      %3073 = vmatprep.subr.bf16.mxu0 0
      %3074 = vmatpush1.bf16.msra.mxu0 %v3015
      %3075 = vmatprep.subr.bf16.mxu0 0
      %3076 = vmatpush1.bf16.msra.mxu0 %v3016
      %3077 = vmatprep.subr.bf16.mxu0 0
      %3078 = vmatpush1.bf16.msra.mxu0 0
      %3079 = vmatprep.subr.bf16.mxu0 0
      %3080 = vmatpush1.bf16.msra.mxu0 0
      %3081 = vmatprep.subr.bf16.mxu0 0
      %3082 = vmatpush1.bf16.msra.mxu0 0
      %3083 = vmatprep.subr.bf16.mxu0 0
      %3084 = vmatpush1.bf16.msra.mxu0 0
      %3085 = vmatprep.subr.bf16.mxu0 0
      %3086 = vmatpush1.bf16.msra.mxu0 0
      %3087 = vmatprep.subr.bf16.mxu0 0
      %3088 = vmatpush1.bf16.msra.mxu0 0
      %3089 = vmatprep.subr.bf16.mxu0 0
      %3090 = vmatpush1.bf16.msra.mxu0 0
      %3091 = vmatprep.subr.bf16.mxu0 0
      %3092 = vmatpush1.bf16.msra.mxu0 0
      %3093 = vmatprep.subr.bf16.mxu0 0
      %3094 = vmatpush1.bf16.msra.mxu0 0
      %3095 = vmatprep.subr.bf16.mxu0 0
      %3096 = vmatpush1.bf16.msra.mxu0 0
      %3097 = vmatprep.subr.bf16.mxu0 0
      %3098 = vmatpush1.bf16.msra.mxu0 0
      %3099 = vmatprep.subr.bf16.mxu0 0
      %3100 = vmatpush1.bf16.msra.mxu0 0
      %3101 = vmatprep.mubr.bf16.mxu0 0
      %3102 = vmatmul.mubr.bf16.gmra.mrb[0].mxu0 %v3022
      %v3103 = vpop.f32.mrb[0].mxu0
      %v3104 = vadd.f32 0.0, %v3103
      %v3105 = vpop.f32.mrb[0].mxu0
      %v3106 = vpop.f32.mrb[0].mxu0
      %v3107 = vadd.f32 0.0, %v3106
      %v3108 = vpop.f32.mrb[0].mxu0
      %3109 = vmatprep.mubr.bf16.mxu0 0
      %3110 = vmatmul.mubr.bf16.gmra.mrb[0].mxu0 %v3025
      %v3111 = vpop.f32.mrb[0].mxu0
      %v3112 = vadd.f32 0.0, %v3111
      %v3113 = vpop.f32.mrb[0].mxu0
      %v3114 = vpop.f32.mrb[0].mxu0
      %v3115 = vadd.f32 0.0, %v3114
      %v3116 = vpop.f32.mrb[0].mxu0
      %3117 = vmatprep.mubr.bf16.mxu0 0
      %3118 = vmatmul.mubr.bf16.gmra.mrb[0].mxu0 %v3028
      %v3119 = vpop.f32.mrb[0].mxu0
      %v3120 = vadd.f32 0.0, %v3119
      %v3121 = vpop.f32.mrb[0].mxu0
      %v3122 = vpop.f32.mrb[0].mxu0
      %v3123 = vadd.f32 0.0, %v3122
      %v3124 = vpop.f32.mrb[0].mxu0
      %3125 = vmatprep.mubr.bf16.mxu0 0
      %3126 = vmatmul.mubr.bf16.gmra.mrb[0].mxu0 %v3031
      %v3127 = vpop.f32.mrb[0].mxu0
      %v3128 = vadd.f32 0.0, %v3127
      %v3129 = vpop.f32.mrb[0].mxu0
      %v3130 = vpop.f32.mrb[0].mxu0
      %v3131 = vadd.f32 0.0, %v3130
      %v3132 = vpop.f32.mrb[0].mxu0
      %3133 = vmatprep.mubr.bf16.mxu0 0
      %3134 = vmatmul.mubr.bf16.gmra.mrb[0].mxu0 %v3034
      %v3135 = vpop.f32.mrb[0].mxu0
      %v3136 = vadd.f32 0.0, %v3135
      %v3137 = vpop.f32.mrb[0].mxu0
      %v3138 = vpop.f32.mrb[0].mxu0
      %v3139 = vadd.f32 0.0, %v3138
      %v3140 = vpop.f32.mrb[0].mxu0
      %3141 = vmatprep.mubr.bf16.mxu0 0
      %3142 = vmatmul.mubr.bf16.gmra.mrb[0].mxu0 %v3037
      %v3143 = vpop.f32.mrb[0].mxu0
      %v3144 = vadd.f32 0.0, %v3143
      %v3145 = vpop.f32.mrb[0].mxu0
      %v3146 = vpop.f32.mrb[0].mxu0
      %v3147 = vadd.f32 0.0, %v3146
      %v3148 = vpop.f32.mrb[0].mxu0
      %3149 = vmatprep.mubr.bf16.mxu0 0
      %3150 = vmatmul.mubr.bf16.gmra.mrb[0].mxu0 %v3040
      %v3151 = vpop.f32.mrb[0].mxu0
      %v3152 = vadd.f32 0.0, %v3151
      %v3153 = vpop.f32.mrb[0].mxu0
      %v3154 = vpop.f32.mrb[0].mxu0
      %v3155 = vadd.f32 0.0, %v3154
      %v3156 = vpop.f32.mrb[0].mxu0
      %3157 = vmatprep.mubr.bf16.mxu0 0
      %3158 = vmatmul.mubr.bf16.gmra.mrb[0].mxu0 %v3043
      %v3159 = vpop.f32.mrb[0].mxu0
      %v3160 = vadd.f32 0.0, %v3159
      %v3161 = vpop.f32.mrb[0].mxu0
      %v3162 = vpop.f32.mrb[0].mxu0
      %v3163 = vadd.f32 0.0, %v3162
      %v3164 = vpop.f32.mrb[0].mxu0
      %3165 = vmatprep.mubr.bf16.mxu0 0
      %3166 = vmatmul.mubr.bf16.gmra.mrb[0].mxu0 %v3046
      %v3167 = vpop.f32.mrb[0].mxu0
      %v3168 = vadd.f32 0.0, %v3167
      %v3169 = vpop.f32.mrb[0].mxu0
      %v3170 = vpop.f32.mrb[0].mxu0
      %v3171 = vadd.f32 0.0, %v3170
      %v3172 = vpop.f32.mrb[0].mxu0
      %3173 = vmatprep.mubr.bf16.mxu0 0
      %3174 = vmatmul.mubr.bf16.gmra.mrb[0].mxu0 %v3049
      %v3175 = vpop.f32.mrb[0].mxu0
      %v3176 = vadd.f32 0.0, %v3175
      %v3177 = vpop.f32.mrb[0].mxu0
      %v3178 = vpop.f32.mrb[0].mxu0
      %v3179 = vadd.f32 0.0, %v3178
      %v3180 = vpop.f32.mrb[0].mxu0
      %3181 = vmatprep.mubr.bf16.mxu0 0
      %3182 = vmatmul.mubr.bf16.gmra.mrb[0].mxu0 %v3052
      %v3183 = vpop.f32.mrb[0].mxu0
      %v3184 = vadd.f32 0.0, %v3183
      %v3185 = vpop.f32.mrb[0].mxu0
      %v3186 = vpop.f32.mrb[0].mxu0
      %v3187 = vadd.f32 0.0, %v3186
      %v3188 = vpop.f32.mrb[0].mxu0
      %3189 = vmatprep.mubr.bf16.mxu0 0
      %3190 = vmatmul.mubr.bf16.gmra.mrb[0].mxu0 %v3055
      %v3191 = vpop.f32.mrb[0].mxu0
      %v3192 = vadd.f32 0.0, %v3191
      %v3193 = vpop.f32.mrb[0].mxu0
      %v3194 = vpop.f32.mrb[0].mxu0
      %v3195 = vadd.f32 0.0, %v3194
      %v3196 = vpop.f32.mrb[0].mxu0
      %3197 = vmatprep.mubr.bf16.mxu0 0
      %3198 = vmatmul.mubr.bf16.gmra.mrb[0].mxu0 %v3058
      %v3199 = vpop.f32.mrb[0].mxu0
      %v3200 = vadd.f32 0.0, %v3199
      %v3201 = vpop.f32.mrb[0].mxu0
      %v3202 = vpop.f32.mrb[0].mxu0
      %v3203 = vadd.f32 0.0, %v3202
      %v3204 = vpop.f32.mrb[0].mxu0
      %3205 = vmatprep.mubr.bf16.mxu0 0
      %3206 = vmatmul.mubr.bf16.gmra.mrb[0].mxu0 %v3061
      %v3207 = vpop.f32.mrb[0].mxu0
      %v3208 = vadd.f32 0.0, %v3207
      %v3209 = vpop.f32.mrb[0].mxu0
      %v3210 = vpop.f32.mrb[0].mxu0
      %v3211 = vadd.f32 0.0, %v3210
      %v3212 = vpop.f32.mrb[0].mxu0
      %3213 = vmatprep.mubr.bf16.mxu0 0
      %3214 = vmatmul.mubr.bf16.gmra.mrb[0].mxu0 %v3064
      %v3215 = vpop.f32.mrb[0].mxu0
      %v3216 = vadd.f32 0.0, %v3215
      %v3217 = vpop.f32.mrb[0].mxu0
      %v3218 = vpop.f32.mrb[0].mxu0
      %v3219 = vadd.f32 0.0, %v3218
      %v3220 = vpop.f32.mrb[0].mxu0
      %3221 = vmatprep.mubr.bf16.mxu0 0
      %3222 = vmatmul.mubr.bf16.gmra.mrb[0].mxu0 %v3067
      %v3223 = vpop.f32.mrb[0].mxu0
      %v3224 = vadd.f32 0.0, %v3223
      %v3225 = vpop.f32.mrb[0].mxu0
      %v3226 = vpop.f32.mrb[0].mxu0
      %v3227 = vadd.f32 0.0, %v3226
      %v3228 = vpop.f32.mrb[0].mxu0
      %3229 = vdwg.mxu0
      %v3230 = vadd.f32 %v2940, %v3104
      %v3231 = vadd.f32 %v2941, %v3107
      %v3232 = vadd.f32 %v2942, %v3112
      %v3233 = vadd.f32 %v2943, %v3115
      %v3234 = vadd.f32 %v2944, %v3120
      %v3235 = vadd.f32 %v2945, %v3123
      %v3236 = vadd.f32 %v2946, %v3128
      %v3237 = vadd.f32 %v2947, %v3131
      %v3238 = vadd.f32 %v2948, %v3136
      %v3239 = vadd.f32 %v2949, %v3139
      %v3240 = vadd.f32 %v2950, %v3144
      %v3241 = vadd.f32 %v2951, %v3147
      %v3242 = vadd.f32 %v2952, %v3152
      %v3243 = vadd.f32 %v2953, %v3155
      %v3244 = vadd.f32 %v2954, %v3160
      %v3245 = vadd.f32 %v2955, %v3163
      %v3246 = vadd.f32 %v2956, %v3168
      %v3247 = vadd.f32 %v2957, %v3171
      %v3248 = vadd.f32 %v2958, %v3176
      %v3249 = vadd.f32 %v2959, %v3179
      %v3250 = vadd.f32 %v2960, %v3184
      %v3251 = vadd.f32 %v2961, %v3187
      %v3252 = vadd.f32 %v2962, %v3192
      %v3253 = vadd.f32 %v2963, %v3195
      %v3254 = vadd.f32 %v2964, %v3200
      %v3255 = vadd.f32 %v2965, %v3203
      %v3256 = vadd.f32 %v2966, %v3208
      %v3257 = vadd.f32 %v2967, %v3211
      %v3258 = vadd.f32 %v2968, %v3216
      %v3259 = vadd.f32 %v2969, %v3219
      %v3260 = vadd.f32 %v2970, %v3224
      %v3261 = vadd.f32 %v2971, %v3227
      %3262 = vst [vmem:[#allocation2] sm:$0xff] %v3230
      %3263 = vst [vmem:[#allocation2 + $0x8] sm:$0xff] %v3231
      %3264 = vst [vmem:[#allocation2 + $0x10] sm:$0xff] %v3232
      %3265 = vst [vmem:[#allocation2 + $0x18] sm:$0xff] %v3233
      %3266 = vst [vmem:[#allocation2 + $0x20] sm:$0xff] %v3234
      %3267 = vst [vmem:[#allocation2 + $0x28] sm:$0xff] %v3235
      %3268 = vst [vmem:[#allocation2 + $0x30] sm:$0xff] %v3236
      %3269 = vst [vmem:[#allocation2 + $0x38] sm:$0xff] %v3237
      %3270 = vst [vmem:[#allocation2 + $0x40] sm:$0xff] %v3238
      %3271 = vst [vmem:[#allocation2 + $0x48] sm:$0xff] %v3239
      %3272 = vst [vmem:[#allocation2 + $0x50] sm:$0xff] %v3240
      %3273 = vst [vmem:[#allocation2 + $0x58] sm:$0xff] %v3241
      %3274 = vst [vmem:[#allocation2 + $0x60] sm:$0xff] %v3242
      %3275 = vst [vmem:[#allocation2 + $0x68] sm:$0xff] %v3243
      %3276 = vst [vmem:[#allocation2 + $0x70] sm:$0xff] %v3244
      %3277 = vst [vmem:[#allocation2 + $0x78] sm:$0xff] %v3245
      %3278 = vst [vmem:[#allocation2 + $0x80] sm:$0xff] %v3246
      %3279 = vst [vmem:[#allocation2 + $0x88] sm:$0xff] %v3247
      %3280 = vst [vmem:[#allocation2 + $0x90] sm:$0xff] %v3248
      %3281 = vst [vmem:[#allocation2 + $0x98] sm:$0xff] %v3249
      %3282 = vst [vmem:[#allocation2 + $0xa0] sm:$0xff] %v3250
      %3283 = vst [vmem:[#allocation2 + $0xa8] sm:$0xff] %v3251
      %3284 = vst [vmem:[#allocation2 + $0xb0] sm:$0xff] %v3252
      %3285 = vst [vmem:[#allocation2 + $0xb8] sm:$0xff] %v3253
      %3286 = vst [vmem:[#allocation2 + $0xc0] sm:$0xff] %v3254
      %3287 = vst [vmem:[#allocation2 + $0xc8] sm:$0xff] %v3255
      %3288 = vst [vmem:[#allocation2 + $0xd0] sm:$0xff] %v3256
      %3289 = vst [vmem:[#allocation2 + $0xd8] sm:$0xff] %v3257
      %3290 = vst [vmem:[#allocation2 + $0xe0] sm:$0xff] %v3258
      %3291 = vst [vmem:[#allocation2 + $0xe8] sm:$0xff] %v3259
      %3292 = vst [vmem:[#allocation2 + $0xf0] sm:$0xff] %v3260
      %3293 = vst [vmem:[#allocation2 + $0xf8] sm:$0xff] %v3261
      %v3294 = vld [vmem:[%s2521 + $0x2] sm:$0xff]
      %v3295 = vld [vmem:[%s2521 + $0xa] sm:$0xff]
      %v3296 = vld [vmem:[%s2521 + $0x1a] sm:$0xff]
      %v3297 = vld [vmem:[%s2521 + $0x22] sm:$0xff]
      %v3298 = vld [vmem:[%s2521 + $0x32] sm:$0xff]
      %v3299 = vld [vmem:[%s2521 + $0x3a] sm:$0xff]
      %v3300 = vld [vmem:[%s2521 + $0x4a] sm:$0xff]
      %v3301 = vld [vmem:[%s2521 + $0x52] sm:$0xff]
      %v3302 = vld [vmem:[%s2521 + $0x62] sm:$0xff]
      %v3303 = vld [vmem:[%s2521 + $0x6a] sm:$0xff]
      %v3304 = vld [vmem:[%s2521 + $0x7a] sm:$0xff]
      %v3305 = vld [vmem:[%s2521 + $0x82] sm:$0xff]
      %v3306 = vld [vmem:[%s2521 + $0x92] sm:$0xff]
      %v3307 = vld [vmem:[%s2521 + $0x9a] sm:$0xff]
      %v3308 = vld [vmem:[%s2521 + $0xaa] sm:$0xff]
      %v3309 = vld [vmem:[%s2521 + $0xb2] sm:$0xff]
      %v3310 = vld [vmem:[%s2521 + $0xc2] sm:$0xff]
      %v3311 = vld [vmem:[%s2521 + $0xca] sm:$0xff]
      %v3312 = vld [vmem:[%s2521 + $0xda] sm:$0xff]
      %v3313 = vld [vmem:[%s2521 + $0xe2] sm:$0xff]
      %v3314 = vld [vmem:[%s2521 + $0xf2] sm:$0xff]
      %v3315 = vld [vmem:[%s2521 + $0xfa] sm:$0xff]
      %v3316 = vld [vmem:[%s2521 + $0x10a] sm:$0xff]
      %v3317 = vld [vmem:[%s2521 + $0x112] sm:$0xff]
      %v3318 = vld [vmem:[%s2521 + $0x122] sm:$0xff]
      %v3319 = vld [vmem:[%s2521 + $0x12a] sm:$0xff]
      %v3320 = vld [vmem:[%s2521 + $0x13a] sm:$0xff]
      %v3321 = vld [vmem:[%s2521 + $0x142] sm:$0xff]
      %v3322 = vld [vmem:[%s2521 + $0x152] sm:$0xff]
      %v3323 = vld [vmem:[%s2521 + $0x15a] sm:$0xff]
      %v3324 = vld [vmem:[%s2521 + $0x16a] sm:$0xff]
      %v3325 = vld [vmem:[%s2521 + $0x172] sm:$0xff]
      %v3326 = vld [vmem:[#allocation2] sm:$0xff]
      %v3327 = vld [vmem:[#allocation2 + $0x8] sm:$0xff]
      %v3328 = vld [vmem:[#allocation2 + $0x10] sm:$0xff]
      %v3329 = vld [vmem:[#allocation2 + $0x18] sm:$0xff]
      %v3330 = vld [vmem:[#allocation2 + $0x20] sm:$0xff]
      %v3331 = vld [vmem:[#allocation2 + $0x28] sm:$0xff]
      %v3332 = vld [vmem:[#allocation2 + $0x30] sm:$0xff]
      %v3333 = vld [vmem:[#allocation2 + $0x38] sm:$0xff]
      %v3334 = vld [vmem:[#allocation2 + $0x40] sm:$0xff]
      %v3335 = vld [vmem:[#allocation2 + $0x48] sm:$0xff]
      %v3336 = vld [vmem:[#allocation2 + $0x50] sm:$0xff]
      %v3337 = vld [vmem:[#allocation2 + $0x58] sm:$0xff]
      %v3338 = vld [vmem:[#allocation2 + $0x60] sm:$0xff]
      %v3339 = vld [vmem:[#allocation2 + $0x68] sm:$0xff]
      %v3340 = vld [vmem:[#allocation2 + $0x70] sm:$0xff]
      %v3341 = vld [vmem:[#allocation2 + $0x78] sm:$0xff]
      %v3342 = vld [vmem:[#allocation2 + $0x80] sm:$0xff]
      %v3343 = vld [vmem:[#allocation2 + $0x88] sm:$0xff]
      %v3344 = vld [vmem:[#allocation2 + $0x90] sm:$0xff]
      %v3345 = vld [vmem:[#allocation2 + $0x98] sm:$0xff]
      %v3346 = vld [vmem:[#allocation2 + $0xa0] sm:$0xff]
      %v3347 = vld [vmem:[#allocation2 + $0xa8] sm:$0xff]
      %v3348 = vld [vmem:[#allocation2 + $0xb0] sm:$0xff]
      %v3349 = vld [vmem:[#allocation2 + $0xb8] sm:$0xff]
      %v3350 = vld [vmem:[#allocation2 + $0xc0] sm:$0xff]
      %v3351 = vld [vmem:[#allocation2 + $0xc8] sm:$0xff]
      %v3352 = vld [vmem:[#allocation2 + $0xd0] sm:$0xff]
      %v3353 = vld [vmem:[#allocation2 + $0xd8] sm:$0xff]
      %v3354 = vld [vmem:[#allocation2 + $0xe0] sm:$0xff]
      %v3355 = vld [vmem:[#allocation2 + $0xe8] sm:$0xff]
      %v3356 = vld [vmem:[#allocation2 + $0xf0] sm:$0xff]
      %v3357 = vld [vmem:[#allocation2 + $0xf8] sm:$0xff]
      %v3358 = vpack.c.bf16 %v3295, %v3294
      %v3359 = vpack.c.bf16 %v3297, %v3296
      %v3360 = vpack.c.bf16 %v3299, %v3298
      %v3361 = vpack.c.bf16 %v3301, %v3300
      %v3362 = vpack.c.bf16 %v3303, %v3302
      %v3363 = vpack.c.bf16 %v3305, %v3304
      %v3364 = vpack.c.bf16 %v3307, %v3306
      %v3365 = vpack.c.bf16 %v3309, %v3308
      %v3366 = vpack.c.bf16 %v3311, %v3310
      %v3367 = vpack.c.bf16 %v3313, %v3312
      %v3368 = vpack.c.bf16 %v3315, %v3314
      %v3369 = vpack.c.bf16 %v3317, %v3316
      %v3370 = vpack.c.bf16 %v3319, %v3318
      %v3371 = vpack.c.bf16 %v3321, %v3320
      %v3372 = vpack.c.bf16 %v3323, %v3322
      %v3373 = vpack.c.bf16 %v3325, %v3324
      %s3374 = scalar_lea.vmem %s1, 256
      %v3375 = vld [vmem:[%s3374] sm:$0xf]
      %v3376 = vld [vmem:[%s3374 + $0x4] sm:$0xf]
      %v3377 = vld [vmem:[%s3374 + $0x8] sm:$0xf]
      %v3378 = vld [vmem:[%s3374 + $0xc] sm:$0xf]
      %v3379 = vld [vmem:[%s3374 + $0x10] sm:$0xf]
      %v3380 = vld [vmem:[%s3374 + $0x14] sm:$0xf]
      %v3381 = vld [vmem:[%s3374 + $0x18] sm:$0xf]
      %v3382 = vld [vmem:[%s3374 + $0x1c] sm:$0xf]
      %v3391 = vunpack.c.l.b16 %v3375
      %v3392 = vunpack.c.l.b16 %v3376
      %v3393 = vunpack.c.l.b16 %v3377
      %v3394 = vunpack.c.l.b16 %v3378
      %v3395 = vunpack.c.l.b16 %v3379
      %v3396 = vunpack.c.l.b16 %v3380
      %v3397 = vunpack.c.l.b16 %v3381
      %v3398 = vunpack.c.l.b16 %v3382
      %v3399 = vpack.c.b16 %v3392, %v3391
      %v3400 = vpack.c.b16 %v3394, %v3393
      %v3401 = vpack.c.b16 %v3396, %v3395
      %v3402 = vpack.c.b16 %v3398, %v3397
      %v3408 = vsel %vm316, %v3358, 0
      %v3411 = vsel %vm316, %v3359, 0
      %v3414 = vsel %vm316, %v3360, 0
      %v3417 = vsel %vm316, %v3361, 0
      %v3420 = vsel %vm316, %v3362, 0
      %v3423 = vsel %vm316, %v3363, 0
      %v3426 = vsel %vm316, %v3364, 0
      %v3429 = vsel %vm316, %v3365, 0
      %v3432 = vsel %vm316, %v3366, 0
      %v3435 = vsel %vm316, %v3367, 0
      %v3438 = vsel %vm316, %v3368, 0
      %v3441 = vsel %vm316, %v3369, 0
      %v3444 = vsel %vm316, %v3370, 0
      %v3447 = vsel %vm316, %v3371, 0
      %v3450 = vsel %vm316, %v3372, 0
      %v3453 = vsel %vm316, %v3373, 0
      %3455 = vmatprep.subr.bf16.mxu0 0
      %3456 = vmatpush1.bf16.msra.mxu0 %v3399
      %3457 = vmatprep.subr.bf16.mxu0 0
      %3458 = vmatpush1.bf16.msra.mxu0 %v3400
      %3459 = vmatprep.subr.bf16.mxu0 0
      %3460 = vmatpush1.bf16.msra.mxu0 %v3401
      %3461 = vmatprep.subr.bf16.mxu0 0
      %3462 = vmatpush1.bf16.msra.mxu0 %v3402
      %3463 = vmatprep.subr.bf16.mxu0 0
      %3464 = vmatpush1.bf16.msra.mxu0 0
      %3465 = vmatprep.subr.bf16.mxu0 0
      %3466 = vmatpush1.bf16.msra.mxu0 0
      %3467 = vmatprep.subr.bf16.mxu0 0
      %3468 = vmatpush1.bf16.msra.mxu0 0
      %3469 = vmatprep.subr.bf16.mxu0 0
      %3470 = vmatpush1.bf16.msra.mxu0 0
      %3471 = vmatprep.subr.bf16.mxu0 0
      %3472 = vmatpush1.bf16.msra.mxu0 0
      %3473 = vmatprep.subr.bf16.mxu0 0
      %3474 = vmatpush1.bf16.msra.mxu0 0
      %3475 = vmatprep.subr.bf16.mxu0 0
      %3476 = vmatpush1.bf16.msra.mxu0 0
      %3477 = vmatprep.subr.bf16.mxu0 0
      %3478 = vmatpush1.bf16.msra.mxu0 0
      %3479 = vmatprep.subr.bf16.mxu0 0
      %3480 = vmatpush1.bf16.msra.mxu0 0
      %3481 = vmatprep.subr.bf16.mxu0 0
      %3482 = vmatpush1.bf16.msra.mxu0 0
      %3483 = vmatprep.subr.bf16.mxu0 0
      %3484 = vmatpush1.bf16.msra.mxu0 0
      %3485 = vmatprep.subr.bf16.mxu0 0
      %3486 = vmatpush1.bf16.msra.mxu0 0
      %3487 = vmatprep.mubr.bf16.mxu0 0
      %3488 = vmatmul.mubr.bf16.gmra.mrb[0].mxu0 %v3408
      %v3489 = vpop.f32.mrb[0].mxu0
      %v3490 = vadd.f32 0.0, %v3489
      %v3491 = vpop.f32.mrb[0].mxu0
      %v3492 = vpop.f32.mrb[0].mxu0
      %v3493 = vadd.f32 0.0, %v3492
      %v3494 = vpop.f32.mrb[0].mxu0
      %3495 = vmatprep.mubr.bf16.mxu0 0
      %3496 = vmatmul.mubr.bf16.gmra.mrb[0].mxu0 %v3411
      %v3497 = vpop.f32.mrb[0].mxu0
      %v3498 = vadd.f32 0.0, %v3497
      %v3499 = vpop.f32.mrb[0].mxu0
      %v3500 = vpop.f32.mrb[0].mxu0
      %v3501 = vadd.f32 0.0, %v3500
      %v3502 = vpop.f32.mrb[0].mxu0
      %3503 = vmatprep.mubr.bf16.mxu0 0
      %3504 = vmatmul.mubr.bf16.gmra.mrb[0].mxu0 %v3414
      %v3505 = vpop.f32.mrb[0].mxu0
      %v3506 = vadd.f32 0.0, %v3505
      %v3507 = vpop.f32.mrb[0].mxu0
      %v3508 = vpop.f32.mrb[0].mxu0
      %v3509 = vadd.f32 0.0, %v3508
      %v3510 = vpop.f32.mrb[0].mxu0
      %3511 = vmatprep.mubr.bf16.mxu0 0
      %3512 = vmatmul.mubr.bf16.gmra.mrb[0].mxu0 %v3417
      %v3513 = vpop.f32.mrb[0].mxu0
      %v3514 = vadd.f32 0.0, %v3513
      %v3515 = vpop.f32.mrb[0].mxu0
      %v3516 = vpop.f32.mrb[0].mxu0
      %v3517 = vadd.f32 0.0, %v3516
      %v3518 = vpop.f32.mrb[0].mxu0
      %3519 = vmatprep.mubr.bf16.mxu0 0
      %3520 = vmatmul.mubr.bf16.gmra.mrb[0].mxu0 %v3420
      %v3521 = vpop.f32.mrb[0].mxu0
      %v3522 = vadd.f32 0.0, %v3521
      %v3523 = vpop.f32.mrb[0].mxu0
      %v3524 = vpop.f32.mrb[0].mxu0
      %v3525 = vadd.f32 0.0, %v3524
      %v3526 = vpop.f32.mrb[0].mxu0
      %3527 = vmatprep.mubr.bf16.mxu0 0
      %3528 = vmatmul.mubr.bf16.gmra.mrb[0].mxu0 %v3423
      %v3529 = vpop.f32.mrb[0].mxu0
      %v3530 = vadd.f32 0.0, %v3529
      %v3531 = vpop.f32.mrb[0].mxu0
      %v3532 = vpop.f32.mrb[0].mxu0
      %v3533 = vadd.f32 0.0, %v3532
      %v3534 = vpop.f32.mrb[0].mxu0
      %3535 = vmatprep.mubr.bf16.mxu0 0
      %3536 = vmatmul.mubr.bf16.gmra.mrb[0].mxu0 %v3426
      %v3537 = vpop.f32.mrb[0].mxu0
      %v3538 = vadd.f32 0.0, %v3537
      %v3539 = vpop.f32.mrb[0].mxu0
      %v3540 = vpop.f32.mrb[0].mxu0
      %v3541 = vadd.f32 0.0, %v3540
      %v3542 = vpop.f32.mrb[0].mxu0
      %3543 = vmatprep.mubr.bf16.mxu0 0
      %3544 = vmatmul.mubr.bf16.gmra.mrb[0].mxu0 %v3429
      %v3545 = vpop.f32.mrb[0].mxu0
      %v3546 = vadd.f32 0.0, %v3545
      %v3547 = vpop.f32.mrb[0].mxu0
      %v3548 = vpop.f32.mrb[0].mxu0
      %v3549 = vadd.f32 0.0, %v3548
      %v3550 = vpop.f32.mrb[0].mxu0
      %3551 = vmatprep.mubr.bf16.mxu0 0
      %3552 = vmatmul.mubr.bf16.gmra.mrb[0].mxu0 %v3432
      %v3553 = vpop.f32.mrb[0].mxu0
      %v3554 = vadd.f32 0.0, %v3553
      %v3555 = vpop.f32.mrb[0].mxu0
      %v3556 = vpop.f32.mrb[0].mxu0
      %v3557 = vadd.f32 0.0, %v3556
      %v3558 = vpop.f32.mrb[0].mxu0
      %3559 = vmatprep.mubr.bf16.mxu0 0
      %3560 = vmatmul.mubr.bf16.gmra.mrb[0].mxu0 %v3435
      %v3561 = vpop.f32.mrb[0].mxu0
      %v3562 = vadd.f32 0.0, %v3561
      %v3563 = vpop.f32.mrb[0].mxu0
      %v3564 = vpop.f32.mrb[0].mxu0
      %v3565 = vadd.f32 0.0, %v3564
      %v3566 = vpop.f32.mrb[0].mxu0
      %3567 = vmatprep.mubr.bf16.mxu0 0
      %3568 = vmatmul.mubr.bf16.gmra.mrb[0].mxu0 %v3438
      %v3569 = vpop.f32.mrb[0].mxu0
      %v3570 = vadd.f32 0.0, %v3569
      %v3571 = vpop.f32.mrb[0].mxu0
      %v3572 = vpop.f32.mrb[0].mxu0
      %v3573 = vadd.f32 0.0, %v3572
      %v3574 = vpop.f32.mrb[0].mxu0
      %3575 = vmatprep.mubr.bf16.mxu0 0
      %3576 = vmatmul.mubr.bf16.gmra.mrb[0].mxu0 %v3441
      %v3577 = vpop.f32.mrb[0].mxu0
      %v3578 = vadd.f32 0.0, %v3577
      %v3579 = vpop.f32.mrb[0].mxu0
      %v3580 = vpop.f32.mrb[0].mxu0
      %v3581 = vadd.f32 0.0, %v3580
      %v3582 = vpop.f32.mrb[0].mxu0
      %3583 = vmatprep.mubr.bf16.mxu0 0
      %3584 = vmatmul.mubr.bf16.gmra.mrb[0].mxu0 %v3444
      %v3585 = vpop.f32.mrb[0].mxu0
      %v3586 = vadd.f32 0.0, %v3585
      %v3587 = vpop.f32.mrb[0].mxu0
      %v3588 = vpop.f32.mrb[0].mxu0
      %v3589 = vadd.f32 0.0, %v3588
      %v3590 = vpop.f32.mrb[0].mxu0
      %3591 = vmatprep.mubr.bf16.mxu0 0
      %3592 = vmatmul.mubr.bf16.gmra.mrb[0].mxu0 %v3447
      %v3593 = vpop.f32.mrb[0].mxu0
      %v3594 = vadd.f32 0.0, %v3593
      %v3595 = vpop.f32.mrb[0].mxu0
      %v3596 = vpop.f32.mrb[0].mxu0
      %v3597 = vadd.f32 0.0, %v3596
      %v3598 = vpop.f32.mrb[0].mxu0
      %3599 = vmatprep.mubr.bf16.mxu0 0
      %3600 = vmatmul.mubr.bf16.gmra.mrb[0].mxu0 %v3450
      %v3601 = vpop.f32.mrb[0].mxu0
      %v3602 = vadd.f32 0.0, %v3601
      %v3603 = vpop.f32.mrb[0].mxu0
      %v3604 = vpop.f32.mrb[0].mxu0
      %v3605 = vadd.f32 0.0, %v3604
      %v3606 = vpop.f32.mrb[0].mxu0
      %3607 = vmatprep.mubr.bf16.mxu0 0
      %3608 = vmatmul.mubr.bf16.gmra.mrb[0].mxu0 %v3453
      %v3609 = vpop.f32.mrb[0].mxu0
      %v3610 = vadd.f32 0.0, %v3609
      %v3611 = vpop.f32.mrb[0].mxu0
      %v3612 = vpop.f32.mrb[0].mxu0
      %v3613 = vadd.f32 0.0, %v3612
      %v3614 = vpop.f32.mrb[0].mxu0
      %3615 = vdwg.mxu0
      %v3616 = vadd.f32 %v3326, %v3490
      %v3617 = vadd.f32 %v3327, %v3493
      %v3618 = vadd.f32 %v3328, %v3498
      %v3619 = vadd.f32 %v3329, %v3501
      %v3620 = vadd.f32 %v3330, %v3506
      %v3621 = vadd.f32 %v3331, %v3509
      %v3622 = vadd.f32 %v3332, %v3514
      %v3623 = vadd.f32 %v3333, %v3517
      %v3624 = vadd.f32 %v3334, %v3522
      %v3625 = vadd.f32 %v3335, %v3525
      %v3626 = vadd.f32 %v3336, %v3530
      %v3627 = vadd.f32 %v3337, %v3533
      %v3628 = vadd.f32 %v3338, %v3538
      %v3629 = vadd.f32 %v3339, %v3541
      %v3630 = vadd.f32 %v3340, %v3546
      %v3631 = vadd.f32 %v3341, %v3549
      %v3632 = vadd.f32 %v3342, %v3554
      %v3633 = vadd.f32 %v3343, %v3557
      %v3634 = vadd.f32 %v3344, %v3562
      %v3635 = vadd.f32 %v3345, %v3565
      %v3636 = vadd.f32 %v3346, %v3570
      %v3637 = vadd.f32 %v3347, %v3573
      %v3638 = vadd.f32 %v3348, %v3578
      %v3639 = vadd.f32 %v3349, %v3581
      %v3640 = vadd.f32 %v3350, %v3586
      %v3641 = vadd.f32 %v3351, %v3589
      %v3642 = vadd.f32 %v3352, %v3594
      %v3643 = vadd.f32 %v3353, %v3597
      %v3644 = vadd.f32 %v3354, %v3602
      %v3645 = vadd.f32 %v3355, %v3605
      %v3646 = vadd.f32 %v3356, %v3610
      %v3647 = vadd.f32 %v3357, %v3613
      %3648 = vst [vmem:[#allocation2] sm:$0xff] %v3616
      %3649 = vst [vmem:[#allocation2 + $0x8] sm:$0xff] %v3617
      %3650 = vst [vmem:[#allocation2 + $0x10] sm:$0xff] %v3618
      %3651 = vst [vmem:[#allocation2 + $0x18] sm:$0xff] %v3619
      %3652 = vst [vmem:[#allocation2 + $0x20] sm:$0xff] %v3620
      %3653 = vst [vmem:[#allocation2 + $0x28] sm:$0xff] %v3621
      %3654 = vst [vmem:[#allocation2 + $0x30] sm:$0xff] %v3622
      %3655 = vst [vmem:[#allocation2 + $0x38] sm:$0xff] %v3623
      %3656 = vst [vmem:[#allocation2 + $0x40] sm:$0xff] %v3624
      %3657 = vst [vmem:[#allocation2 + $0x48] sm:$0xff] %v3625
      %3658 = vst [vmem:[#allocation2 + $0x50] sm:$0xff] %v3626
      %3659 = vst [vmem:[#allocation2 + $0x58] sm:$0xff] %v3627
      %3660 = vst [vmem:[#allocation2 + $0x60] sm:$0xff] %v3628
      %3661 = vst [vmem:[#allocation2 + $0x68] sm:$0xff] %v3629
      %3662 = vst [vmem:[#allocation2 + $0x70] sm:$0xff] %v3630
      %3663 = vst [vmem:[#allocation2 + $0x78] sm:$0xff] %v3631
      %3664 = vst [vmem:[#allocation2 + $0x80] sm:$0xff] %v3632
      %3665 = vst [vmem:[#allocation2 + $0x88] sm:$0xff] %v3633
      %3666 = vst [vmem:[#allocation2 + $0x90] sm:$0xff] %v3634
      %3667 = vst [vmem:[#allocation2 + $0x98] sm:$0xff] %v3635
      %3668 = vst [vmem:[#allocation2 + $0xa0] sm:$0xff] %v3636
      %3669 = vst [vmem:[#allocation2 + $0xa8] sm:$0xff] %v3637
      %3670 = vst [vmem:[#allocation2 + $0xb0] sm:$0xff] %v3638
      %3671 = vst [vmem:[#allocation2 + $0xb8] sm:$0xff] %v3639
      %3672 = vst [vmem:[#allocation2 + $0xc0] sm:$0xff] %v3640
      %3673 = vst [vmem:[#allocation2 + $0xc8] sm:$0xff] %v3641
      %3674 = vst [vmem:[#allocation2 + $0xd0] sm:$0xff] %v3642
      %3675 = vst [vmem:[#allocation2 + $0xd8] sm:$0xff] %v3643
      %3676 = vst [vmem:[#allocation2 + $0xe0] sm:$0xff] %v3644
      %3677 = vst [vmem:[#allocation2 + $0xe8] sm:$0xff] %v3645
      %3678 = vst [vmem:[#allocation2 + $0xf0] sm:$0xff] %v3646
      %3679 = vst [vmem:[#allocation2 + $0xf8] sm:$0xff] %v3647
      %v3680 = vld [vmem:[#allocation2] sm:$0xff]
      %v3681 = vld [vmem:[#allocation2 + $0x8] sm:$0xff]
      %v3682 = vld [vmem:[#allocation2 + $0x10] sm:$0xff]
      %v3683 = vld [vmem:[#allocation2 + $0x18] sm:$0xff]
      %v3684 = vld [vmem:[#allocation2 + $0x20] sm:$0xff]
      %v3685 = vld [vmem:[#allocation2 + $0x28] sm:$0xff]
      %v3686 = vld [vmem:[#allocation2 + $0x30] sm:$0xff]
      %v3687 = vld [vmem:[#allocation2 + $0x38] sm:$0xff]
      %v3688 = vld [vmem:[#allocation2 + $0x40] sm:$0xff]
      %v3689 = vld [vmem:[#allocation2 + $0x48] sm:$0xff]
      %v3690 = vld [vmem:[#allocation2 + $0x50] sm:$0xff]
      %v3691 = vld [vmem:[#allocation2 + $0x58] sm:$0xff]
      %v3692 = vld [vmem:[#allocation2 + $0x60] sm:$0xff]
      %v3693 = vld [vmem:[#allocation2 + $0x68] sm:$0xff]
      %v3694 = vld [vmem:[#allocation2 + $0x70] sm:$0xff]
      %v3695 = vld [vmem:[#allocation2 + $0x78] sm:$0xff]
      %v3696 = vld [vmem:[#allocation2 + $0x80] sm:$0xff]
      %v3697 = vld [vmem:[#allocation2 + $0x88] sm:$0xff]
      %v3698 = vld [vmem:[#allocation2 + $0x90] sm:$0xff]
      %v3699 = vld [vmem:[#allocation2 + $0x98] sm:$0xff]
      %v3700 = vld [vmem:[#allocation2 + $0xa0] sm:$0xff]
      %v3701 = vld [vmem:[#allocation2 + $0xa8] sm:$0xff]
      %v3702 = vld [vmem:[#allocation2 + $0xb0] sm:$0xff]
      %v3703 = vld [vmem:[#allocation2 + $0xb8] sm:$0xff]
      %v3704 = vld [vmem:[#allocation2 + $0xc0] sm:$0xff]
      %v3705 = vld [vmem:[#allocation2 + $0xc8] sm:$0xff]
      %v3706 = vld [vmem:[#allocation2 + $0xd0] sm:$0xff]
      %v3707 = vld [vmem:[#allocation2 + $0xd8] sm:$0xff]
      %v3708 = vld [vmem:[#allocation2 + $0xe0] sm:$0xff]
      %v3709 = vld [vmem:[#allocation2 + $0xe8] sm:$0xff]
      %v3710 = vld [vmem:[#allocation2 + $0xf0] sm:$0xff]
      %v3711 = vld [vmem:[#allocation2 + $0xf8] sm:$0xff]
      %v3712 = vld [vmem:[%s2] sm:$0x1]
      %v3714 = vlaneseq
      %v3715 = vshrl.u32 %v3714, 7
      %v3716 = vsub.s32 0, %v3715
      %v3717 = vrot.slane %v3712, %v3716
      %v3719 = vadd.f32 %v3680, %v3717
      %v3720 = vadd.f32 %v3681, %v3717
      %v3721 = vadd.f32 %v3682, %v3717
      %v3722 = vadd.f32 %v3683, %v3717
      %v3723 = vadd.f32 %v3684, %v3717
      %v3724 = vadd.f32 %v3685, %v3717
      %v3725 = vadd.f32 %v3686, %v3717
      %v3726 = vadd.f32 %v3687, %v3717
      %v3727 = vadd.f32 %v3688, %v3717
      %v3728 = vadd.f32 %v3689, %v3717
      %v3729 = vadd.f32 %v3690, %v3717
      %v3730 = vadd.f32 %v3691, %v3717
      %v3731 = vadd.f32 %v3692, %v3717
      %v3732 = vadd.f32 %v3693, %v3717
      %v3733 = vadd.f32 %v3694, %v3717
      %v3734 = vadd.f32 %v3695, %v3717
      %v3735 = vadd.f32 %v3696, %v3717
      %v3736 = vadd.f32 %v3697, %v3717
      %v3737 = vadd.f32 %v3698, %v3717
      %v3738 = vadd.f32 %v3699, %v3717
      %v3739 = vadd.f32 %v3700, %v3717
      %v3740 = vadd.f32 %v3701, %v3717
      %v3741 = vadd.f32 %v3702, %v3717
      %v3742 = vadd.f32 %v3703, %v3717
      %v3743 = vadd.f32 %v3704, %v3717
      %v3744 = vadd.f32 %v3705, %v3717
      %v3745 = vadd.f32 %v3706, %v3717
      %v3746 = vadd.f32 %v3707, %v3717
      %v3747 = vadd.f32 %v3708, %v3717
      %v3748 = vadd.f32 %v3709, %v3717
      %v3749 = vadd.f32 %v3710, %v3717
      %v3750 = vadd.f32 %v3711, %v3717
      %v3751 = vmax.f32 %v3719, 0.0
      %v3752 = vmax.f32 %v3720, 0.0
      %v3753 = vmax.f32 %v3721, 0.0
      %v3754 = vmax.f32 %v3722, 0.0
      %v3755 = vmax.f32 %v3723, 0.0
      %v3756 = vmax.f32 %v3724, 0.0
      %v3757 = vmax.f32 %v3725, 0.0
      %v3758 = vmax.f32 %v3726, 0.0
      %v3759 = vmax.f32 %v3727, 0.0
      %v3760 = vmax.f32 %v3728, 0.0
      %v3761 = vmax.f32 %v3729, 0.0
      %v3762 = vmax.f32 %v3730, 0.0
      %v3763 = vmax.f32 %v3731, 0.0
      %v3764 = vmax.f32 %v3732, 0.0
      %v3765 = vmax.f32 %v3733, 0.0
      %v3766 = vmax.f32 %v3734, 0.0
      %v3767 = vmax.f32 %v3735, 0.0
      %v3768 = vmax.f32 %v3736, 0.0
      %v3769 = vmax.f32 %v3737, 0.0
      %v3770 = vmax.f32 %v3738, 0.0
      %v3771 = vmax.f32 %v3739, 0.0
      %v3772 = vmax.f32 %v3740, 0.0
      %v3773 = vmax.f32 %v3741, 0.0
      %v3774 = vmax.f32 %v3742, 0.0
      %v3775 = vmax.f32 %v3743, 0.0
      %v3776 = vmax.f32 %v3744, 0.0
      %v3777 = vmax.f32 %v3745, 0.0
      %v3778 = vmax.f32 %v3746, 0.0
      %v3779 = vmax.f32 %v3747, 0.0
      %v3780 = vmax.f32 %v3748, 0.0
      %v3781 = vmax.f32 %v3749, 0.0
      %v3782 = vmax.f32 %v3750, 0.0
      %3783 = vst [vmem:[%s170] sm:$0xff] %v3751
      %3784 = vst [vmem:[%s170 + $0x8] sm:$0xff] %v3752
      %3785 = vst [vmem:[%s170 + $0x10] sm:$0xff] %v3753
      %3786 = vst [vmem:[%s170 + $0x18] sm:$0xff] %v3754
      %3787 = vst [vmem:[%s170 + $0x20] sm:$0xff] %v3755
      %3788 = vst [vmem:[%s170 + $0x28] sm:$0xff] %v3756
      %3789 = vst [vmem:[%s170 + $0x30] sm:$0xff] %v3757
      %3790 = vst [vmem:[%s170 + $0x38] sm:$0xff] %v3758
      %3791 = vst [vmem:[%s170 + $0x40] sm:$0xff] %v3759
      %3792 = vst [vmem:[%s170 + $0x48] sm:$0xff] %v3760
      %3793 = vst [vmem:[%s170 + $0x50] sm:$0xff] %v3761
      %3794 = vst [vmem:[%s170 + $0x58] sm:$0xff] %v3762
      %3795 = vst [vmem:[%s170 + $0x60] sm:$0xff] %v3763
      %3796 = vst [vmem:[%s170 + $0x68] sm:$0xff] %v3764
      %3797 = vst [vmem:[%s170 + $0x70] sm:$0xff] %v3765
      %3798 = vst [vmem:[%s170 + $0x78] sm:$0xff] %v3766
      %3799 = vst [vmem:[%s170 + $0x80] sm:$0xff] %v3767
      %3800 = vst [vmem:[%s170 + $0x88] sm:$0xff] %v3768
      %3801 = vst [vmem:[%s170 + $0x90] sm:$0xff] %v3769
      %3802 = vst [vmem:[%s170 + $0x98] sm:$0xff] %v3770
      %3803 = vst [vmem:[%s170 + $0xa0] sm:$0xff] %v3771
      %3804 = vst [vmem:[%s170 + $0xa8] sm:$0xff] %v3772
      %3805 = vst [vmem:[%s170 + $0xb0] sm:$0xff] %v3773
      %3806 = vst [vmem:[%s170 + $0xb8] sm:$0xff] %v3774
      %3807 = vst [vmem:[%s170 + $0xc0] sm:$0xff] %v3775
      %3808 = vst [vmem:[%s170 + $0xc8] sm:$0xff] %v3776
      %3809 = vst [vmem:[%s170 + $0xd0] sm:$0xff] %v3777
      %3810 = vst [vmem:[%s170 + $0xd8] sm:$0xff] %v3778
      %3811 = vst [vmem:[%s170 + $0xe0] sm:$0xff] %v3779
      %3812 = vst [vmem:[%s170 + $0xe8] sm:$0xff] %v3780
      %3813 = vst [vmem:[%s170 + $0xf0] sm:$0xff] %v3781
      %3814 = vst [vmem:[%s170 + $0xf8] sm:$0xff] %v3782
      %p3815 = scmp.lt.s32.totalorder %s14, 1
      %s3816 = scalar_select %p3815, %s14, 1
      %s3817 = smul.addr %s3816, 32
      %s3818 = smul.addr %s3817, 8
      %s3819 = scalar_lea.vmem %s3, %s3818
      // Predicated region
      $region33: #{forward.5} parent=31 // pred_check
        %p3820 = pneg %p100
      $region34: #{forward.5} parent=31 // pred_check_branch
        %3822 = sbr.rel (%p3820) target = $region36
      $region35: #{forward.5} parent=31 // pred_region
        _
      $region36: #{forward.5} parent=31 // pred_fallthru
        _
    $region32: #{forward.5} parent=5 // pred_fallthru
      _
    %p3823 = scmp.le.s32.totalorder 2, %s9
    // Predicated region
    $region37: #{forward.5} parent=5 // pred_check
      %p3824 = pneg %p3823
    $region38: #{forward.5} parent=5 // pred_check_branch
      %3826 = sbr.rel (%p3824) target = $region40
    $region39: #{forward.5} parent=5 // pred_region
      %s3827 = ssub.s32 %s9, 2
      // Predicated region
      $region41: #{forward.5} parent=39 // pred_check
        %p3828 = pneg %p106
      $region42: #{forward.5} parent=39 // pred_check_branch
        %3830 = sbr.rel (%p3828) target = $region44
      $region43: #{forward.5} parent=39 // pred_region
        %p3831 = scmp.lt.s32.totalorder %s15, 1
        %s3832 = scalar_select %p3831, %s15, 1
        %s3833 = smul.addr %s3832, 32
        %s3834 = smul.addr %s3833, 8
        %s3835 = scalar_lea.vmem %s3, %s3834
      $region44: #{forward.5} parent=39 // pred_fallthru
        _
    $region40: #{forward.5} parent=5 // pred_fallthru
      _
  $region6: #{forward.5} parent=0 // loop_footer
    %s13 = sadd.s32 1, %s9
  $region7: #{forward.5} parent=0 // loop_footer_branch
    %8 = sbr.rel target = $region3
  $region8: #{forward.5} parent=0 // loop_exit
    _

</llo_original>
